<compile_context>
chip_gen: v7x
topology: tpu7x:2x2x1
jax: 0.10.0
libtpu: 0.0.40
codegen_flags: <defaults>
</compile_context>

<pallas_src>
import math

import numpy as np
import jax
import jax.numpy as jnp
from jax.experimental import pallas as pl
from jax.experimental.pallas import tpu as pltpu


def _round_up(n, m):
    return (n + m - 1) // m * m


# ----------------------------------------------------------------------------
# Host-side parameter preparation (done once, outside the hot path)
# ----------------------------------------------------------------------------
def _conv1_matrices(w1):
    """conv1 (1->6, 5x5) + ReLU + 2x2 maxpool as 2 K=128 matmuls per (s, r).

    Input layout per sample: 8 row-groups of 4 image rows, lane = (row%4)*32+w.
    Pooled row m = 2*i+s, pool row-parity r: conv row 4*i+2*s+r reads image
    rows 4*i+d with d = 2*s+r+kh in [0,7]:
        d < 4  -> row-group i   (slab A), K-lane  d*32     + col
        d >= 4 -> row-group i+1 (slab B), K-lane (d-4)*32  + col
    Output lanes fold pooling column-parity p into two 128-lane halves:
        n = p*128 + q*6 + ch   (q = pooled column, 0..13)
    """
    w = np.asarray(w1, np.float32)                       # (6,1,5,5)
    lo = np.zeros((2, 2, 128, 256), np.float32)
    hi = np.zeros((2, 2, 128, 256), np.float32)
    for s in range(2):
        for r in range(2):
            for kh in range(5):
                d = 2 * s + r + kh
                tgt = lo if d < 4 else hi
                for kw in range(5):
                    for p in range(2):
                        for q in range(14):
                            col = 2 * q + p + kw         # image column (<32)
                            k = (d % 4) * 32 + col
                            n = p * 128 + q * 6
                            tgt[s, r, k, n:n + 6] += w[:, 0, kh, kw]
    return lo, hi


def _conv2_matrices(w2):
    """conv2 (6->16, 5x5) + pool: per-kh (84 -> 2x128 parity-folded) matrices."""
    w = np.asarray(w2, np.float32)                       # (16,6,5,5)
    m = np.zeros((5, 84, 256), np.float32)
    for kh in range(5):
        for p in range(2):
            for q in range(5):
                for kw in range(5):
                    col = 2 * q + p + kw                 # pooled1 column (<14)
                    m[kh, col * 6:(col + 1) * 6,
                      p * 128 + q * 16: p * 128 + (q + 1) * 16] += w[:, :, kh, kw].T
    return m


def _conv3_matrices(w3):
    """conv3 (16->120, 5x5 over a 5x5 input): per-kh (80 -> 120) matrices."""
    w = np.asarray(w3, np.float32)                       # (120,16,5,5)
    m = np.zeros((5, 80, 120), np.float32)
    for kh in range(5):
        for kw in range(5):
            m[kh, kw * 16:(kw + 1) * 16, :] = w[:, :, kh, kw].T
    return m


def prepare_params(params):
    """Rearrange PyTorch-layout LeNet params into kernel-ready matrices."""
    p = {k: np.asarray(v, np.float32) for k, v in params.items()}
    w1lo, w1hi = _conv1_matrices(p["w1"])
    wf2 = np.zeros((84, 128), np.float32)                # lane-dense logits
    wf2[:, :10] = p["fc2_w"].T
    bf2 = np.full((1, 128), -1e30, np.float32)           # pad classes -> -inf-ish
    bf2[0, :10] = p["fc2_b"]
    prepped = dict(
        w1lo=w1lo, w1hi=w1hi,                            # (2,2,128,256) x2
        b1=np.tile(p["b1"], 14)[None, :],                # (1,84)  lane = q*6+ch
        m2=_conv2_matrices(p["w2"]),                     # (5,84,256)
        b2=np.tile(p["b2"], 5)[None, :],                 # (1,80)  lane = q*16+co
        m3=_conv3_matrices(p["w3"]),                     # (5,80,120)
        b3=p["b3"][None, :],                             # (1,120)
        wf1=p["fc1_w"].T.copy(),                         # (120,84)
        bf1=p["fc1_b"][None, :],                         # (1,84)
        wf2=wf2, bf2=bf2,                                # (84,128), (1,128)
    )
    return {k: jnp.asarray(v) for k, v in prepped.items()}


# ----------------------------------------------------------------------------
# Fused Pallas kernel: one grid step == TB batch samples
# ----------------------------------------------------------------------------
def _lenet_kernel(x_ref, w1lo_ref, w1hi_ref, b1_ref, m2_ref, b2_ref,
                  m3_ref, b3_ref, wf1_ref, bf1_ref, wf2_ref, bf2_ref, out_ref):
    f32 = jnp.float32
    tb = x_ref.shape[1]                                  # samples per step

    def mm(a, b):
        return jnp.dot(a, b, preferred_element_type=f32)

    # x_ref: (8, TB, 128); flatten row-groups over batch (layout-preserving).
    x_all = x_ref[...].reshape(8 * tb, 128)              # row = j*TB + b
    slab_a = x_all[0:7 * tb, :]                          # groups j = 0..6
    slab_b = x_all[tb:8 * tb, :]                         # groups j = 1..7

    # ---- conv1 (1->6, 5x5) + ReLU + 2x2 maxpool -----------------------------
    # pooled1[s][i*TB + b, q*6 + ch] == pooled conv1 row (2i+s), col q, chan ch
    pooled1 = []
    for s in range(2):
        best = None
        for r in range(2):
            acc = mm(slab_a, w1lo_ref[s, r]) + mm(slab_b, w1hi_ref[s, r])
            best = acc if best is None else jnp.maximum(best, acc)
        pre = jnp.maximum(best[:, 0:84], best[:, 128:212]) + b1_ref[...]
        pooled1.append(jnp.maximum(pre, 0.0))            # (7*TB, 84)

    # ---- conv2 (6->16, 5x5) + ReLU + 2x2 maxpool ----------------------------
    best2 = None
    for r in range(2):
        acc = None
        for kh in range(5):
            c = r + kh                                   # pooled1 row offset
            lhs = pooled1[c % 2][(c // 2) * tb:(c // 2 + 5) * tb, :]
            t = mm(lhs, m2_ref[kh])
            acc = t if acc is None else acc + t
        best2 = acc if best2 is None else jnp.maximum(best2, acc)
    pre2 = jnp.maximum(best2[:, 0:80], best2[:, 128:208]) + b2_ref[...]
    x3 = jnp.maximum(pre2, 0.0)                          # (5*TB, 80)

    # ---- conv3 (16->120, 5x5 -> 1x1) + ReLU ---------------------------------
    acc3 = None
    for kh in range(5):
        t = mm(x3[kh * tb:(kh + 1) * tb, :], m3_ref[kh])
        acc3 = t if acc3 is None else acc3 + t
    h3 = jnp.maximum(acc3 + b3_ref[...], 0.0)            # (TB, 120)

    # ---- fc1 + ReLU, fc2 + log_softmax (lane-dense, 128-wide) ---------------
    h4 = jnp.maximum(mm(h3, wf1_ref[...]) + bf1_ref[...], 0.0)     # (TB, 84)
    logits = mm(h4, wf2_ref[...]) + bf2_ref[...]                   # (TB, 128)
    z = logits - jnp.max(logits, axis=-1, keepdims=True)
    out_ref[...] = (z - jnp.log(jnp.sum(jnp.exp(z), axis=-1, keepdims=True))
                    ).astype(out_ref.dtype)


def _resident(shape):
    """Full-array block with a constant index_map -> stays VMEM resident."""
    nd = len(shape)
    return pl.BlockSpec(shape, lambda g, _nd=nd: (0,) * _nd)


def lenet_forward(prepped, x, tb_max=128):
    """x: (B, 1, 32, 32) float32 (NCHW, as in PyTorch) -> (B, 10) log-probs."""
    B = x.shape[0]
    assert x.shape[1:] == (1, 32, 32), "LeNet requires 1x32x32 inputs"

    tb = min(tb_max, _round_up(B, 8))                    # samples per grid step
    bp = _round_up(B, tb)

    # Free reshape: (B,1,32,32) -> (B,8,128) with h = 4*j + c, lane = c*32 + w.
    xr = x.reshape(B, 8, 128)
    if bp != B:
        xr = jnp.pad(xr, ((0, bp - B), (0, 0), (0, 0)))
    # One tiny layout transpose so batch lands in the matmul sublane/M dim.
    # TODO(synk): could be absorbed via allow_input_fusion / in-kernel regroup.
    xr = jnp.transpose(xr, (1, 0, 2))                    # (8, Bp, 128)

    weights = (prepped["w1lo"], prepped["w1hi"], prepped["b1"], prepped["m2"],
               prepped["b2"], prepped["m3"], prepped["b3"], prepped["wf1"],
               prepped["bf1"], prepped["wf2"], prepped["bf2"])

    grid = (bp // tb,)
    flops_per_sample = 2 * (8 * 7 * 128 * 256 + 10 * 5 * 84 * 256
                            + 5 * 80 * 120 + 120 * 84 + 84 * 128)
    weight_bytes = sum(int(w.size) * 4 for w in weights)
    cost = pl.CostEstimate(
        flops=flops_per_sample * bp,
        transcendentals=129 * bp,
        bytes_accessed=int(xr.size) * 4 + weight_bytes * grid[0] + bp * 128 * 4)

    out = pl.pallas_call(
        _lenet_kernel,
        out_shape=jax.ShapeDtypeStruct((bp, 128), jnp.float32),
        grid=grid,
        in_specs=[pl.BlockSpec((8, tb, 128), lambda g: (0, g, 0))]
                 + [_resident(w.shape) for w in weights],
        out_specs=pl.BlockSpec((tb, 128), lambda g: (g, 0)),
        compiler_params=pltpu.CompilerParams(
            dimension_semantics=("parallel",),
            vmem_limit_bytes=48 * 1024 * 1024),
        cost_estimate=cost,
    )(xr, *weights)
    return out[:B, :10]


# ----------------------------------------------------------------------------
# Parameters (deterministic, PyTorch-style uniform(-1/sqrt(fan_in), ...))
# ----------------------------------------------------------------------------
def init_params(key):
    def uni(k, shape, fan_in):
        bound = 1.0 / math.sqrt(fan_in)
        return jax.random.uniform(k, shape, jnp.float32, -bound, bound)

    ks = jax.random.split(key, 10)
    p = {}
    p["w1"] = uni(ks[0], (6, 1, 5, 5), 1 * 5 * 5)
    p["b1"] = uni(ks[1], (6,), 1 * 5 * 5)
    p["w2"] = uni(ks[2], (16, 6, 5, 5), 6 * 5 * 5)
    p["b2"] = uni(ks[3], (16,), 6 * 5 * 5)
    p["w3"] = uni(ks[4], (120, 16, 5, 5), 16 * 5 * 5)
    p["b3"] = uni(ks[5], (120,), 16 * 5 * 5)
    p["fc1_w"] = uni(ks[6], (84, 120), 120)              # PyTorch Linear: (out, in)
    p["fc1_b"] = uni(ks[7], (84,), 120)
    p["fc2_w"] = uni(ks[8], (10, 84), 84)
    p["fc2_b"] = uni(ks[9], (10,), 84)
    return p


# ----------------------------------------------------------------------------
# Pure-JAX reference (no Pallas) for correctness checking
# ----------------------------------------------------------------------------
def _reference_forward(params, x):
    hi = jax.lax.Precision.HIGHEST

    def conv_relu(x, w, b):
        B, Cin, H, W = x.shape
        Cout, _, KH, KW = w.shape
        OH, OW = H - KH + 1, W - KW + 1
        cols = [x[:, :, kh:kh + OH, kw:kw + OW]
                for kh in range(KH) for kw in range(KW)]
        patches = jnp.stack(cols, axis=2)                # (B, Cin, KH*KW, OH, OW)
        patches = patches.transpose(0, 3, 4, 1, 2).reshape(B * OH * OW, Cin * KH * KW)
        out = jnp.dot(patches, w.reshape(Cout, -1).T, precision=hi) + b
        out = jnp.maximum(out, 0.0)
        return out.reshape(B, OH, OW, Cout).transpose(0, 3, 1, 2)

    def pool(x):
        return jnp.maximum(jnp.maximum(x[:, :, 0::2, 0::2], x[:, :, 0::2, 1::2]),
                           jnp.maximum(x[:, :, 1::2, 0::2], x[:, :, 1::2, 1::2]))

    x = pool(conv_relu(x, params["w1"], params["b1"]))
    x = pool(conv_relu(x, params["w2"], params["b2"]))
    x = conv_relu(x, params["w3"], params["b3"]).reshape(-1, 120)
    x = jnp.maximum(jnp.dot(x, params["fc1_w"].T, precision=hi) + params["fc1_b"], 0.0)
    x = jnp.dot(x, params["fc2_w"].T, precision=hi) + params["fc2_b"]
    return jax.nn.log_softmax(x, axis=-1)


if __name__ == "__main__":
    key = jax.random.PRNGKey(0)
    pkey, xkey = jax.random.split(key)
    params = init_params(pkey)
    # LeNet's architecture requires 1x32x32 inputs to reach the 120-dim flatten.
    x = jax.random.normal(xkey, (2, 1, 32, 32), dtype=jnp.float32)

    prepped = prepare_params(params)
    fwd = jax.jit(lenet_forward)
    out = jax.block_until_ready(fwd(prepped, x))

    assert out.shape == (2, 10)
    # log-softmax rows should (approximately) exponentiate-sum to 1
    assert bool(jnp.all(jnp.abs(jnp.sum(jnp.exp(out), axis=-1) - 1.0) < 1e-3))
    # numerical check against a pure-JAX reference of the PyTorch module
    # (tolerance allows for reduced-precision MXU passes on f32 matmuls)
    ref = _reference_forward(params, x)
    max_err = float(jnp.max(jnp.abs(out - ref)))
    assert max_err < 3e-2, f"mismatch vs reference: {max_err}"
    print("KERNEL_OK")
</pallas_src>

<mosaic_0001>
module attributes {stable_mosaic.version = 11 : i64} {
  func.func @_lenet_kernel(%arg0: i32, %arg1: memref<8x8x128xf32, #tpu.memory_space<vmem>>, %arg2: memref<2x2x128x256xf32, #tpu.memory_space<vmem>>, %arg3: memref<2x2x128x256xf32, #tpu.memory_space<vmem>>, %arg4: memref<1x84xf32, #tpu.memory_space<vmem>>, %arg5: memref<5x84x256xf32, #tpu.memory_space<vmem>>, %arg6: memref<1x80xf32, #tpu.memory_space<vmem>>, %arg7: memref<5x80x120xf32, #tpu.memory_space<vmem>>, %arg8: memref<1x120xf32, #tpu.memory_space<vmem>>, %arg9: memref<120x84xf32, #tpu.memory_space<vmem>>, %arg10: memref<1x84xf32, #tpu.memory_space<vmem>>, %arg11: memref<84x128xf32, #tpu.memory_space<vmem>>, %arg12: memref<1x128xf32, #tpu.memory_space<vmem>>, %arg13: memref<8x128xf32, #tpu.memory_space<vmem>>) attributes {dimension_semantics = [#tpu.dimension_semantics<parallel>], iteration_bounds = array<i64: 1>, scalar_prefetch = 0 : i64, scratch_operands = 0 : i64, tpu.core_type = #tpu.core_type<tc>, window_params = [{transform_indices = @transform_0, window_bounds = array<i64: 8, 8, 128>}, {pipeline_mode = #tpu.pipeline_mode<synchronous>, transform_indices = @transform_1, window_bounds = array<i64: 2, 2, 128, 256>}, {pipeline_mode = #tpu.pipeline_mode<synchronous>, transform_indices = @transform_2, window_bounds = array<i64: 2, 2, 128, 256>}, {pipeline_mode = #tpu.pipeline_mode<synchronous>, transform_indices = @transform_3, window_bounds = array<i64: 1, 84>}, {pipeline_mode = #tpu.pipeline_mode<synchronous>, transform_indices = @transform_4, window_bounds = array<i64: 5, 84, 256>}, {pipeline_mode = #tpu.pipeline_mode<synchronous>, transform_indices = @transform_5, window_bounds = array<i64: 1, 80>}, {pipeline_mode = #tpu.pipeline_mode<synchronous>, transform_indices = @transform_6, window_bounds = array<i64: 5, 80, 120>}, {pipeline_mode = #tpu.pipeline_mode<synchronous>, transform_indices = @transform_7, window_bounds = array<i64: 1, 120>}, {pipeline_mode = #tpu.pipeline_mode<synchronous>, transform_indices = @transform_8, window_bounds = array<i64: 120, 84>}, {pipeline_mode = #tpu.pipeline_mode<synchronous>, transform_indices = @transform_9, window_bounds = array<i64: 1, 84>}, {pipeline_mode = #tpu.pipeline_mode<synchronous>, transform_indices = @transform_10, window_bounds = array<i64: 84, 128>}, {pipeline_mode = #tpu.pipeline_mode<synchronous>, transform_indices = @transform_11, window_bounds = array<i64: 1, 128>}, {transform_indices = @transform_12, window_bounds = array<i64: 8, 128>}]} {
    %c0 = arith.constant 0 : index
    %c0_0 = arith.constant 0 : index
    %c0_1 = arith.constant 0 : index
    %0 = vector.load %arg1[%c0, %c0_0, %c0_1] : memref<8x8x128xf32, #tpu.memory_space<vmem>>, vector<8x8x128xf32>
    %1 = vector.shape_cast %0 : vector<8x8x128xf32> to vector<64x128xf32>
    %2 = vector.extract_strided_slice %1 {offsets = [0, 0], sizes = [56, 128], strides = [1, 1]} : vector<64x128xf32> to vector<56x128xf32>
    %3 = vector.extract_strided_slice %1 {offsets = [8, 0], sizes = [56, 128], strides = [1, 1]} : vector<64x128xf32> to vector<56x128xf32>
    %c0_2 = arith.constant 0 : index
    %c0_3 = arith.constant 0 : index
    %c0_4 = arith.constant 0 : index
    %c0_5 = arith.constant 0 : index
    %4 = vector.load %arg2[%c0_2, %c0_3, %c0_4, %c0_5] : memref<2x2x128x256xf32, #tpu.memory_space<vmem>>, vector<1x1x128x256xf32>
    %5 = vector.shape_cast %4 : vector<1x1x128x256xf32> to vector<128x256xf32>
    %cst = arith.constant dense<0.000000e+00> : vector<56x256xf32>
    %6 = tpu.matmul %2, %5, %cst {dimension_numbers = #tpu.dot_dimension_numbers<[1], [0], [0], [1], [0, 0, 1, 1], [], []>} : vector<56x128xf32>, vector<128x256xf32>, vector<56x256xf32> -> vector<56x256xf32>
    %c0_6 = arith.constant 0 : index
    %c0_7 = arith.constant 0 : index
    %c0_8 = arith.constant 0 : index
    %c0_9 = arith.constant 0 : index
    %7 = vector.load %arg3[%c0_6, %c0_7, %c0_8, %c0_9] : memref<2x2x128x256xf32, #tpu.memory_space<vmem>>, vector<1x1x128x256xf32>
    %8 = vector.shape_cast %7 : vector<1x1x128x256xf32> to vector<128x256xf32>
    %cst_10 = arith.constant dense<0.000000e+00> : vector<56x256xf32>
    %9 = tpu.matmul %3, %8, %cst_10 {dimension_numbers = #tpu.dot_dimension_numbers<[1], [0], [0], [1], [0, 0, 1, 1], [], []>} : vector<56x128xf32>, vector<128x256xf32>, vector<56x256xf32> -> vector<56x256xf32>
    %10 = arith.addf %6, %9 : vector<56x256xf32>
    %c0_11 = arith.constant 0 : index
    %c1 = arith.constant 1 : index
    %c0_12 = arith.constant 0 : index
    %c0_13 = arith.constant 0 : index
    %11 = vector.load %arg2[%c0_11, %c1, %c0_12, %c0_13] : memref<2x2x128x256xf32, #tpu.memory_space<vmem>>, vector<1x1x128x256xf32>
    %12 = vector.shape_cast %11 : vector<1x1x128x256xf32> to vector<128x256xf32>
    %cst_14 = arith.constant dense<0.000000e+00> : vector<56x256xf32>
    %13 = tpu.matmul %2, %12, %cst_14 {dimension_numbers = #tpu.dot_dimension_numbers<[1], [0], [0], [1], [0, 0, 1, 1], [], []>} : vector<56x128xf32>, vector<128x256xf32>, vector<56x256xf32> -> vector<56x256xf32>
    %c0_15 = arith.constant 0 : index
    %c1_16 = arith.constant 1 : index
    %c0_17 = arith.constant 0 : index
    %c0_18 = arith.constant 0 : index
    %14 = vector.load %arg3[%c0_15, %c1_16, %c0_17, %c0_18] : memref<2x2x128x256xf32, #tpu.memory_space<vmem>>, vector<1x1x128x256xf32>
    %15 = vector.shape_cast %14 : vector<1x1x128x256xf32> to vector<128x256xf32>
    %cst_19 = arith.constant dense<0.000000e+00> : vector<56x256xf32>
    %16 = tpu.matmul %3, %15, %cst_19 {dimension_numbers = #tpu.dot_dimension_numbers<[1], [0], [0], [1], [0, 0, 1, 1], [], []>} : vector<56x128xf32>, vector<128x256xf32>, vector<56x256xf32> -> vector<56x256xf32>
    %17 = arith.addf %13, %16 : vector<56x256xf32>
    %18 = arith.maximumf %10, %17 : vector<56x256xf32>
    %19 = vector.extract_strided_slice %18 {offsets = [0, 0], sizes = [56, 84], strides = [1, 1]} : vector<56x256xf32> to vector<56x84xf32>
    %20 = vector.extract_strided_slice %18 {offsets = [0, 128], sizes = [56, 84], strides = [1, 1]} : vector<56x256xf32> to vector<56x84xf32>
    %21 = arith.maximumf %19, %20 : vector<56x84xf32>
    %c0_20 = arith.constant 0 : index
    %c0_21 = arith.constant 0 : index
    %22 = vector.load %arg4[%c0_20, %c0_21] : memref<1x84xf32, #tpu.memory_space<vmem>>, vector<1x84xf32>
    %23 = vector.broadcast %22 : vector<1x84xf32> to vector<56x84xf32>
    %24 = arith.addf %21, %23 : vector<56x84xf32>
    %cst_22 = arith.constant 0.000000e+00 : f32
    %25 = vector.broadcast %cst_22 : f32 to vector<56x84xf32>
    %26 = arith.maximumf %24, %25 : vector<56x84xf32>
    %c1_23 = arith.constant 1 : index
    %c0_24 = arith.constant 0 : index
    %c0_25 = arith.constant 0 : index
    %c0_26 = arith.constant 0 : index
    %27 = vector.load %arg2[%c1_23, %c0_24, %c0_25, %c0_26] : memref<2x2x128x256xf32, #tpu.memory_space<vmem>>, vector<1x1x128x256xf32>
    %28 = vector.shape_cast %27 : vector<1x1x128x256xf32> to vector<128x256xf32>
    %cst_27 = arith.constant dense<0.000000e+00> : vector<56x256xf32>
    %29 = tpu.matmul %2, %28, %cst_27 {dimension_numbers = #tpu.dot_dimension_numbers<[1], [0], [0], [1], [0, 0, 1, 1], [], []>} : vector<56x128xf32>, vector<128x256xf32>, vector<56x256xf32> -> vector<56x256xf32>
    %c1_28 = arith.constant 1 : index
    %c0_29 = arith.constant 0 : index
    %c0_30 = arith.constant 0 : index
    %c0_31 = arith.constant 0 : index
    %30 = vector.load %arg3[%c1_28, %c0_29, %c0_30, %c0_31] : memref<2x2x128x256xf32, #tpu.memory_space<vmem>>, vector<1x1x128x256xf32>
    %31 = vector.shape_cast %30 : vector<1x1x128x256xf32> to vector<128x256xf32>
    %cst_32 = arith.constant dense<0.000000e+00> : vector<56x256xf32>
    %32 = tpu.matmul %3, %31, %cst_32 {dimension_numbers = #tpu.dot_dimension_numbers<[1], [0], [0], [1], [0, 0, 1, 1], [], []>} : vector<56x128xf32>, vector<128x256xf32>, vector<56x256xf32> -> vector<56x256xf32>
    %33 = arith.addf %29, %32 : vector<56x256xf32>
    %c1_33 = arith.constant 1 : index
    %c1_34 = arith.constant 1 : index
    %c0_35 = arith.constant 0 : index
    %c0_36 = arith.constant 0 : index
    %34 = vector.load %arg2[%c1_33, %c1_34, %c0_35, %c0_36] : memref<2x2x128x256xf32, #tpu.memory_space<vmem>>, vector<1x1x128x256xf32>
    %35 = vector.shape_cast %34 : vector<1x1x128x256xf32> to vector<128x256xf32>
    %cst_37 = arith.constant dense<0.000000e+00> : vector<56x256xf32>
    %36 = tpu.matmul %2, %35, %cst_37 {dimension_numbers = #tpu.dot_dimension_numbers<[1], [0], [0], [1], [0, 0, 1, 1], [], []>} : vector<56x128xf32>, vector<128x256xf32>, vector<56x256xf32> -> vector<56x256xf32>
    %c1_38 = arith.constant 1 : index
    %c1_39 = arith.constant 1 : index
    %c0_40 = arith.constant 0 : index
    %c0_41 = arith.constant 0 : index
    %37 = vector.load %arg3[%c1_38, %c1_39, %c0_40, %c0_41] : memref<2x2x128x256xf32, #tpu.memory_space<vmem>>, vector<1x1x128x256xf32>
    %38 = vector.shape_cast %37 : vector<1x1x128x256xf32> to vector<128x256xf32>
    %cst_42 = arith.constant dense<0.000000e+00> : vector<56x256xf32>
    %39 = tpu.matmul %3, %38, %cst_42 {dimension_numbers = #tpu.dot_dimension_numbers<[1], [0], [0], [1], [0, 0, 1, 1], [], []>} : vector<56x128xf32>, vector<128x256xf32>, vector<56x256xf32> -> vector<56x256xf32>
    %40 = arith.addf %36, %39 : vector<56x256xf32>
    %41 = arith.maximumf %33, %40 : vector<56x256xf32>
    %42 = vector.extract_strided_slice %41 {offsets = [0, 0], sizes = [56, 84], strides = [1, 1]} : vector<56x256xf32> to vector<56x84xf32>
    %43 = vector.extract_strided_slice %41 {offsets = [0, 128], sizes = [56, 84], strides = [1, 1]} : vector<56x256xf32> to vector<56x84xf32>
    %44 = arith.maximumf %42, %43 : vector<56x84xf32>
    %c0_43 = arith.constant 0 : index
    %c0_44 = arith.constant 0 : index
    %45 = vector.load %arg4[%c0_43, %c0_44] : memref<1x84xf32, #tpu.memory_space<vmem>>, vector<1x84xf32>
    %46 = vector.broadcast %45 : vector<1x84xf32> to vector<56x84xf32>
    %47 = arith.addf %44, %46 : vector<56x84xf32>
    %cst_45 = arith.constant 0.000000e+00 : f32
    %48 = vector.broadcast %cst_45 : f32 to vector<56x84xf32>
    %49 = arith.maximumf %47, %48 : vector<56x84xf32>
    %50 = vector.extract_strided_slice %26 {offsets = [0, 0], sizes = [40, 84], strides = [1, 1]} : vector<56x84xf32> to vector<40x84xf32>
    %c0_46 = arith.constant 0 : index
    %c0_47 = arith.constant 0 : index
    %c0_48 = arith.constant 0 : index
    %51 = vector.load %arg5[%c0_46, %c0_47, %c0_48] : memref<5x84x256xf32, #tpu.memory_space<vmem>>, vector<1x84x256xf32>
    %52 = vector.shape_cast %51 : vector<1x84x256xf32> to vector<84x256xf32>
    %cst_49 = arith.constant dense<0.000000e+00> : vector<40x256xf32>
    %53 = tpu.matmul %50, %52, %cst_49 {dimension_numbers = #tpu.dot_dimension_numbers<[1], [0], [0], [1], [0, 0, 1, 1], [], []>} : vector<40x84xf32>, vector<84x256xf32>, vector<40x256xf32> -> vector<40x256xf32>
    %54 = vector.extract_strided_slice %49 {offsets = [0, 0], sizes = [40, 84], strides = [1, 1]} : vector<56x84xf32> to vector<40x84xf32>
    %c1_50 = arith.constant 1 : index
    %c0_51 = arith.constant 0 : index
    %c0_52 = arith.constant 0 : index
    %55 = vector.load %arg5[%c1_50, %c0_51, %c0_52] : memref<5x84x256xf32, #tpu.memory_space<vmem>>, vector<1x84x256xf32>
    %56 = vector.shape_cast %55 : vector<1x84x256xf32> to vector<84x256xf32>
    %cst_53 = arith.constant dense<0.000000e+00> : vector<40x256xf32>
    %57 = tpu.matmul %54, %56, %cst_53 {dimension_numbers = #tpu.dot_dimension_numbers<[1], [0], [0], [1], [0, 0, 1, 1], [], []>} : vector<40x84xf32>, vector<84x256xf32>, vector<40x256xf32> -> vector<40x256xf32>
    %58 = arith.addf %53, %57 : vector<40x256xf32>
    %59 = vector.extract_strided_slice %26 {offsets = [8, 0], sizes = [40, 84], strides = [1, 1]} : vector<56x84xf32> to vector<40x84xf32>
    %c2 = arith.constant 2 : index
    %c0_54 = arith.constant 0 : index
    %c0_55 = arith.constant 0 : index
    %60 = vector.load %arg5[%c2, %c0_54, %c0_55] : memref<5x84x256xf32, #tpu.memory_space<vmem>>, vector<1x84x256xf32>
    %61 = vector.shape_cast %60 : vector<1x84x256xf32> to vector<84x256xf32>
    %cst_56 = arith.constant dense<0.000000e+00> : vector<40x256xf32>
    %62 = tpu.matmul %59, %61, %cst_56 {dimension_numbers = #tpu.dot_dimension_numbers<[1], [0], [0], [1], [0, 0, 1, 1], [], []>} : vector<40x84xf32>, vector<84x256xf32>, vector<40x256xf32> -> vector<40x256xf32>
    %63 = arith.addf %58, %62 : vector<40x256xf32>
    %64 = vector.extract_strided_slice %49 {offsets = [8, 0], sizes = [40, 84], strides = [1, 1]} : vector<56x84xf32> to vector<40x84xf32>
    %c3 = arith.constant 3 : index
    %c0_57 = arith.constant 0 : index
    %c0_58 = arith.constant 0 : index
    %65 = vector.load %arg5[%c3, %c0_57, %c0_58] : memref<5x84x256xf32, #tpu.memory_space<vmem>>, vector<1x84x256xf32>
    %66 = vector.shape_cast %65 : vector<1x84x256xf32> to vector<84x256xf32>
    %cst_59 = arith.constant dense<0.000000e+00> : vector<40x256xf32>
    %67 = tpu.matmul %64, %66, %cst_59 {dimension_numbers = #tpu.dot_dimension_numbers<[1], [0], [0], [1], [0, 0, 1, 1], [], []>} : vector<40x84xf32>, vector<84x256xf32>, vector<40x256xf32> -> vector<40x256xf32>
    %68 = arith.addf %63, %67 : vector<40x256xf32>
    %69 = vector.extract_strided_slice %26 {offsets = [16, 0], sizes = [40, 84], strides = [1, 1]} : vector<56x84xf32> to vector<40x84xf32>
    %c4 = arith.constant 4 : index
    %c0_60 = arith.constant 0 : index
    %c0_61 = arith.constant 0 : index
    %70 = vector.load %arg5[%c4, %c0_60, %c0_61] : memref<5x84x256xf32, #tpu.memory_space<vmem>>, vector<1x84x256xf32>
    %71 = vector.shape_cast %70 : vector<1x84x256xf32> to vector<84x256xf32>
    %cst_62 = arith.constant dense<0.000000e+00> : vector<40x256xf32>
    %72 = tpu.matmul %69, %71, %cst_62 {dimension_numbers = #tpu.dot_dimension_numbers<[1], [0], [0], [1], [0, 0, 1, 1], [], []>} : vector<40x84xf32>, vector<84x256xf32>, vector<40x256xf32> -> vector<40x256xf32>
    %73 = arith.addf %68, %72 : vector<40x256xf32>
    %74 = vector.extract_strided_slice %49 {offsets = [0, 0], sizes = [40, 84], strides = [1, 1]} : vector<56x84xf32> to vector<40x84xf32>
    %c0_63 = arith.constant 0 : index
    %c0_64 = arith.constant 0 : index
    %c0_65 = arith.constant 0 : index
    %75 = vector.load %arg5[%c0_63, %c0_64, %c0_65] : memref<5x84x256xf32, #tpu.memory_space<vmem>>, vector<1x84x256xf32>
    %76 = vector.shape_cast %75 : vector<1x84x256xf32> to vector<84x256xf32>
    %cst_66 = arith.constant dense<0.000000e+00> : vector<40x256xf32>
    %77 = tpu.matmul %74, %76, %cst_66 {dimension_numbers = #tpu.dot_dimension_numbers<[1], [0], [0], [1], [0, 0, 1, 1], [], []>} : vector<40x84xf32>, vector<84x256xf32>, vector<40x256xf32> -> vector<40x256xf32>
    %78 = vector.extract_strided_slice %26 {offsets = [8, 0], sizes = [40, 84], strides = [1, 1]} : vector<56x84xf32> to vector<40x84xf32>
    %c1_67 = arith.constant 1 : index
    %c0_68 = arith.constant 0 : index
    %c0_69 = arith.constant 0 : index
    %79 = vector.load %arg5[%c1_67, %c0_68, %c0_69] : memref<5x84x256xf32, #tpu.memory_space<vmem>>, vector<1x84x256xf32>
    %80 = vector.shape_cast %79 : vector<1x84x256xf32> to vector<84x256xf32>
    %cst_70 = arith.constant dense<0.000000e+00> : vector<40x256xf32>
    %81 = tpu.matmul %78, %80, %cst_70 {dimension_numbers = #tpu.dot_dimension_numbers<[1], [0], [0], [1], [0, 0, 1, 1], [], []>} : vector<40x84xf32>, vector<84x256xf32>, vector<40x256xf32> -> vector<40x256xf32>
    %82 = arith.addf %77, %81 : vector<40x256xf32>
    %83 = vector.extract_strided_slice %49 {offsets = [8, 0], sizes = [40, 84], strides = [1, 1]} : vector<56x84xf32> to vector<40x84xf32>
    %c2_71 = arith.constant 2 : index
    %c0_72 = arith.constant 0 : index
    %c0_73 = arith.constant 0 : index
    %84 = vector.load %arg5[%c2_71, %c0_72, %c0_73] : memref<5x84x256xf32, #tpu.memory_space<vmem>>, vector<1x84x256xf32>
    %85 = vector.shape_cast %84 : vector<1x84x256xf32> to vector<84x256xf32>
    %cst_74 = arith.constant dense<0.000000e+00> : vector<40x256xf32>
    %86 = tpu.matmul %83, %85, %cst_74 {dimension_numbers = #tpu.dot_dimension_numbers<[1], [0], [0], [1], [0, 0, 1, 1], [], []>} : vector<40x84xf32>, vector<84x256xf32>, vector<40x256xf32> -> vector<40x256xf32>
    %87 = arith.addf %82, %86 : vector<40x256xf32>
    %88 = vector.extract_strided_slice %26 {offsets = [16, 0], sizes = [40, 84], strides = [1, 1]} : vector<56x84xf32> to vector<40x84xf32>
    %c3_75 = arith.constant 3 : index
    %c0_76 = arith.constant 0 : index
    %c0_77 = arith.constant 0 : index
    %89 = vector.load %arg5[%c3_75, %c0_76, %c0_77] : memref<5x84x256xf32, #tpu.memory_space<vmem>>, vector<1x84x256xf32>
    %90 = vector.shape_cast %89 : vector<1x84x256xf32> to vector<84x256xf32>
    %cst_78 = arith.constant dense<0.000000e+00> : vector<40x256xf32>
    %91 = tpu.matmul %88, %90, %cst_78 {dimension_numbers = #tpu.dot_dimension_numbers<[1], [0], [0], [1], [0, 0, 1, 1], [], []>} : vector<40x84xf32>, vector<84x256xf32>, vector<40x256xf32> -> vector<40x256xf32>
    %92 = arith.addf %87, %91 : vector<40x256xf32>
    %93 = vector.extract_strided_slice %49 {offsets = [16, 0], sizes = [40, 84], strides = [1, 1]} : vector<56x84xf32> to vector<40x84xf32>
    %c4_79 = arith.constant 4 : index
    %c0_80 = arith.constant 0 : index
    %c0_81 = arith.constant 0 : index
    %94 = vector.load %arg5[%c4_79, %c0_80, %c0_81] : memref<5x84x256xf32, #tpu.memory_space<vmem>>, vector<1x84x256xf32>
    %95 = vector.shape_cast %94 : vector<1x84x256xf32> to vector<84x256xf32>
    %cst_82 = arith.constant dense<0.000000e+00> : vector<40x256xf32>
    %96 = tpu.matmul %93, %95, %cst_82 {dimension_numbers = #tpu.dot_dimension_numbers<[1], [0], [0], [1], [0, 0, 1, 1], [], []>} : vector<40x84xf32>, vector<84x256xf32>, vector<40x256xf32> -> vector<40x256xf32>
    %97 = arith.addf %92, %96 : vector<40x256xf32>
    %98 = arith.maximumf %73, %97 : vector<40x256xf32>
    %99 = vector.extract_strided_slice %98 {offsets = [0, 0], sizes = [40, 80], strides = [1, 1]} : vector<40x256xf32> to vector<40x80xf32>
    %100 = vector.extract_strided_slice %98 {offsets = [0, 128], sizes = [40, 80], strides = [1, 1]} : vector<40x256xf32> to vector<40x80xf32>
    %101 = arith.maximumf %99, %100 : vector<40x80xf32>
    %c0_83 = arith.constant 0 : index
    %c0_84 = arith.constant 0 : index
    %102 = vector.load %arg6[%c0_83, %c0_84] : memref<1x80xf32, #tpu.memory_space<vmem>>, vector<1x80xf32>
    %103 = vector.broadcast %102 : vector<1x80xf32> to vector<40x80xf32>
    %104 = arith.addf %101, %103 : vector<40x80xf32>
    %cst_85 = arith.constant 0.000000e+00 : f32
    %105 = vector.broadcast %cst_85 : f32 to vector<40x80xf32>
    %106 = arith.maximumf %104, %105 : vector<40x80xf32>
    %107 = vector.extract_strided_slice %106 {offsets = [0, 0], sizes = [8, 80], strides = [1, 1]} : vector<40x80xf32> to vector<8x80xf32>
    %c0_86 = arith.constant 0 : index
    %c0_87 = arith.constant 0 : index
    %c0_88 = arith.constant 0 : index
    %108 = vector.load %arg7[%c0_86, %c0_87, %c0_88] : memref<5x80x120xf32, #tpu.memory_space<vmem>>, vector<1x80x120xf32>
    %109 = vector.shape_cast %108 : vector<1x80x120xf32> to vector<80x120xf32>
    %cst_89 = arith.constant dense<0.000000e+00> : vector<8x120xf32>
    %110 = tpu.matmul %107, %109, %cst_89 {dimension_numbers = #tpu.dot_dimension_numbers<[1], [0], [0], [1], [0, 0, 1, 1], [], []>} : vector<8x80xf32>, vector<80x120xf32>, vector<8x120xf32> -> vector<8x120xf32>
    %111 = vector.extract_strided_slice %106 {offsets = [8, 0], sizes = [8, 80], strides = [1, 1]} : vector<40x80xf32> to vector<8x80xf32>
    %c1_90 = arith.constant 1 : index
    %c0_91 = arith.constant 0 : index
    %c0_92 = arith.constant 0 : index
    %112 = vector.load %arg7[%c1_90, %c0_91, %c0_92] : memref<5x80x120xf32, #tpu.memory_space<vmem>>, vector<1x80x120xf32>
    %113 = vector.shape_cast %112 : vector<1x80x120xf32> to vector<80x120xf32>
    %cst_93 = arith.constant dense<0.000000e+00> : vector<8x120xf32>
    %114 = tpu.matmul %111, %113, %cst_93 {dimension_numbers = #tpu.dot_dimension_numbers<[1], [0], [0], [1], [0, 0, 1, 1], [], []>} : vector<8x80xf32>, vector<80x120xf32>, vector<8x120xf32> -> vector<8x120xf32>
    %115 = arith.addf %110, %114 : vector<8x120xf32>
    %116 = vector.extract_strided_slice %106 {offsets = [16, 0], sizes = [8, 80], strides = [1, 1]} : vector<40x80xf32> to vector<8x80xf32>
    %c2_94 = arith.constant 2 : index
    %c0_95 = arith.constant 0 : index
    %c0_96 = arith.constant 0 : index
    %117 = vector.load %arg7[%c2_94, %c0_95, %c0_96] : memref<5x80x120xf32, #tpu.memory_space<vmem>>, vector<1x80x120xf32>
    %118 = vector.shape_cast %117 : vector<1x80x120xf32> to vector<80x120xf32>
    %cst_97 = arith.constant dense<0.000000e+00> : vector<8x120xf32>
    %119 = tpu.matmul %116, %118, %cst_97 {dimension_numbers = #tpu.dot_dimension_numbers<[1], [0], [0], [1], [0, 0, 1, 1], [], []>} : vector<8x80xf32>, vector<80x120xf32>, vector<8x120xf32> -> vector<8x120xf32>
    %120 = arith.addf %115, %119 : vector<8x120xf32>
    %121 = vector.extract_strided_slice %106 {offsets = [24, 0], sizes = [8, 80], strides = [1, 1]} : vector<40x80xf32> to vector<8x80xf32>
    %c3_98 = arith.constant 3 : index
    %c0_99 = arith.constant 0 : index
    %c0_100 = arith.constant 0 : index
    %122 = vector.load %arg7[%c3_98, %c0_99, %c0_100] : memref<5x80x120xf32, #tpu.memory_space<vmem>>, vector<1x80x120xf32>
    %123 = vector.shape_cast %122 : vector<1x80x120xf32> to vector<80x120xf32>
    %cst_101 = arith.constant dense<0.000000e+00> : vector<8x120xf32>
    %124 = tpu.matmul %121, %123, %cst_101 {dimension_numbers = #tpu.dot_dimension_numbers<[1], [0], [0], [1], [0, 0, 1, 1], [], []>} : vector<8x80xf32>, vector<80x120xf32>, vector<8x120xf32> -> vector<8x120xf32>
    %125 = arith.addf %120, %124 : vector<8x120xf32>
    %126 = vector.extract_strided_slice %106 {offsets = [32, 0], sizes = [8, 80], strides = [1, 1]} : vector<40x80xf32> to vector<8x80xf32>
    %c4_102 = arith.constant 4 : index
    %c0_103 = arith.constant 0 : index
    %c0_104 = arith.constant 0 : index
    %127 = vector.load %arg7[%c4_102, %c0_103, %c0_104] : memref<5x80x120xf32, #tpu.memory_space<vmem>>, vector<1x80x120xf32>
    %128 = vector.shape_cast %127 : vector<1x80x120xf32> to vector<80x120xf32>
    %cst_105 = arith.constant dense<0.000000e+00> : vector<8x120xf32>
    %129 = tpu.matmul %126, %128, %cst_105 {dimension_numbers = #tpu.dot_dimension_numbers<[1], [0], [0], [1], [0, 0, 1, 1], [], []>} : vector<8x80xf32>, vector<80x120xf32>, vector<8x120xf32> -> vector<8x120xf32>
    %130 = arith.addf %125, %129 : vector<8x120xf32>
    %c0_106 = arith.constant 0 : index
    %c0_107 = arith.constant 0 : index
    %131 = vector.load %arg8[%c0_106, %c0_107] : memref<1x120xf32, #tpu.memory_space<vmem>>, vector<1x120xf32>
    %132 = vector.broadcast %131 : vector<1x120xf32> to vector<8x120xf32>
    %133 = arith.addf %130, %132 : vector<8x120xf32>
    %cst_108 = arith.constant 0.000000e+00 : f32
    %134 = vector.broadcast %cst_108 : f32 to vector<8x120xf32>
    %135 = arith.maximumf %133, %134 : vector<8x120xf32>
    %c0_109 = arith.constant 0 : index
    %c0_110 = arith.constant 0 : index
    %136 = vector.load %arg9[%c0_109, %c0_110] : memref<120x84xf32, #tpu.memory_space<vmem>>, vector<120x84xf32>
    %cst_111 = arith.constant dense<0.000000e+00> : vector<8x84xf32>
    %137 = tpu.matmul %135, %136, %cst_111 {dimension_numbers = #tpu.dot_dimension_numbers<[1], [0], [0], [1], [0, 0, 1, 1], [], []>} : vector<8x120xf32>, vector<120x84xf32>, vector<8x84xf32> -> vector<8x84xf32>
    %c0_112 = arith.constant 0 : index
    %c0_113 = arith.constant 0 : index
    %138 = vector.load %arg10[%c0_112, %c0_113] : memref<1x84xf32, #tpu.memory_space<vmem>>, vector<1x84xf32>
    %139 = vector.broadcast %138 : vector<1x84xf32> to vector<8x84xf32>
    %140 = arith.addf %137, %139 : vector<8x84xf32>
    %cst_114 = arith.constant 0.000000e+00 : f32
    %141 = vector.broadcast %cst_114 : f32 to vector<8x84xf32>
    %142 = arith.maximumf %140, %141 : vector<8x84xf32>
    %c0_115 = arith.constant 0 : index
    %c0_116 = arith.constant 0 : index
    %143 = vector.load %arg11[%c0_115, %c0_116] : memref<84x128xf32, #tpu.memory_space<vmem>>, vector<84x128xf32>
    %cst_117 = arith.constant dense<0.000000e+00> : vector<8x128xf32>
    %144 = tpu.matmul %142, %143, %cst_117 {dimension_numbers = #tpu.dot_dimension_numbers<[1], [0], [0], [1], [0, 0, 1, 1], [], []>} : vector<8x84xf32>, vector<84x128xf32>, vector<8x128xf32> -> vector<8x128xf32>
    %c0_118 = arith.constant 0 : index
    %c0_119 = arith.constant 0 : index
    %145 = vector.load %arg12[%c0_118, %c0_119] : memref<1x128xf32, #tpu.memory_space<vmem>>, vector<1x128xf32>
    %146 = vector.broadcast %145 : vector<1x128xf32> to vector<8x128xf32>
    %147 = arith.addf %144, %146 : vector<8x128xf32>
    %cst_120 = arith.constant dense<0xFF800000> : vector<8xf32>
    %148 = vector.multi_reduction <maximumf>, %147, %cst_120 [1] : vector<8x128xf32> to vector<8xf32>
    %149 = vector.shape_cast %148 : vector<8xf32> to vector<8x1xf32>
    %150 = vector.broadcast %149 : vector<8x1xf32> to vector<8x128xf32>
    %151 = arith.subf %147, %150 : vector<8x128xf32>
    %152 = math.exp %151 : vector<8x128xf32>
    %cst_121 = arith.constant dense<0.000000e+00> : vector<8xf32>
    %153 = vector.multi_reduction <add>, %152, %cst_121 [1] : vector<8x128xf32> to vector<8xf32>
    %154 = vector.shape_cast %153 : vector<8xf32> to vector<8x1xf32>
    %155 = math.log %154 : vector<8x1xf32>
    %156 = vector.broadcast %155 : vector<8x1xf32> to vector<8x128xf32>
    %157 = arith.subf %151, %156 : vector<8x128xf32>
    %c0_122 = arith.constant 0 : index
    %c0_123 = arith.constant 0 : index
    %158 = vector.load %arg13[%c0_122, %c0_123] : memref<8x128xf32, #tpu.memory_space<vmem>>, vector<8x128xf32>
    tpu.vector_store %arg13[%c0_122, %c0_123], %157 {strides = array<i32>} : memref<8x128xf32, #tpu.memory_space<vmem>>, vector<8x128xf32>,
    return
  }
  func.func @transform_0(%arg0: i32) -> (i32, i32, i32) {
    %c0_i32 = arith.constant 0 : i32
    %c0_i32_0 = arith.constant 0 : i32
    %c0_i32_1 = arith.constant 0 : i32
    return %c0_i32, %arg0, %c0_i32_0 : i32, i32, i32
  }
  func.func @transform_1(%arg0: i32) -> (i32, i32, i32, i32) {
    %c0_i32 = arith.constant 0 : i32
    %c0_i32_0 = arith.constant 0 : i32
    %c0_i32_1 = arith.constant 0 : i32
    %c0_i32_2 = arith.constant 0 : i32
    %c0_i32_3 = arith.constant 0 : i32
    return %c0_i32, %c0_i32_0, %c0_i32_1, %c0_i32_2 : i32, i32, i32, i32
  }
  func.func @transform_2(%arg0: i32) -> (i32, i32, i32, i32) {
    %c0_i32 = arith.constant 0 : i32
    %c0_i32_0 = arith.constant 0 : i32
    %c0_i32_1 = arith.constant 0 : i32
    %c0_i32_2 = arith.constant 0 : i32
    %c0_i32_3 = arith.constant 0 : i32
    return %c0_i32, %c0_i32_0, %c0_i32_1, %c0_i32_2 : i32, i32, i32, i32
  }
  func.func @transform_3(%arg0: i32) -> (i32, i32) {
    %c0_i32 = arith.constant 0 : i32
    %c0_i32_0 = arith.constant 0 : i32
    %c0_i32_1 = arith.constant 0 : i32
    return %c0_i32, %c0_i32_0 : i32, i32
  }
  func.func @transform_4(%arg0: i32) -> (i32, i32, i32) {
    %c0_i32 = arith.constant 0 : i32
    %c0_i32_0 = arith.constant 0 : i32
    %c0_i32_1 = arith.constant 0 : i32
    %c0_i32_2 = arith.constant 0 : i32
    return %c0_i32, %c0_i32_0, %c0_i32_1 : i32, i32, i32
  }
  func.func @transform_5(%arg0: i32) -> (i32, i32) {
    %c0_i32 = arith.constant 0 : i32
    %c0_i32_0 = arith.constant 0 : i32
    %c0_i32_1 = arith.constant 0 : i32
    return %c0_i32, %c0_i32_0 : i32, i32
  }
  func.func @transform_6(%arg0: i32) -> (i32, i32, i32) {
    %c0_i32 = arith.constant 0 : i32
    %c0_i32_0 = arith.constant 0 : i32
    %c0_i32_1 = arith.constant 0 : i32
    %c0_i32_2 = arith.constant 0 : i32
    return %c0_i32, %c0_i32_0, %c0_i32_1 : i32, i32, i32
  }
  func.func @transform_7(%arg0: i32) -> (i32, i32) {
    %c0_i32 = arith.constant 0 : i32
    %c0_i32_0 = arith.constant 0 : i32
    %c0_i32_1 = arith.constant 0 : i32
    return %c0_i32, %c0_i32_0 : i32, i32
  }
  func.func @transform_8(%arg0: i32) -> (i32, i32) {
    %c0_i32 = arith.constant 0 : i32
    %c0_i32_0 = arith.constant 0 : i32
    %c0_i32_1 = arith.constant 0 : i32
    return %c0_i32, %c0_i32_0 : i32, i32
  }
  func.func @transform_9(%arg0: i32) -> (i32, i32) {
    %c0_i32 = arith.constant 0 : i32
    %c0_i32_0 = arith.constant 0 : i32
    %c0_i32_1 = arith.constant 0 : i32
    return %c0_i32, %c0_i32_0 : i32, i32
  }
  func.func @transform_10(%arg0: i32) -> (i32, i32) {
    %c0_i32 = arith.constant 0 : i32
    %c0_i32_0 = arith.constant 0 : i32
    %c0_i32_1 = arith.constant 0 : i32
    return %c0_i32, %c0_i32_0 : i32, i32
  }
  func.func @transform_11(%arg0: i32) -> (i32, i32) {
    %c0_i32 = arith.constant 0 : i32
    %c0_i32_0 = arith.constant 0 : i32
    %c0_i32_1 = arith.constant 0 : i32
    return %c0_i32, %c0_i32_0 : i32, i32
  }
  func.func @transform_12(%arg0: i32) -> (i32, i32) {
    %c0_i32 = arith.constant 0 : i32
    %c0_i32_0 = arith.constant 0 : i32
    return %arg0, %c0_i32 : i32, i32
  }
}

</mosaic_0001>

<llo_original>
// kernel: lenet_forward.1
$region0: #{lenet_forward.1}
  #allocation0 [shape = 'u32[]', space=smem, size = 0x4, offset = 0x4, fixed_abs, tag = 'smem constant byte address 0x4 - core index']
  #allocation1 [shape = 'u32[144,128]{1,0:T(1,128)}', space=vmem, size = 0x12000, scoped, tag = 'internal scratch']
  %s0 = inlined_call_operand.vmem [shape: f32[8,8,128], index: 0, kind: input, shape index: {}]
  %s1 = inlined_call_operand.hbm [shape: f32[2,2,128,256], index: 1, kind: input, shape index: {}]
  %s2 = inlined_call_operand.hbm [shape: f32[2,2,128,256], index: 2, kind: input, shape index: {}]
  %s3 = inlined_call_operand.vmem [shape: f32[1,84], index: 3, kind: input, shape index: {}]
  %s4 = inlined_call_operand.hbm [shape: f32[5,84,256], index: 4, kind: input, shape index: {}]
  %s5 = inlined_call_operand.vmem [shape: f32[1,80], index: 5, kind: input, shape index: {}]
  %s6 = inlined_call_operand.vmem [shape: f32[5,80,120], index: 6, kind: input, shape index: {}]
  %s7 = inlined_call_operand.vmem [shape: f32[1,120], index: 7, kind: input, shape index: {}]
  %s8 = inlined_call_operand.vmem [shape: f32[120,84], index: 8, kind: input, shape index: {}]
  %s9 = inlined_call_operand.vmem [shape: f32[1,84], index: 9, kind: input, shape index: {}]
  %s10 = inlined_call_operand.hbm [shape: f32[84,128], index: 10, kind: input, shape index: {}]
  %s11 = inlined_call_operand.vmem [shape: f32[1,128], index: 11, kind: input, shape index: {}]
  %s12 = inlined_call_operand.vmem [shape: f32[8,128], index: 12, kind: output, shape index: {}]
  %s13 = sld [smem:[#allocation0]]
  $region74: #{lenet_forward.1} parent=0
    _
  %s15 = ssub.s32 1, %s13
  %s16 = scalar_select 0, %s15, %s13
  $region1: #{lenet_forward.1} parent=0
    #allocation2 [shape = 'u8[524288]{0}', space=vmem, size = 0x80000, scoped, tag = 'input window, operand 1, single buffered']
    #allocation3 [shape = 's32[1]{0}', space=sflag, size = 0x4, scoped, tag = 'scoped memory for lenet_forward.1']
    #allocation4 [shape = 'u8[524288]{0}', space=vmem, size = 0x80000, scoped, tag = 'input window, operand 2, single buffered']
    #allocation5 [shape = 's32[1]{0}', space=sflag, size = 0x4, scoped, tag = 'scoped memory for lenet_forward.1']
    #allocation6 [shape = 'u8[450560]{0}', space=vmem, size = 0x6e000, scoped, tag = 'input window, operand 4, single buffered']
    #allocation7 [shape = 'u8[45056]{0}', space=vmem, size = 0xb000, scoped, tag = 'input window, operand 10, single buffered']
    #allocation8 [shape = 's32[1]{0}', space=sflag, size = 0x4, scoped, tag = 'scoped memory for lenet_forward.1']
    %17 = vsyncpa [#allocation3], 0
    %18 = vsyncpa [#allocation5], 0
    %19 = vsyncpa [#allocation8], 0
    // Predicated region
    $region2: #{lenet_forward.1} parent=1 // pred_check
      _
    $region3: #{lenet_forward.1} parent=1 // pred_check_branch
      %21 = sbr.rel (0) target = $region5
    $region4: #{lenet_forward.1} parent=1 // pred_region
      _
    $region5: #{lenet_forward.1} parent=1 // pred_fallthru
      _
    // Predicated region
    $region6: #{lenet_forward.1} parent=1 // pred_check
      _
    $region7: #{lenet_forward.1} parent=1 // pred_check_branch
      %23 = sbr.rel (0) target = $region9
    $region8: #{lenet_forward.1} parent=1 // pred_region
      %s25 = ssub.s32 16384, 16384
      %26 = vsyncadd [#allocation3], %s25
      %s27 = sshll.u32 [#allocation2], 4
      %s28 = int_to_ptr.vmem [resolvable:$true] %s27
      %33 = dma.hbm_to_vmem [thread:$0]  %s1, 16384, %s28, [#allocation3], 256, 256, 16
    $region9: #{lenet_forward.1} parent=1 // pred_fallthru
      _
    // Predicated region
    $region10: #{lenet_forward.1} parent=1 // pred_check
      _
    $region11: #{lenet_forward.1} parent=1 // pred_check_branch
      %35 = sbr.rel (0) target = $region13
    $region12: #{lenet_forward.1} parent=1 // pred_region
      %s37 = ssub.s32 16384, 16384
      %38 = vsyncadd [#allocation5], %s37
      %s39 = sshll.u32 [#allocation4], 4
      %s40 = int_to_ptr.vmem [resolvable:$true] %s39
      %45 = dma.hbm_to_vmem [thread:$0]  %s2, 16384, %s40, [#allocation5], 256, 256, 16
    $region13: #{lenet_forward.1} parent=1 // pred_fallthru
      _
    // Predicated region
    $region14: #{lenet_forward.1} parent=1 // pred_check
      _
    $region15: #{lenet_forward.1} parent=1 // pred_check_branch
      %47 = sbr.rel (0) target = $region17
    $region16: #{lenet_forward.1} parent=1 // pred_region
      _
    $region17: #{lenet_forward.1} parent=1 // pred_fallthru
      _
    // Predicated region
    $region18: #{lenet_forward.1} parent=1 // pred_check
      _
    $region19: #{lenet_forward.1} parent=1 // pred_check_branch
      %49 = sbr.rel (0) target = $region21
    $region20: #{lenet_forward.1} parent=1 // pred_region
      %s51 = ssub.s32 14080, 14080
      %52 = vsyncadd [#allocation5], %s51
      %s53 = sshll.u32 [#allocation6], 4
      %s54 = int_to_ptr.vmem [resolvable:$true] %s53
      %59 = dma.hbm_to_vmem [thread:$0]  %s4, 14080, %s54, [#allocation5], 256, 256, 16
    $region21: #{lenet_forward.1} parent=1 // pred_fallthru
      _
    // Predicated region
    $region22: #{lenet_forward.1} parent=1 // pred_check
      _
    $region23: #{lenet_forward.1} parent=1 // pred_check_branch
      %61 = sbr.rel (0) target = $region25
    $region24: #{lenet_forward.1} parent=1 // pred_region
      _
    $region25: #{lenet_forward.1} parent=1 // pred_fallthru
      _
    // Predicated region
    $region26: #{lenet_forward.1} parent=1 // pred_check
      _
    $region27: #{lenet_forward.1} parent=1 // pred_check_branch
      %63 = sbr.rel (0) target = $region29
    $region28: #{lenet_forward.1} parent=1 // pred_region
      _
    $region29: #{lenet_forward.1} parent=1 // pred_fallthru
      _
    // Predicated region
    $region30: #{lenet_forward.1} parent=1 // pred_check
      _
    $region31: #{lenet_forward.1} parent=1 // pred_check_branch
      %65 = sbr.rel (0) target = $region33
    $region32: #{lenet_forward.1} parent=1 // pred_region
      _
    $region33: #{lenet_forward.1} parent=1 // pred_fallthru
      _
    // Predicated region
    $region34: #{lenet_forward.1} parent=1 // pred_check
      _
    $region35: #{lenet_forward.1} parent=1 // pred_check_branch
      %67 = sbr.rel (0) target = $region37
    $region36: #{lenet_forward.1} parent=1 // pred_region
      _
    $region37: #{lenet_forward.1} parent=1 // pred_fallthru
      _
    // Predicated region
    $region38: #{lenet_forward.1} parent=1 // pred_check
      _
    $region39: #{lenet_forward.1} parent=1 // pred_check_branch
      %69 = sbr.rel (0) target = $region41
    $region40: #{lenet_forward.1} parent=1 // pred_region
      _
    $region41: #{lenet_forward.1} parent=1 // pred_fallthru
      _
    // Predicated region
    $region42: #{lenet_forward.1} parent=1 // pred_check
      _
    $region43: #{lenet_forward.1} parent=1 // pred_check_branch
      %71 = sbr.rel (0) target = $region45
    $region44: #{lenet_forward.1} parent=1 // pred_region
      %s73 = ssub.s32 1408, 1408
      %74 = vsyncadd [#allocation8], %s73
      %s75 = sshll.u32 [#allocation7], 4
      %s76 = int_to_ptr.vmem [resolvable:$true] %s75
      %81 = dma.hbm_to_vmem [thread:$0]  %s10, 1408, %s76, [#allocation8], 128, 128, 8
    $region45: #{lenet_forward.1} parent=1 // pred_fallthru
      _
    // Predicated region
    $region46: #{lenet_forward.1} parent=1 // pred_check
      _
    $region47: #{lenet_forward.1} parent=1 // pred_check_branch
      %83 = sbr.rel (0) target = $region49
    $region48: #{lenet_forward.1} parent=1 // pred_region
      _
    $region49: #{lenet_forward.1} parent=1 // pred_fallthru
      _
    // Predicated region
    $region50: #{lenet_forward.1} parent=1 // pred_check
      _
    $region51: #{lenet_forward.1} parent=1 // pred_check_branch
      %85 = sbr.rel (0) target = $region53
    $region52: #{lenet_forward.1} parent=1 // pred_region
      %86 = dma.done [#allocation3], 16384
    $region53: #{lenet_forward.1} parent=1 // pred_fallthru
      _
    // Predicated region
    $region54: #{lenet_forward.1} parent=1 // pred_check
      _
    $region55: #{lenet_forward.1} parent=1 // pred_check_branch
      %88 = sbr.rel (0) target = $region57
    $region56: #{lenet_forward.1} parent=1 // pred_region
      %89 = dma.done [#allocation5], 16384
    $region57: #{lenet_forward.1} parent=1 // pred_fallthru
      _
    // Predicated region
    $region58: #{lenet_forward.1} parent=1 // pred_check
      _
    $region59: #{lenet_forward.1} parent=1 // pred_check_branch
      %91 = sbr.rel (0) target = $region61
    $region60: #{lenet_forward.1} parent=1 // pred_region
      %92 = dma.done [#allocation5], 14080
    $region61: #{lenet_forward.1} parent=1 // pred_fallthru
      _
    // Predicated region
    $region62: #{lenet_forward.1} parent=1 // pred_check
      _
    $region63: #{lenet_forward.1} parent=1 // pred_check_branch
      %94 = sbr.rel (0) target = $region65
    $region64: #{lenet_forward.1} parent=1 // pred_region
      %95 = dma.done [#allocation8], 1408
    $region65: #{lenet_forward.1} parent=1 // pred_fallthru
      _
    %v96 = vld [vmem:[%s0] sm:$0xff]
    %v97 = vld [vmem:[%s0 + $0x8] sm:$0xff]
    %v98 = vld [vmem:[%s0 + $0x10] sm:$0xff]
    %v99 = vld [vmem:[%s0 + $0x18] sm:$0xff]
    %v100 = vld [vmem:[%s0 + $0x20] sm:$0xff]
    %v101 = vld [vmem:[%s0 + $0x28] sm:$0xff]
    %v102 = vld [vmem:[%s0 + $0x30] sm:$0xff]
    %v103 = vld [vmem:[%s0 + $0x38] sm:$0xff]
    %v104 = vld [vmem:[#allocation2] sm:$0xff]
    %v105 = vld [vmem:[#allocation2 + $0x8] sm:$0xff]
    %v106 = vld [vmem:[#allocation2 + $0x10] sm:$0xff]
    %v107 = vld [vmem:[#allocation2 + $0x18] sm:$0xff]
    %v108 = vld [vmem:[#allocation2 + $0x20] sm:$0xff]
    %v109 = vld [vmem:[#allocation2 + $0x28] sm:$0xff]
    %v110 = vld [vmem:[#allocation2 + $0x30] sm:$0xff]
    %v111 = vld [vmem:[#allocation2 + $0x38] sm:$0xff]
    %v112 = vld [vmem:[#allocation2 + $0x40] sm:$0xff]
    %v113 = vld [vmem:[#allocation2 + $0x48] sm:$0xff]
    %v114 = vld [vmem:[#allocation2 + $0x50] sm:$0xff]
    %v115 = vld [vmem:[#allocation2 + $0x58] sm:$0xff]
    %v116 = vld [vmem:[#allocation2 + $0x60] sm:$0xff]
    %v117 = vld [vmem:[#allocation2 + $0x68] sm:$0xff]
    %v118 = vld [vmem:[#allocation2 + $0x70] sm:$0xff]
    %v119 = vld [vmem:[#allocation2 + $0x78] sm:$0xff]
    %v120 = vld [vmem:[#allocation2 + $0x80] sm:$0xff]
    %v121 = vld [vmem:[#allocation2 + $0x88] sm:$0xff]
    %v122 = vld [vmem:[#allocation2 + $0x90] sm:$0xff]
    %v123 = vld [vmem:[#allocation2 + $0x98] sm:$0xff]
    %v124 = vld [vmem:[#allocation2 + $0xa0] sm:$0xff]
    %v125 = vld [vmem:[#allocation2 + $0xa8] sm:$0xff]
    %v126 = vld [vmem:[#allocation2 + $0xb0] sm:$0xff]
    %v127 = vld [vmem:[#allocation2 + $0xb8] sm:$0xff]
    %v128 = vld [vmem:[#allocation2 + $0xc0] sm:$0xff]
    %v129 = vld [vmem:[#allocation2 + $0xc8] sm:$0xff]
    %v130 = vld [vmem:[#allocation2 + $0xd0] sm:$0xff]
    %v131 = vld [vmem:[#allocation2 + $0xd8] sm:$0xff]
    %v132 = vld [vmem:[#allocation2 + $0xe0] sm:$0xff]
    %v133 = vld [vmem:[#allocation2 + $0xe8] sm:$0xff]
    %v134 = vld [vmem:[#allocation2 + $0xf0] sm:$0xff]
    %v135 = vld [vmem:[#allocation2 + $0xf8] sm:$0xff]
    %v136 = vld [vmem:[#allocation4] sm:$0xff]
    %v137 = vld [vmem:[#allocation4 + $0x8] sm:$0xff]
    %v138 = vld [vmem:[#allocation4 + $0x10] sm:$0xff]
    %v139 = vld [vmem:[#allocation4 + $0x18] sm:$0xff]
    %v140 = vld [vmem:[#allocation4 + $0x20] sm:$0xff]
    %v141 = vld [vmem:[#allocation4 + $0x28] sm:$0xff]
    %v142 = vld [vmem:[#allocation4 + $0x30] sm:$0xff]
    %v143 = vld [vmem:[#allocation4 + $0x38] sm:$0xff]
    %v144 = vld [vmem:[#allocation4 + $0x40] sm:$0xff]
    %v145 = vld [vmem:[#allocation4 + $0x48] sm:$0xff]
    %v146 = vld [vmem:[#allocation4 + $0x50] sm:$0xff]
    %v147 = vld [vmem:[#allocation4 + $0x58] sm:$0xff]
    %v148 = vld [vmem:[#allocation4 + $0x60] sm:$0xff]
    %v149 = vld [vmem:[#allocation4 + $0x68] sm:$0xff]
    %v150 = vld [vmem:[#allocation4 + $0x70] sm:$0xff]
    %v151 = vld [vmem:[#allocation4 + $0x78] sm:$0xff]
    %v152 = vld [vmem:[#allocation4 + $0x80] sm:$0xff]
    %v153 = vld [vmem:[#allocation4 + $0x88] sm:$0xff]
    %v154 = vld [vmem:[#allocation4 + $0x90] sm:$0xff]
    %v155 = vld [vmem:[#allocation4 + $0x98] sm:$0xff]
    %v156 = vld [vmem:[#allocation4 + $0xa0] sm:$0xff]
    %v157 = vld [vmem:[#allocation4 + $0xa8] sm:$0xff]
    %v158 = vld [vmem:[#allocation4 + $0xb0] sm:$0xff]
    %v159 = vld [vmem:[#allocation4 + $0xb8] sm:$0xff]
    %v160 = vld [vmem:[#allocation4 + $0xc0] sm:$0xff]
    %v161 = vld [vmem:[#allocation4 + $0xc8] sm:$0xff]
    %v162 = vld [vmem:[#allocation4 + $0xd0] sm:$0xff]
    %v163 = vld [vmem:[#allocation4 + $0xd8] sm:$0xff]
    %v164 = vld [vmem:[#allocation4 + $0xe0] sm:$0xff]
    %v165 = vld [vmem:[#allocation4 + $0xe8] sm:$0xff]
    %v166 = vld [vmem:[#allocation4 + $0xf0] sm:$0xff]
    %v167 = vld [vmem:[#allocation4 + $0xf8] sm:$0xff]
    %168 = vmatprep.subr.mxu0 %v137
    %169 = vmatpush1.msra.mxu0 %v136
    %170 = vmatprep.subr.mxu0 %v139
    %171 = vmatpush1.msra.mxu0 %v138
    %172 = vmatprep.subr.mxu0 %v141
    %173 = vmatpush1.msra.mxu0 %v140
    %174 = vmatprep.subr.mxu0 %v143
    %175 = vmatpush1.msra.mxu0 %v142
    %176 = vmatprep.subr.mxu0 %v145
    %177 = vmatpush1.msra.mxu0 %v144
    %178 = vmatprep.subr.mxu0 %v147
    %179 = vmatpush1.msra.mxu0 %v146
    %180 = vmatprep.subr.mxu0 %v149
    %181 = vmatpush1.msra.mxu0 %v148
    %182 = vmatprep.subr.mxu0 %v151
    %183 = vmatpush1.msra.mxu0 %v150
    %184 = vmatprep.subr.mxu0 %v153
    %185 = vmatpush1.msra.mxu0 %v152
    %186 = vmatprep.subr.mxu0 %v155
    %187 = vmatpush1.msra.mxu0 %v154
    %188 = vmatprep.subr.mxu0 %v157
    %189 = vmatpush1.msra.mxu0 %v156
    %190 = vmatprep.subr.mxu0 %v159
    %191 = vmatpush1.msra.mxu0 %v158
    %192 = vmatprep.subr.mxu0 %v161
    %193 = vmatpush1.msra.mxu0 %v160
    %194 = vmatprep.subr.mxu0 %v163
    %195 = vmatpush1.msra.mxu0 %v162
    %196 = vmatprep.subr.mxu0 %v165
    %197 = vmatpush1.msra.mxu0 %v164
    %198 = vmatprep.subr.mxu0 %v167
    %199 = vmatpush1.msra.mxu0 %v166
    %200 = vmatprep.subr.mxu0 0.0
    %201 = vmatpush1.msra.mxu0 0.0
    %202 = vmatprep.subr.mxu0 0.0
    %203 = vmatpush1.msra.mxu0 0.0
    %204 = vmatprep.subr.mxu0 0.0
    %205 = vmatpush1.msra.mxu0 0.0
    %206 = vmatprep.subr.mxu0 0.0
    %207 = vmatpush1.msra.mxu0 0.0
    %208 = vmatprep.subr.mxu0 0.0
    %209 = vmatpush1.msra.mxu0 0.0
    %210 = vmatprep.subr.mxu0 0.0
    %211 = vmatpush1.msra.mxu0 0.0
    %212 = vmatprep.subr.mxu0 0.0
    %213 = vmatpush1.msra.mxu0 0.0
    %214 = vmatprep.subr.mxu0 0.0
    %215 = vmatpush1.msra.mxu0 0.0
    %216 = vmatprep.subr.mxu0 0.0
    %217 = vmatpush1.msra.mxu0 0.0
    %218 = vmatprep.subr.mxu0 0.0
    %219 = vmatpush1.msra.mxu0 0.0
    %220 = vmatprep.subr.mxu0 0.0
    %221 = vmatpush1.msra.mxu0 0.0
    %222 = vmatprep.subr.mxu0 0.0
    %223 = vmatpush1.msra.mxu0 0.0
    %224 = vmatprep.subr.mxu0 0.0
    %225 = vmatpush1.msra.mxu0 0.0
    %226 = vmatprep.subr.mxu0 0.0
    %227 = vmatpush1.msra.mxu0 0.0
    %228 = vmatprep.subr.mxu0 0.0
    %229 = vmatpush1.msra.mxu0 0.0
    %230 = vmatprep.subr.mxu0 0.0
    %231 = vmatpush1.msra.mxu0 0.0
    %232 = vmatprep.mubr.f32.mxu0 0.0
    %233 = vmatmul.mubr.f32.gmra.mrb[0].mxu0 %v97
    %v234 = vpop.f32.mrb[0].mxu0
    %v235 = vadd.f32 0.0, %v234
    %v236 = vpop.f32.mrb[0].mxu0
    %v237 = vadd.f32 0.0, %v236
    %238 = vmatprep.mubr.f32.mxu0 0.0
    %239 = vmatmul.mubr.f32.gmra.mrb[0].mxu0 %v98
    %v240 = vpop.f32.mrb[0].mxu0
    %v241 = vadd.f32 0.0, %v240
    %v242 = vpop.f32.mrb[0].mxu0
    %v243 = vadd.f32 0.0, %v242
    %244 = vmatprep.mubr.f32.mxu0 0.0
    %245 = vmatmul.mubr.f32.gmra.mrb[0].mxu0 %v99
    %v246 = vpop.f32.mrb[0].mxu0
    %v247 = vadd.f32 0.0, %v246
    %v248 = vpop.f32.mrb[0].mxu0
    %v249 = vadd.f32 0.0, %v248
    %250 = vmatprep.mubr.f32.mxu0 0.0
    %251 = vmatmul.mubr.f32.gmra.mrb[0].mxu0 %v100
    %v252 = vpop.f32.mrb[0].mxu0
    %v253 = vadd.f32 0.0, %v252
    %v254 = vpop.f32.mrb[0].mxu0
    %v255 = vadd.f32 0.0, %v254
    %256 = vmatprep.mubr.f32.mxu0 0.0
    %257 = vmatmul.mubr.f32.gmra.mrb[0].mxu0 %v101
    %v258 = vpop.f32.mrb[0].mxu0
    %v259 = vadd.f32 0.0, %v258
    %v260 = vpop.f32.mrb[0].mxu0
    %v261 = vadd.f32 0.0, %v260
    %262 = vmatprep.mubr.f32.mxu0 0.0
    %263 = vmatmul.mubr.f32.gmra.mrb[0].mxu0 %v102
    %v264 = vpop.f32.mrb[0].mxu0
    %v265 = vadd.f32 0.0, %v264
    %v266 = vpop.f32.mrb[0].mxu0
    %v267 = vadd.f32 0.0, %v266
    %268 = vmatprep.mubr.f32.mxu0 0.0
    %269 = vmatmul.mubr.f32.gmra.mrb[0].mxu0 %v103
    %v270 = vpop.f32.mrb[0].mxu0
    %v271 = vadd.f32 0.0, %v270
    %v272 = vpop.f32.mrb[0].mxu0
    %v273 = vadd.f32 0.0, %v272
    %274 = vdwg.mxu0
    %275 = vmatprep.subr.mxu0 %v105
    %276 = vmatpush1.msra.mxu0 %v104
    %277 = vmatprep.subr.mxu0 %v107
    %278 = vmatpush1.msra.mxu0 %v106
    %279 = vmatprep.subr.mxu0 %v109
    %280 = vmatpush1.msra.mxu0 %v108
    %281 = vmatprep.subr.mxu0 %v111
    %282 = vmatpush1.msra.mxu0 %v110
    %283 = vmatprep.subr.mxu0 %v113
    %284 = vmatpush1.msra.mxu0 %v112
    %285 = vmatprep.subr.mxu0 %v115
    %286 = vmatpush1.msra.mxu0 %v114
    %287 = vmatprep.subr.mxu0 %v117
    %288 = vmatpush1.msra.mxu0 %v116
    %289 = vmatprep.subr.mxu0 %v119
    %290 = vmatpush1.msra.mxu0 %v118
    %291 = vmatprep.subr.mxu0 %v121
    %292 = vmatpush1.msra.mxu0 %v120
    %293 = vmatprep.subr.mxu0 %v123
    %294 = vmatpush1.msra.mxu0 %v122
    %295 = vmatprep.subr.mxu0 %v125
    %296 = vmatpush1.msra.mxu0 %v124
    %297 = vmatprep.subr.mxu0 %v127
    %298 = vmatpush1.msra.mxu0 %v126
    %299 = vmatprep.subr.mxu0 %v129
    %300 = vmatpush1.msra.mxu0 %v128
    %301 = vmatprep.subr.mxu0 %v131
    %302 = vmatpush1.msra.mxu0 %v130
    %303 = vmatprep.subr.mxu0 %v133
    %304 = vmatpush1.msra.mxu0 %v132
    %305 = vmatprep.subr.mxu0 %v135
    %306 = vmatpush1.msra.mxu0 %v134
    %307 = vmatprep.subr.mxu0 0.0
    %308 = vmatpush1.msra.mxu0 0.0
    %309 = vmatprep.subr.mxu0 0.0
    %310 = vmatpush1.msra.mxu0 0.0
    %311 = vmatprep.subr.mxu0 0.0
    %312 = vmatpush1.msra.mxu0 0.0
    %313 = vmatprep.subr.mxu0 0.0
    %314 = vmatpush1.msra.mxu0 0.0
    %315 = vmatprep.subr.mxu0 0.0
    %316 = vmatpush1.msra.mxu0 0.0
    %317 = vmatprep.subr.mxu0 0.0
    %318 = vmatpush1.msra.mxu0 0.0
    %319 = vmatprep.subr.mxu0 0.0
    %320 = vmatpush1.msra.mxu0 0.0
    %321 = vmatprep.subr.mxu0 0.0
    %322 = vmatpush1.msra.mxu0 0.0
    %323 = vmatprep.subr.mxu0 0.0
    %324 = vmatpush1.msra.mxu0 0.0
    %325 = vmatprep.subr.mxu0 0.0
    %326 = vmatpush1.msra.mxu0 0.0
    %327 = vmatprep.subr.mxu0 0.0
    %328 = vmatpush1.msra.mxu0 0.0
    %329 = vmatprep.subr.mxu0 0.0
    %330 = vmatpush1.msra.mxu0 0.0
    %331 = vmatprep.subr.mxu0 0.0
    %332 = vmatpush1.msra.mxu0 0.0
    %333 = vmatprep.subr.mxu0 0.0
    %334 = vmatpush1.msra.mxu0 0.0
    %335 = vmatprep.subr.mxu0 0.0
    %336 = vmatpush1.msra.mxu0 0.0
    %337 = vmatprep.subr.mxu0 0.0
    %338 = vmatpush1.msra.mxu0 0.0
    %339 = vmatprep.mubr.f32.mxu0 0.0
    %340 = vmatmul.mubr.f32.gmra.mrb[0].mxu0 %v96
    %v341 = vpop.f32.mrb[0].mxu0
    %v342 = vadd.f32 %v235, %v341
    %v343 = vpop.f32.mrb[0].mxu0
    %v344 = vadd.f32 %v237, %v343
    %345 = vmatprep.mubr.f32.mxu0 0.0
    %346 = vmatmul.mubr.f32.gmra.mrb[0].mxu0 %v97
    %v347 = vpop.f32.mrb[0].mxu0
    %v348 = vadd.f32 %v241, %v347
    %v349 = vpop.f32.mrb[0].mxu0
    %v350 = vadd.f32 %v243, %v349
    %351 = vmatprep.mubr.f32.mxu0 0.0
    %352 = vmatmul.mubr.f32.gmra.mrb[0].mxu0 %v98
    %v353 = vpop.f32.mrb[0].mxu0
    %v354 = vadd.f32 %v247, %v353
    %v355 = vpop.f32.mrb[0].mxu0
    %v356 = vadd.f32 %v249, %v355
    %357 = vmatprep.mubr.f32.mxu0 0.0
    %358 = vmatmul.mubr.f32.gmra.mrb[0].mxu0 %v99
    %v359 = vpop.f32.mrb[0].mxu0
    %v360 = vadd.f32 %v253, %v359
    %v361 = vpop.f32.mrb[0].mxu0
    %v362 = vadd.f32 %v255, %v361
    %363 = vmatprep.mubr.f32.mxu0 0.0
    %364 = vmatmul.mubr.f32.gmra.mrb[0].mxu0 %v100
    %v365 = vpop.f32.mrb[0].mxu0
    %v366 = vadd.f32 %v259, %v365
    %v367 = vpop.f32.mrb[0].mxu0
    %v368 = vadd.f32 %v261, %v367
    %369 = vmatprep.mubr.f32.mxu0 0.0
    %370 = vmatmul.mubr.f32.gmra.mrb[0].mxu0 %v101
    %v371 = vpop.f32.mrb[0].mxu0
    %v372 = vadd.f32 %v265, %v371
    %v373 = vpop.f32.mrb[0].mxu0
    %v374 = vadd.f32 %v267, %v373
    %375 = vmatprep.mubr.f32.mxu0 0.0
    %376 = vmatmul.mubr.f32.gmra.mrb[0].mxu0 %v102
    %v377 = vpop.f32.mrb[0].mxu0
    %v378 = vadd.f32 %v271, %v377
    %v379 = vpop.f32.mrb[0].mxu0
    %v380 = vadd.f32 %v273, %v379
    %381 = vdwg.mxu0
    %s382 = scalar_lea.vmem [#allocation2], 256
    %v383 = vld [vmem:[%s382] sm:$0xff]
    %v384 = vld [vmem:[%s382 + $0x8] sm:$0xff]
    %v385 = vld [vmem:[%s382 + $0x10] sm:$0xff]
    %v386 = vld [vmem:[%s382 + $0x18] sm:$0xff]
    %v387 = vld [vmem:[%s382 + $0x20] sm:$0xff]
    %v388 = vld [vmem:[%s382 + $0x28] sm:$0xff]
    %v389 = vld [vmem:[%s382 + $0x30] sm:$0xff]
    %v390 = vld [vmem:[%s382 + $0x38] sm:$0xff]
    %v391 = vld [vmem:[%s382 + $0x40] sm:$0xff]
    %v392 = vld [vmem:[%s382 + $0x48] sm:$0xff]
    %v393 = vld [vmem:[%s382 + $0x50] sm:$0xff]
    %v394 = vld [vmem:[%s382 + $0x58] sm:$0xff]
    %v395 = vld [vmem:[%s382 + $0x60] sm:$0xff]
    %v396 = vld [vmem:[%s382 + $0x68] sm:$0xff]
    %v397 = vld [vmem:[%s382 + $0x70] sm:$0xff]
    %v398 = vld [vmem:[%s382 + $0x78] sm:$0xff]
    %v399 = vld [vmem:[%s382 + $0x80] sm:$0xff]
    %v400 = vld [vmem:[%s382 + $0x88] sm:$0xff]
    %v401 = vld [vmem:[%s382 + $0x90] sm:$0xff]
    %v402 = vld [vmem:[%s382 + $0x98] sm:$0xff]
    %v403 = vld [vmem:[%s382 + $0xa0] sm:$0xff]
    %v404 = vld [vmem:[%s382 + $0xa8] sm:$0xff]
    %v405 = vld [vmem:[%s382 + $0xb0] sm:$0xff]
    %v406 = vld [vmem:[%s382 + $0xb8] sm:$0xff]
    %v407 = vld [vmem:[%s382 + $0xc0] sm:$0xff]
    %v408 = vld [vmem:[%s382 + $0xc8] sm:$0xff]
    %v409 = vld [vmem:[%s382 + $0xd0] sm:$0xff]
    %v410 = vld [vmem:[%s382 + $0xd8] sm:$0xff]
    %v411 = vld [vmem:[%s382 + $0xe0] sm:$0xff]
    %v412 = vld [vmem:[%s382 + $0xe8] sm:$0xff]
    %v413 = vld [vmem:[%s382 + $0xf0] sm:$0xff]
    %v414 = vld [vmem:[%s382 + $0xf8] sm:$0xff]
    %s415 = scalar_lea.vmem [#allocation4], 256
    %v416 = vld [vmem:[%s415] sm:$0xff]
    %v417 = vld [vmem:[%s415 + $0x8] sm:$0xff]
    %v418 = vld [vmem:[%s415 + $0x10] sm:$0xff]
    %v419 = vld [vmem:[%s415 + $0x18] sm:$0xff]
    %v420 = vld [vmem:[%s415 + $0x20] sm:$0xff]
    %v421 = vld [vmem:[%s415 + $0x28] sm:$0xff]
    %v422 = vld [vmem:[%s415 + $0x30] sm:$0xff]
    %v423 = vld [vmem:[%s415 + $0x38] sm:$0xff]
    %v424 = vld [vmem:[%s415 + $0x40] sm:$0xff]
    %v425 = vld [vmem:[%s415 + $0x48] sm:$0xff]
    %v426 = vld [vmem:[%s415 + $0x50] sm:$0xff]
    %v427 = vld [vmem:[%s415 + $0x58] sm:$0xff]
    %v428 = vld [vmem:[%s415 + $0x60] sm:$0xff]
    %v429 = vld [vmem:[%s415 + $0x68] sm:$0xff]
    %v430 = vld [vmem:[%s415 + $0x70] sm:$0xff]
    %v431 = vld [vmem:[%s415 + $0x78] sm:$0xff]
    %v432 = vld [vmem:[%s415 + $0x80] sm:$0xff]
    %v433 = vld [vmem:[%s415 + $0x88] sm:$0xff]
    %v434 = vld [vmem:[%s415 + $0x90] sm:$0xff]
    %v435 = vld [vmem:[%s415 + $0x98] sm:$0xff]
    %v436 = vld [vmem:[%s415 + $0xa0] sm:$0xff]
    %v437 = vld [vmem:[%s415 + $0xa8] sm:$0xff]
    %v438 = vld [vmem:[%s415 + $0xb0] sm:$0xff]
    %v439 = vld [vmem:[%s415 + $0xb8] sm:$0xff]
    %v440 = vld [vmem:[%s415 + $0xc0] sm:$0xff]
    %v441 = vld [vmem:[%s415 + $0xc8] sm:$0xff]
    %v442 = vld [vmem:[%s415 + $0xd0] sm:$0xff]
    %v443 = vld [vmem:[%s415 + $0xd8] sm:$0xff]
    %v444 = vld [vmem:[%s415 + $0xe0] sm:$0xff]
    %v445 = vld [vmem:[%s415 + $0xe8] sm:$0xff]
    %v446 = vld [vmem:[%s415 + $0xf0] sm:$0xff]
    %v447 = vld [vmem:[%s415 + $0xf8] sm:$0xff]
    %448 = vmatprep.subr.mxu0 %v417
    %449 = vmatpush1.msra.mxu0 %v416
    %450 = vmatprep.subr.mxu0 %v419
    %451 = vmatpush1.msra.mxu0 %v418
    %452 = vmatprep.subr.mxu0 %v421
    %453 = vmatpush1.msra.mxu0 %v420
    %454 = vmatprep.subr.mxu0 %v423
    %455 = vmatpush1.msra.mxu0 %v422
    %456 = vmatprep.subr.mxu0 %v425
    %457 = vmatpush1.msra.mxu0 %v424
    %458 = vmatprep.subr.mxu0 %v427
    %459 = vmatpush1.msra.mxu0 %v426
    %460 = vmatprep.subr.mxu0 %v429
    %461 = vmatpush1.msra.mxu0 %v428
    %462 = vmatprep.subr.mxu0 %v431
    %463 = vmatpush1.msra.mxu0 %v430
    %464 = vmatprep.subr.mxu0 %v433
    %465 = vmatpush1.msra.mxu0 %v432
    %466 = vmatprep.subr.mxu0 %v435
    %467 = vmatpush1.msra.mxu0 %v434
    %468 = vmatprep.subr.mxu0 %v437
    %469 = vmatpush1.msra.mxu0 %v436
    %470 = vmatprep.subr.mxu0 %v439
    %471 = vmatpush1.msra.mxu0 %v438
    %472 = vmatprep.subr.mxu0 %v441
    %473 = vmatpush1.msra.mxu0 %v440
    %474 = vmatprep.subr.mxu0 %v443
    %475 = vmatpush1.msra.mxu0 %v442
    %476 = vmatprep.subr.mxu0 %v445
    %477 = vmatpush1.msra.mxu0 %v444
    %478 = vmatprep.subr.mxu0 %v447
    %479 = vmatpush1.msra.mxu0 %v446
    %480 = vmatprep.subr.mxu0 0.0
    %481 = vmatpush1.msra.mxu0 0.0
    %482 = vmatprep.subr.mxu0 0.0
    %483 = vmatpush1.msra.mxu0 0.0
    %484 = vmatprep.subr.mxu0 0.0
    %485 = vmatpush1.msra.mxu0 0.0
    %486 = vmatprep.subr.mxu0 0.0
    %487 = vmatpush1.msra.mxu0 0.0
    %488 = vmatprep.subr.mxu0 0.0
    %489 = vmatpush1.msra.mxu0 0.0
    %490 = vmatprep.subr.mxu0 0.0
    %491 = vmatpush1.msra.mxu0 0.0
    %492 = vmatprep.subr.mxu0 0.0
    %493 = vmatpush1.msra.mxu0 0.0
    %494 = vmatprep.subr.mxu0 0.0
    %495 = vmatpush1.msra.mxu0 0.0
    %496 = vmatprep.subr.mxu0 0.0
    %497 = vmatpush1.msra.mxu0 0.0
    %498 = vmatprep.subr.mxu0 0.0
    %499 = vmatpush1.msra.mxu0 0.0
    %500 = vmatprep.subr.mxu0 0.0
    %501 = vmatpush1.msra.mxu0 0.0
    %502 = vmatprep.subr.mxu0 0.0
    %503 = vmatpush1.msra.mxu0 0.0
    %504 = vmatprep.subr.mxu0 0.0
    %505 = vmatpush1.msra.mxu0 0.0
    %506 = vmatprep.subr.mxu0 0.0
    %507 = vmatpush1.msra.mxu0 0.0
    %508 = vmatprep.subr.mxu0 0.0
    %509 = vmatpush1.msra.mxu0 0.0
    %510 = vmatprep.subr.mxu0 0.0
    %511 = vmatpush1.msra.mxu0 0.0
    %512 = vmatprep.mubr.f32.mxu0 0.0
    %513 = vmatmul.mubr.f32.gmra.mrb[0].mxu0 %v97
    %v514 = vpop.f32.mrb[0].mxu0
    %v515 = vadd.f32 0.0, %v514
    %v516 = vpop.f32.mrb[0].mxu0
    %v517 = vadd.f32 0.0, %v516
    %518 = vmatprep.mubr.f32.mxu0 0.0
    %519 = vmatmul.mubr.f32.gmra.mrb[0].mxu0 %v98
    %v520 = vpop.f32.mrb[0].mxu0
    %v521 = vadd.f32 0.0, %v520
    %v522 = vpop.f32.mrb[0].mxu0
    %v523 = vadd.f32 0.0, %v522
    %524 = vmatprep.mubr.f32.mxu0 0.0
    %525 = vmatmul.mubr.f32.gmra.mrb[0].mxu0 %v99
    %v526 = vpop.f32.mrb[0].mxu0
    %v527 = vadd.f32 0.0, %v526
    %v528 = vpop.f32.mrb[0].mxu0
    %v529 = vadd.f32 0.0, %v528
    %530 = vmatprep.mubr.f32.mxu0 0.0
    %531 = vmatmul.mubr.f32.gmra.mrb[0].mxu0 %v100
    %v532 = vpop.f32.mrb[0].mxu0
    %v533 = vadd.f32 0.0, %v532
    %v534 = vpop.f32.mrb[0].mxu0
    %v535 = vadd.f32 0.0, %v534
    %536 = vmatprep.mubr.f32.mxu0 0.0
    %537 = vmatmul.mubr.f32.gmra.mrb[0].mxu0 %v101
    %v538 = vpop.f32.mrb[0].mxu0
    %v539 = vadd.f32 0.0, %v538
    %v540 = vpop.f32.mrb[0].mxu0
    %v541 = vadd.f32 0.0, %v540
    %542 = vmatprep.mubr.f32.mxu0 0.0
    %543 = vmatmul.mubr.f32.gmra.mrb[0].mxu0 %v102
    %v544 = vpop.f32.mrb[0].mxu0
    %v545 = vadd.f32 0.0, %v544
    %v546 = vpop.f32.mrb[0].mxu0
    %v547 = vadd.f32 0.0, %v546
    %548 = vmatprep.mubr.f32.mxu0 0.0
    %549 = vmatmul.mubr.f32.gmra.mrb[0].mxu0 %v103
    %v550 = vpop.f32.mrb[0].mxu0
    %v551 = vadd.f32 0.0, %v550
    %v552 = vpop.f32.mrb[0].mxu0
    %v553 = vadd.f32 0.0, %v552
    %554 = vdwg.mxu0
    %555 = vmatprep.subr.mxu0 %v384
    %556 = vmatpush1.msra.mxu0 %v383
    %557 = vmatprep.subr.mxu0 %v386
    %558 = vmatpush1.msra.mxu0 %v385
    %559 = vmatprep.subr.mxu0 %v388
    %560 = vmatpush1.msra.mxu0 %v387
    %561 = vmatprep.subr.mxu0 %v390
    %562 = vmatpush1.msra.mxu0 %v389
    %563 = vmatprep.subr.mxu0 %v392
    %564 = vmatpush1.msra.mxu0 %v391
    %565 = vmatprep.subr.mxu0 %v394
    %566 = vmatpush1.msra.mxu0 %v393
    %567 = vmatprep.subr.mxu0 %v396
    %568 = vmatpush1.msra.mxu0 %v395
    %569 = vmatprep.subr.mxu0 %v398
    %570 = vmatpush1.msra.mxu0 %v397
    %571 = vmatprep.subr.mxu0 %v400
    %572 = vmatpush1.msra.mxu0 %v399
    %573 = vmatprep.subr.mxu0 %v402
    %574 = vmatpush1.msra.mxu0 %v401
    %575 = vmatprep.subr.mxu0 %v404
    %576 = vmatpush1.msra.mxu0 %v403
    %577 = vmatprep.subr.mxu0 %v406
    %578 = vmatpush1.msra.mxu0 %v405
    %579 = vmatprep.subr.mxu0 %v408
    %580 = vmatpush1.msra.mxu0 %v407
    %581 = vmatprep.subr.mxu0 %v410
    %582 = vmatpush1.msra.mxu0 %v409
    %583 = vmatprep.subr.mxu0 %v412
    %584 = vmatpush1.msra.mxu0 %v411
    %585 = vmatprep.subr.mxu0 %v414
    %586 = vmatpush1.msra.mxu0 %v413
    %587 = vmatprep.subr.mxu0 0.0
    %588 = vmatpush1.msra.mxu0 0.0
    %589 = vmatprep.subr.mxu0 0.0
    %590 = vmatpush1.msra.mxu0 0.0
    %591 = vmatprep.subr.mxu0 0.0
    %592 = vmatpush1.msra.mxu0 0.0
    %593 = vmatprep.subr.mxu0 0.0
    %594 = vmatpush1.msra.mxu0 0.0
    %595 = vmatprep.subr.mxu0 0.0
    %596 = vmatpush1.msra.mxu0 0.0
    %597 = vmatprep.subr.mxu0 0.0
    %598 = vmatpush1.msra.mxu0 0.0
    %599 = vmatprep.subr.mxu0 0.0
    %600 = vmatpush1.msra.mxu0 0.0
    %601 = vmatprep.subr.mxu0 0.0
    %602 = vmatpush1.msra.mxu0 0.0
    %603 = vmatprep.subr.mxu0 0.0
    %604 = vmatpush1.msra.mxu0 0.0
    %605 = vmatprep.subr.mxu0 0.0
    %606 = vmatpush1.msra.mxu0 0.0
    %607 = vmatprep.subr.mxu0 0.0
    %608 = vmatpush1.msra.mxu0 0.0
    %609 = vmatprep.subr.mxu0 0.0
    %610 = vmatpush1.msra.mxu0 0.0
    %611 = vmatprep.subr.mxu0 0.0
    %612 = vmatpush1.msra.mxu0 0.0
    %613 = vmatprep.subr.mxu0 0.0
    %614 = vmatpush1.msra.mxu0 0.0
    %615 = vmatprep.subr.mxu0 0.0
    %616 = vmatpush1.msra.mxu0 0.0
    %617 = vmatprep.subr.mxu0 0.0
    %618 = vmatpush1.msra.mxu0 0.0
    %619 = vmatprep.mubr.f32.mxu0 0.0
    %620 = vmatmul.mubr.f32.gmra.mrb[0].mxu0 %v96
    %v621 = vpop.f32.mrb[0].mxu0
    %v622 = vadd.f32 %v515, %v621
    %v623 = vpop.f32.mrb[0].mxu0
    %v624 = vadd.f32 %v517, %v623
    %625 = vmatprep.mubr.f32.mxu0 0.0
    %626 = vmatmul.mubr.f32.gmra.mrb[0].mxu0 %v97
    %v627 = vpop.f32.mrb[0].mxu0
    %v628 = vadd.f32 %v521, %v627
    %v629 = vpop.f32.mrb[0].mxu0
    %v630 = vadd.f32 %v523, %v629
    %631 = vmatprep.mubr.f32.mxu0 0.0
    %632 = vmatmul.mubr.f32.gmra.mrb[0].mxu0 %v98
    %v633 = vpop.f32.mrb[0].mxu0
    %v634 = vadd.f32 %v527, %v633
    %v635 = vpop.f32.mrb[0].mxu0
    %v636 = vadd.f32 %v529, %v635
    %637 = vmatprep.mubr.f32.mxu0 0.0
    %638 = vmatmul.mubr.f32.gmra.mrb[0].mxu0 %v99
    %v639 = vpop.f32.mrb[0].mxu0
    %v640 = vadd.f32 %v533, %v639
    %v641 = vpop.f32.mrb[0].mxu0
    %v642 = vadd.f32 %v535, %v641
    %643 = vmatprep.mubr.f32.mxu0 0.0
    %644 = vmatmul.mubr.f32.gmra.mrb[0].mxu0 %v100
    %v645 = vpop.f32.mrb[0].mxu0
    %v646 = vadd.f32 %v539, %v645
    %v647 = vpop.f32.mrb[0].mxu0
    %v648 = vadd.f32 %v541, %v647
    %649 = vmatprep.mubr.f32.mxu0 0.0
    %650 = vmatmul.mubr.f32.gmra.mrb[0].mxu0 %v101
    %v651 = vpop.f32.mrb[0].mxu0
    %v652 = vadd.f32 %v545, %v651
    %v653 = vpop.f32.mrb[0].mxu0
    %v654 = vadd.f32 %v547, %v653
    %655 = vmatprep.mubr.f32.mxu0 0.0
    %656 = vmatmul.mubr.f32.gmra.mrb[0].mxu0 %v102
    %v657 = vpop.f32.mrb[0].mxu0
    %v658 = vadd.f32 %v551, %v657
    %v659 = vpop.f32.mrb[0].mxu0
    %v660 = vadd.f32 %v553, %v659
    %661 = vdwg.mxu0
    %v662 = vmax.f32 %v342, %v622
    %v663 = vmax.f32 %v344, %v624
    %v664 = vmax.f32 %v348, %v628
    %v665 = vmax.f32 %v350, %v630
    %v666 = vmax.f32 %v354, %v634
    %v667 = vmax.f32 %v356, %v636
    %v668 = vmax.f32 %v360, %v640
    %v669 = vmax.f32 %v362, %v642
    %v670 = vmax.f32 %v366, %v646
    %v671 = vmax.f32 %v368, %v648
    %v672 = vmax.f32 %v372, %v652
    %v673 = vmax.f32 %v374, %v654
    %v674 = vmax.f32 %v378, %v658
    %v675 = vmax.f32 %v380, %v660
    %v676 = vmax.f32 %v662, %v663
    %v677 = vmax.f32 %v664, %v665
    %v678 = vmax.f32 %v666, %v667
    %v679 = vmax.f32 %v668, %v669
    %v680 = vmax.f32 %v670, %v671
    %v681 = vmax.f32 %v672, %v673
    %v682 = vmax.f32 %v674, %v675
    %v683 = vld [vmem:[%s3] sm:$0x1]
    %v685 = vlaneseq
    %v686 = vshrl.u32 %v685, 7
    %v687 = vsub.s32 0, %v686
    %v688 = vrot.slane %v683, %v687
    %v690 = vadd.f32 %v676, %v688
    %v691 = vadd.f32 %v677, %v688
    %v692 = vadd.f32 %v678, %v688
    %v693 = vadd.f32 %v679, %v688
    %v694 = vadd.f32 %v680, %v688
    %v695 = vadd.f32 %v681, %v688
    %v696 = vadd.f32 %v682, %v688
    %v697 = vmax.f32 %v690, 0.0
    %v698 = vmax.f32 %v691, 0.0
    %v699 = vmax.f32 %v692, 0.0
    %v700 = vmax.f32 %v693, 0.0
    %v701 = vmax.f32 %v694, 0.0
    %v702 = vmax.f32 %v695, 0.0
    %v703 = vmax.f32 %v696, 0.0
    %s704 = scalar_lea.vmem [#allocation2], 512
    %v705 = vld [vmem:[%s704] sm:$0xff]
    %v706 = vld [vmem:[%s704 + $0x8] sm:$0xff]
    %v707 = vld [vmem:[%s704 + $0x10] sm:$0xff]
    %v708 = vld [vmem:[%s704 + $0x18] sm:$0xff]
    %v709 = vld [vmem:[%s704 + $0x20] sm:$0xff]
    %v710 = vld [vmem:[%s704 + $0x28] sm:$0xff]
    %v711 = vld [vmem:[%s704 + $0x30] sm:$0xff]
    %v712 = vld [vmem:[%s704 + $0x38] sm:$0xff]
    %v713 = vld [vmem:[%s704 + $0x40] sm:$0xff]
    %v714 = vld [vmem:[%s704 + $0x48] sm:$0xff]
    %v715 = vld [vmem:[%s704 + $0x50] sm:$0xff]
    %v716 = vld [vmem:[%s704 + $0x58] sm:$0xff]
    %v717 = vld [vmem:[%s704 + $0x60] sm:$0xff]
    %v718 = vld [vmem:[%s704 + $0x68] sm:$0xff]
    %v719 = vld [vmem:[%s704 + $0x70] sm:$0xff]
    %v720 = vld [vmem:[%s704 + $0x78] sm:$0xff]
    %v721 = vld [vmem:[%s704 + $0x80] sm:$0xff]
    %v722 = vld [vmem:[%s704 + $0x88] sm:$0xff]
    %v723 = vld [vmem:[%s704 + $0x90] sm:$0xff]
    %v724 = vld [vmem:[%s704 + $0x98] sm:$0xff]
    %v725 = vld [vmem:[%s704 + $0xa0] sm:$0xff]
    %v726 = vld [vmem:[%s704 + $0xa8] sm:$0xff]
    %v727 = vld [vmem:[%s704 + $0xb0] sm:$0xff]
    %v728 = vld [vmem:[%s704 + $0xb8] sm:$0xff]
    %v729 = vld [vmem:[%s704 + $0xc0] sm:$0xff]
    %v730 = vld [vmem:[%s704 + $0xc8] sm:$0xff]
    %v731 = vld [vmem:[%s704 + $0xd0] sm:$0xff]
    %v732 = vld [vmem:[%s704 + $0xd8] sm:$0xff]
    %v733 = vld [vmem:[%s704 + $0xe0] sm:$0xff]
    %v734 = vld [vmem:[%s704 + $0xe8] sm:$0xff]
    %v735 = vld [vmem:[%s704 + $0xf0] sm:$0xff]
    %v736 = vld [vmem:[%s704 + $0xf8] sm:$0xff]
    %s737 = scalar_lea.vmem [#allocation4], 512
    %v738 = vld [vmem:[%s737] sm:$0xff]
    %v739 = vld [vmem:[%s737 + $0x8] sm:$0xff]
    %v740 = vld [vmem:[%s737 + $0x10] sm:$0xff]
    %v741 = vld [vmem:[%s737 + $0x18] sm:$0xff]
    %v742 = vld [vmem:[%s737 + $0x20] sm:$0xff]
    %v743 = vld [vmem:[%s737 + $0x28] sm:$0xff]
    %v744 = vld [vmem:[%s737 + $0x30] sm:$0xff]
    %v745 = vld [vmem:[%s737 + $0x38] sm:$0xff]
    %v746 = vld [vmem:[%s737 + $0x40] sm:$0xff]
    %v747 = vld [vmem:[%s737 + $0x48] sm:$0xff]
    %v748 = vld [vmem:[%s737 + $0x50] sm:$0xff]
    %v749 = vld [vmem:[%s737 + $0x58] sm:$0xff]
    %v750 = vld [vmem:[%s737 + $0x60] sm:$0xff]
    %v751 = vld [vmem:[%s737 + $0x68] sm:$0xff]
    %v752 = vld [vmem:[%s737 + $0x70] sm:$0xff]
    %v753 = vld [vmem:[%s737 + $0x78] sm:$0xff]
    %v754 = vld [vmem:[%s737 + $0x80] sm:$0xff]
    %v755 = vld [vmem:[%s737 + $0x88] sm:$0xff]
    %v756 = vld [vmem:[%s737 + $0x90] sm:$0xff]
    %v757 = vld [vmem:[%s737 + $0x98] sm:$0xff]
    %v758 = vld [vmem:[%s737 + $0xa0] sm:$0xff]
    %v759 = vld [vmem:[%s737 + $0xa8] sm:$0xff]
    %v760 = vld [vmem:[%s737 + $0xb0] sm:$0xff]
    %v761 = vld [vmem:[%s737 + $0xb8] sm:$0xff]
    %v762 = vld [vmem:[%s737 + $0xc0] sm:$0xff]
    %v763 = vld [vmem:[%s737 + $0xc8] sm:$0xff]
    %v764 = vld [vmem:[%s737 + $0xd0] sm:$0xff]
    %v765 = vld [vmem:[%s737 + $0xd8] sm:$0xff]
    %v766 = vld [vmem:[%s737 + $0xe0] sm:$0xff]
    %v767 = vld [vmem:[%s737 + $0xe8] sm:$0xff]
    %v768 = vld [vmem:[%s737 + $0xf0] sm:$0xff]
    %v769 = vld [vmem:[%s737 + $0xf8] sm:$0xff]
    %770 = vmatprep.subr.mxu0 %v739
    %771 = vmatpush1.msra.mxu0 %v738
    %772 = vmatprep.subr.mxu0 %v741
    %773 = vmatpush1.msra.mxu0 %v740
    %774 = vmatprep.subr.mxu0 %v743
    %775 = vmatpush1.msra.mxu0 %v742
    %776 = vmatprep.subr.mxu0 %v745
    %777 = vmatpush1.msra.mxu0 %v744
    %778 = vmatprep.subr.mxu0 %v747
    %779 = vmatpush1.msra.mxu0 %v746
    %780 = vmatprep.subr.mxu0 %v749
    %781 = vmatpush1.msra.mxu0 %v748
    %782 = vmatprep.subr.mxu0 %v751
    %783 = vmatpush1.msra.mxu0 %v750
    %784 = vmatprep.subr.mxu0 %v753
    %785 = vmatpush1.msra.mxu0 %v752
    %786 = vmatprep.subr.mxu0 %v755
    %787 = vmatpush1.msra.mxu0 %v754
    %788 = vmatprep.subr.mxu0 %v757
    %789 = vmatpush1.msra.mxu0 %v756
    %790 = vmatprep.subr.mxu0 %v759
    %791 = vmatpush1.msra.mxu0 %v758
    %792 = vmatprep.subr.mxu0 %v761
    %793 = vmatpush1.msra.mxu0 %v760
    %794 = vmatprep.subr.mxu0 %v763
    %795 = vmatpush1.msra.mxu0 %v762
    %796 = vmatprep.subr.mxu0 %v765
    %797 = vmatpush1.msra.mxu0 %v764
    %798 = vmatprep.subr.mxu0 %v767
    %799 = vmatpush1.msra.mxu0 %v766
    %800 = vmatprep.subr.mxu0 %v769
    %801 = vmatpush1.msra.mxu0 %v768
    %802 = vmatprep.subr.mxu0 0.0
    %803 = vmatpush1.msra.mxu0 0.0
    %804 = vmatprep.subr.mxu0 0.0
    %805 = vmatpush1.msra.mxu0 0.0
    %806 = vmatprep.subr.mxu0 0.0
    %807 = vmatpush1.msra.mxu0 0.0
    %808 = vmatprep.subr.mxu0 0.0
    %809 = vmatpush1.msra.mxu0 0.0
    %810 = vmatprep.subr.mxu0 0.0
    %811 = vmatpush1.msra.mxu0 0.0
    %812 = vmatprep.subr.mxu0 0.0
    %813 = vmatpush1.msra.mxu0 0.0
    %814 = vmatprep.subr.mxu0 0.0
    %815 = vmatpush1.msra.mxu0 0.0
    %816 = vmatprep.subr.mxu0 0.0
    %817 = vmatpush1.msra.mxu0 0.0
    %818 = vmatprep.subr.mxu0 0.0
    %819 = vmatpush1.msra.mxu0 0.0
    %820 = vmatprep.subr.mxu0 0.0
    %821 = vmatpush1.msra.mxu0 0.0
    %822 = vmatprep.subr.mxu0 0.0
    %823 = vmatpush1.msra.mxu0 0.0
    %824 = vmatprep.subr.mxu0 0.0
    %825 = vmatpush1.msra.mxu0 0.0
    %826 = vmatprep.subr.mxu0 0.0
    %827 = vmatpush1.msra.mxu0 0.0
    %828 = vmatprep.subr.mxu0 0.0
    %829 = vmatpush1.msra.mxu0 0.0
    %830 = vmatprep.subr.mxu0 0.0
    %831 = vmatpush1.msra.mxu0 0.0
    %832 = vmatprep.subr.mxu0 0.0
    %833 = vmatpush1.msra.mxu0 0.0
    %834 = vmatprep.mubr.f32.mxu0 0.0
    %835 = vmatmul.mubr.f32.gmra.mrb[0].mxu0 %v97
    %v836 = vpop.f32.mrb[0].mxu0
    %v837 = vadd.f32 0.0, %v836
    %v838 = vpop.f32.mrb[0].mxu0
    %v839 = vadd.f32 0.0, %v838
    %840 = vmatprep.mubr.f32.mxu0 0.0
    %841 = vmatmul.mubr.f32.gmra.mrb[0].mxu0 %v98
    %v842 = vpop.f32.mrb[0].mxu0
    %v843 = vadd.f32 0.0, %v842
    %v844 = vpop.f32.mrb[0].mxu0
    %v845 = vadd.f32 0.0, %v844
    %846 = vmatprep.mubr.f32.mxu0 0.0
    %847 = vmatmul.mubr.f32.gmra.mrb[0].mxu0 %v99
    %v848 = vpop.f32.mrb[0].mxu0
    %v849 = vadd.f32 0.0, %v848
    %v850 = vpop.f32.mrb[0].mxu0
    %v851 = vadd.f32 0.0, %v850
    %852 = vmatprep.mubr.f32.mxu0 0.0
    %853 = vmatmul.mubr.f32.gmra.mrb[0].mxu0 %v100
    %v854 = vpop.f32.mrb[0].mxu0
    %v855 = vadd.f32 0.0, %v854
    %v856 = vpop.f32.mrb[0].mxu0
    %v857 = vadd.f32 0.0, %v856
    %858 = vmatprep.mubr.f32.mxu0 0.0
    %859 = vmatmul.mubr.f32.gmra.mrb[0].mxu0 %v101
    %v860 = vpop.f32.mrb[0].mxu0
    %v861 = vadd.f32 0.0, %v860
    %v862 = vpop.f32.mrb[0].mxu0
    %v863 = vadd.f32 0.0, %v862
    %864 = vmatprep.mubr.f32.mxu0 0.0
    %865 = vmatmul.mubr.f32.gmra.mrb[0].mxu0 %v102
    %v866 = vpop.f32.mrb[0].mxu0
    %v867 = vadd.f32 0.0, %v866
    %v868 = vpop.f32.mrb[0].mxu0
    %v869 = vadd.f32 0.0, %v868
    %870 = vmatprep.mubr.f32.mxu0 0.0
    %871 = vmatmul.mubr.f32.gmra.mrb[0].mxu0 %v103
    %v872 = vpop.f32.mrb[0].mxu0
    %v873 = vadd.f32 0.0, %v872
    %v874 = vpop.f32.mrb[0].mxu0
    %v875 = vadd.f32 0.0, %v874
    %876 = vdwg.mxu0
    %877 = vmatprep.subr.mxu0 %v706
    %878 = vmatpush1.msra.mxu0 %v705
    %879 = vmatprep.subr.mxu0 %v708
    %880 = vmatpush1.msra.mxu0 %v707
    %881 = vmatprep.subr.mxu0 %v710
    %882 = vmatpush1.msra.mxu0 %v709
    %883 = vmatprep.subr.mxu0 %v712
    %884 = vmatpush1.msra.mxu0 %v711
    %885 = vmatprep.subr.mxu0 %v714
    %886 = vmatpush1.msra.mxu0 %v713
    %887 = vmatprep.subr.mxu0 %v716
    %888 = vmatpush1.msra.mxu0 %v715
    %889 = vmatprep.subr.mxu0 %v718
    %890 = vmatpush1.msra.mxu0 %v717
    %891 = vmatprep.subr.mxu0 %v720
    %892 = vmatpush1.msra.mxu0 %v719
    %893 = vmatprep.subr.mxu0 %v722
    %894 = vmatpush1.msra.mxu0 %v721
    %895 = vmatprep.subr.mxu0 %v724
    %896 = vmatpush1.msra.mxu0 %v723
    %897 = vmatprep.subr.mxu0 %v726
    %898 = vmatpush1.msra.mxu0 %v725
    %899 = vmatprep.subr.mxu0 %v728
    %900 = vmatpush1.msra.mxu0 %v727
    %901 = vmatprep.subr.mxu0 %v730
    %902 = vmatpush1.msra.mxu0 %v729
    %903 = vmatprep.subr.mxu0 %v732
    %904 = vmatpush1.msra.mxu0 %v731
    %905 = vmatprep.subr.mxu0 %v734
    %906 = vmatpush1.msra.mxu0 %v733
    %907 = vmatprep.subr.mxu0 %v736
    %908 = vmatpush1.msra.mxu0 %v735
    %909 = vmatprep.subr.mxu0 0.0
    %910 = vmatpush1.msra.mxu0 0.0
    %911 = vmatprep.subr.mxu0 0.0
    %912 = vmatpush1.msra.mxu0 0.0
    %913 = vmatprep.subr.mxu0 0.0
    %914 = vmatpush1.msra.mxu0 0.0
    %915 = vmatprep.subr.mxu0 0.0
    %916 = vmatpush1.msra.mxu0 0.0
    %917 = vmatprep.subr.mxu0 0.0
    %918 = vmatpush1.msra.mxu0 0.0
    %919 = vmatprep.subr.mxu0 0.0
    %920 = vmatpush1.msra.mxu0 0.0
    %921 = vmatprep.subr.mxu0 0.0
    %922 = vmatpush1.msra.mxu0 0.0
    %923 = vmatprep.subr.mxu0 0.0
    %924 = vmatpush1.msra.mxu0 0.0
    %925 = vmatprep.subr.mxu0 0.0
    %926 = vmatpush1.msra.mxu0 0.0
    %927 = vmatprep.subr.mxu0 0.0
    %928 = vmatpush1.msra.mxu0 0.0
    %929 = vmatprep.subr.mxu0 0.0
    %930 = vmatpush1.msra.mxu0 0.0
    %931 = vmatprep.subr.mxu0 0.0
    %932 = vmatpush1.msra.mxu0 0.0
    %933 = vmatprep.subr.mxu0 0.0
    %934 = vmatpush1.msra.mxu0 0.0
    %935 = vmatprep.subr.mxu0 0.0
    %936 = vmatpush1.msra.mxu0 0.0
    %937 = vmatprep.subr.mxu0 0.0
    %938 = vmatpush1.msra.mxu0 0.0
    %939 = vmatprep.subr.mxu0 0.0
    %940 = vmatpush1.msra.mxu0 0.0
    %941 = vmatprep.mubr.f32.mxu0 0.0
    %942 = vmatmul.mubr.f32.gmra.mrb[0].mxu0 %v96
    %v943 = vpop.f32.mrb[0].mxu0
    %v944 = vadd.f32 %v837, %v943
    %v945 = vpop.f32.mrb[0].mxu0
    %v946 = vadd.f32 %v839, %v945
    %947 = vmatprep.mubr.f32.mxu0 0.0
    %948 = vmatmul.mubr.f32.gmra.mrb[0].mxu0 %v97
    %v949 = vpop.f32.mrb[0].mxu0
    %v950 = vadd.f32 %v843, %v949
    %v951 = vpop.f32.mrb[0].mxu0
    %v952 = vadd.f32 %v845, %v951
    %953 = vmatprep.mubr.f32.mxu0 0.0
    %954 = vmatmul.mubr.f32.gmra.mrb[0].mxu0 %v98
    %v955 = vpop.f32.mrb[0].mxu0
    %v956 = vadd.f32 %v849, %v955
    %v957 = vpop.f32.mrb[0].mxu0
    %v958 = vadd.f32 %v851, %v957
    %959 = vmatprep.mubr.f32.mxu0 0.0
    %960 = vmatmul.mubr.f32.gmra.mrb[0].mxu0 %v99
    %v961 = vpop.f32.mrb[0].mxu0
    %v962 = vadd.f32 %v855, %v961
    %v963 = vpop.f32.mrb[0].mxu0
    %v964 = vadd.f32 %v857, %v963
    %965 = vmatprep.mubr.f32.mxu0 0.0
    %966 = vmatmul.mubr.f32.gmra.mrb[0].mxu0 %v100
    %v967 = vpop.f32.mrb[0].mxu0
    %v968 = vadd.f32 %v861, %v967
    %v969 = vpop.f32.mrb[0].mxu0
    %v970 = vadd.f32 %v863, %v969
    %971 = vmatprep.mubr.f32.mxu0 0.0
    %972 = vmatmul.mubr.f32.gmra.mrb[0].mxu0 %v101
    %v973 = vpop.f32.mrb[0].mxu0
    %v974 = vadd.f32 %v867, %v973
    %v975 = vpop.f32.mrb[0].mxu0
    %v976 = vadd.f32 %v869, %v975
    %977 = vmatprep.mubr.f32.mxu0 0.0
    %978 = vmatmul.mubr.f32.gmra.mrb[0].mxu0 %v102
    %v979 = vpop.f32.mrb[0].mxu0
    %v980 = vadd.f32 %v873, %v979
    %v981 = vpop.f32.mrb[0].mxu0
    %v982 = vadd.f32 %v875, %v981
    %983 = vdwg.mxu0
    %s984 = scalar_lea.vmem [#allocation2], 768
    %v985 = vld [vmem:[%s984] sm:$0xff]
    %v986 = vld [vmem:[%s984 + $0x8] sm:$0xff]
    %v987 = vld [vmem:[%s984 + $0x10] sm:$0xff]
    %v988 = vld [vmem:[%s984 + $0x18] sm:$0xff]
    %v989 = vld [vmem:[%s984 + $0x20] sm:$0xff]
    %v990 = vld [vmem:[%s984 + $0x28] sm:$0xff]
    %v991 = vld [vmem:[%s984 + $0x30] sm:$0xff]
    %v992 = vld [vmem:[%s984 + $0x38] sm:$0xff]
    %v993 = vld [vmem:[%s984 + $0x40] sm:$0xff]
    %v994 = vld [vmem:[%s984 + $0x48] sm:$0xff]
    %v995 = vld [vmem:[%s984 + $0x50] sm:$0xff]
    %v996 = vld [vmem:[%s984 + $0x58] sm:$0xff]
    %v997 = vld [vmem:[%s984 + $0x60] sm:$0xff]
    %v998 = vld [vmem:[%s984 + $0x68] sm:$0xff]
    %v999 = vld [vmem:[%s984 + $0x70] sm:$0xff]
    %v1000 = vld [vmem:[%s984 + $0x78] sm:$0xff]
    %v1001 = vld [vmem:[%s984 + $0x80] sm:$0xff]
    %v1002 = vld [vmem:[%s984 + $0x88] sm:$0xff]
    %v1003 = vld [vmem:[%s984 + $0x90] sm:$0xff]
    %v1004 = vld [vmem:[%s984 + $0x98] sm:$0xff]
    %v1005 = vld [vmem:[%s984 + $0xa0] sm:$0xff]
    %v1006 = vld [vmem:[%s984 + $0xa8] sm:$0xff]
    %v1007 = vld [vmem:[%s984 + $0xb0] sm:$0xff]
    %v1008 = vld [vmem:[%s984 + $0xb8] sm:$0xff]
    %v1009 = vld [vmem:[%s984 + $0xc0] sm:$0xff]
    %v1010 = vld [vmem:[%s984 + $0xc8] sm:$0xff]
    %v1011 = vld [vmem:[%s984 + $0xd0] sm:$0xff]
    %v1012 = vld [vmem:[%s984 + $0xd8] sm:$0xff]
    %v1013 = vld [vmem:[%s984 + $0xe0] sm:$0xff]
    %v1014 = vld [vmem:[%s984 + $0xe8] sm:$0xff]
    %v1015 = vld [vmem:[%s984 + $0xf0] sm:$0xff]
    %v1016 = vld [vmem:[%s984 + $0xf8] sm:$0xff]
    %s1017 = scalar_lea.vmem [#allocation4], 768
    %v1018 = vld [vmem:[%s1017] sm:$0xff]
    %v1019 = vld [vmem:[%s1017 + $0x8] sm:$0xff]
    %v1020 = vld [vmem:[%s1017 + $0x10] sm:$0xff]
    %v1021 = vld [vmem:[%s1017 + $0x18] sm:$0xff]
    %v1022 = vld [vmem:[%s1017 + $0x20] sm:$0xff]
    %v1023 = vld [vmem:[%s1017 + $0x28] sm:$0xff]
    %v1024 = vld [vmem:[%s1017 + $0x30] sm:$0xff]
    %v1025 = vld [vmem:[%s1017 + $0x38] sm:$0xff]
    %v1026 = vld [vmem:[%s1017 + $0x40] sm:$0xff]
    %v1027 = vld [vmem:[%s1017 + $0x48] sm:$0xff]
    %v1028 = vld [vmem:[%s1017 + $0x50] sm:$0xff]
    %v1029 = vld [vmem:[%s1017 + $0x58] sm:$0xff]
    %v1030 = vld [vmem:[%s1017 + $0x60] sm:$0xff]
    %v1031 = vld [vmem:[%s1017 + $0x68] sm:$0xff]
    %v1032 = vld [vmem:[%s1017 + $0x70] sm:$0xff]
    %v1033 = vld [vmem:[%s1017 + $0x78] sm:$0xff]
    %v1034 = vld [vmem:[%s1017 + $0x80] sm:$0xff]
    %v1035 = vld [vmem:[%s1017 + $0x88] sm:$0xff]
    %v1036 = vld [vmem:[%s1017 + $0x90] sm:$0xff]
    %v1037 = vld [vmem:[%s1017 + $0x98] sm:$0xff]
    %v1038 = vld [vmem:[%s1017 + $0xa0] sm:$0xff]
    %v1039 = vld [vmem:[%s1017 + $0xa8] sm:$0xff]
    %v1040 = vld [vmem:[%s1017 + $0xb0] sm:$0xff]
    %v1041 = vld [vmem:[%s1017 + $0xb8] sm:$0xff]
    %v1042 = vld [vmem:[%s1017 + $0xc0] sm:$0xff]
    %v1043 = vld [vmem:[%s1017 + $0xc8] sm:$0xff]
    %v1044 = vld [vmem:[%s1017 + $0xd0] sm:$0xff]
    %v1045 = vld [vmem:[%s1017 + $0xd8] sm:$0xff]
    %v1046 = vld [vmem:[%s1017 + $0xe0] sm:$0xff]
    %v1047 = vld [vmem:[%s1017 + $0xe8] sm:$0xff]
    %v1048 = vld [vmem:[%s1017 + $0xf0] sm:$0xff]
    %v1049 = vld [vmem:[%s1017 + $0xf8] sm:$0xff]
    %1050 = vmatprep.subr.mxu0 %v1019
    %1051 = vmatpush1.msra.mxu0 %v1018
    %1052 = vmatprep.subr.mxu0 %v1021
    %1053 = vmatpush1.msra.mxu0 %v1020
    %1054 = vmatprep.subr.mxu0 %v1023
    %1055 = vmatpush1.msra.mxu0 %v1022
    %1056 = vmatprep.subr.mxu0 %v1025
    %1057 = vmatpush1.msra.mxu0 %v1024
    %1058 = vmatprep.subr.mxu0 %v1027
    %1059 = vmatpush1.msra.mxu0 %v1026
    %1060 = vmatprep.subr.mxu0 %v1029
    %1061 = vmatpush1.msra.mxu0 %v1028
    %1062 = vmatprep.subr.mxu0 %v1031
    %1063 = vmatpush1.msra.mxu0 %v1030
    %1064 = vmatprep.subr.mxu0 %v1033
    %1065 = vmatpush1.msra.mxu0 %v1032
    %1066 = vmatprep.subr.mxu0 %v1035
    %1067 = vmatpush1.msra.mxu0 %v1034
    %1068 = vmatprep.subr.mxu0 %v1037
    %1069 = vmatpush1.msra.mxu0 %v1036
    %1070 = vmatprep.subr.mxu0 %v1039
    %1071 = vmatpush1.msra.mxu0 %v1038
    %1072 = vmatprep.subr.mxu0 %v1041
    %1073 = vmatpush1.msra.mxu0 %v1040
    %1074 = vmatprep.subr.mxu0 %v1043
    %1075 = vmatpush1.msra.mxu0 %v1042
    %1076 = vmatprep.subr.mxu0 %v1045
    %1077 = vmatpush1.msra.mxu0 %v1044
    %1078 = vmatprep.subr.mxu0 %v1047
    %1079 = vmatpush1.msra.mxu0 %v1046
    %1080 = vmatprep.subr.mxu0 %v1049
    %1081 = vmatpush1.msra.mxu0 %v1048
    %1082 = vmatprep.subr.mxu0 0.0
    %1083 = vmatpush1.msra.mxu0 0.0
    %1084 = vmatprep.subr.mxu0 0.0
    %1085 = vmatpush1.msra.mxu0 0.0
    %1086 = vmatprep.subr.mxu0 0.0
    %1087 = vmatpush1.msra.mxu0 0.0
    %1088 = vmatprep.subr.mxu0 0.0
    %1089 = vmatpush1.msra.mxu0 0.0
    %1090 = vmatprep.subr.mxu0 0.0
    %1091 = vmatpush1.msra.mxu0 0.0
    %1092 = vmatprep.subr.mxu0 0.0
    %1093 = vmatpush1.msra.mxu0 0.0
    %1094 = vmatprep.subr.mxu0 0.0
    %1095 = vmatpush1.msra.mxu0 0.0
    %1096 = vmatprep.subr.mxu0 0.0
    %1097 = vmatpush1.msra.mxu0 0.0
    %1098 = vmatprep.subr.mxu0 0.0
    %1099 = vmatpush1.msra.mxu0 0.0
    %1100 = vmatprep.subr.mxu0 0.0
    %1101 = vmatpush1.msra.mxu0 0.0
    %1102 = vmatprep.subr.mxu0 0.0
    %1103 = vmatpush1.msra.mxu0 0.0
    %1104 = vmatprep.subr.mxu0 0.0
    %1105 = vmatpush1.msra.mxu0 0.0
    %1106 = vmatprep.subr.mxu0 0.0
    %1107 = vmatpush1.msra.mxu0 0.0
    %1108 = vmatprep.subr.mxu0 0.0
    %1109 = vmatpush1.msra.mxu0 0.0
    %1110 = vmatprep.subr.mxu0 0.0
    %1111 = vmatpush1.msra.mxu0 0.0
    %1112 = vmatprep.subr.mxu0 0.0
    %1113 = vmatpush1.msra.mxu0 0.0
    %1114 = vmatprep.mubr.f32.mxu0 0.0
    %1115 = vmatmul.mubr.f32.gmra.mrb[0].mxu0 %v97
    %v1116 = vpop.f32.mrb[0].mxu0
    %v1117 = vadd.f32 0.0, %v1116
    %v1118 = vpop.f32.mrb[0].mxu0
    %v1119 = vadd.f32 0.0, %v1118
    %1120 = vmatprep.mubr.f32.mxu0 0.0
    %1121 = vmatmul.mubr.f32.gmra.mrb[0].mxu0 %v98
    %v1122 = vpop.f32.mrb[0].mxu0
    %v1123 = vadd.f32 0.0, %v1122
    %v1124 = vpop.f32.mrb[0].mxu0
    %v1125 = vadd.f32 0.0, %v1124
    %1126 = vmatprep.mubr.f32.mxu0 0.0
    %1127 = vmatmul.mubr.f32.gmra.mrb[0].mxu0 %v99
    %v1128 = vpop.f32.mrb[0].mxu0
    %v1129 = vadd.f32 0.0, %v1128
    %v1130 = vpop.f32.mrb[0].mxu0
    %v1131 = vadd.f32 0.0, %v1130
    %1132 = vmatprep.mubr.f32.mxu0 0.0
    %1133 = vmatmul.mubr.f32.gmra.mrb[0].mxu0 %v100
    %v1134 = vpop.f32.mrb[0].mxu0
    %v1135 = vadd.f32 0.0, %v1134
    %v1136 = vpop.f32.mrb[0].mxu0
    %v1137 = vadd.f32 0.0, %v1136
    %1138 = vmatprep.mubr.f32.mxu0 0.0
    %1139 = vmatmul.mubr.f32.gmra.mrb[0].mxu0 %v101
    %v1140 = vpop.f32.mrb[0].mxu0
    %v1141 = vadd.f32 0.0, %v1140
    %v1142 = vpop.f32.mrb[0].mxu0
    %v1143 = vadd.f32 0.0, %v1142
    %1144 = vmatprep.mubr.f32.mxu0 0.0
    %1145 = vmatmul.mubr.f32.gmra.mrb[0].mxu0 %v102
    %v1146 = vpop.f32.mrb[0].mxu0
    %v1147 = vadd.f32 0.0, %v1146
    %v1148 = vpop.f32.mrb[0].mxu0
    %v1149 = vadd.f32 0.0, %v1148
    %1150 = vmatprep.mubr.f32.mxu0 0.0
    %1151 = vmatmul.mubr.f32.gmra.mrb[0].mxu0 %v103
    %v1152 = vpop.f32.mrb[0].mxu0
    %v1153 = vadd.f32 0.0, %v1152
    %v1154 = vpop.f32.mrb[0].mxu0
    %v1155 = vadd.f32 0.0, %v1154
    %1156 = vdwg.mxu0
    %1157 = vmatprep.subr.mxu0 %v986
    %1158 = vmatpush1.msra.mxu0 %v985
    %1159 = vmatprep.subr.mxu0 %v988
    %1160 = vmatpush1.msra.mxu0 %v987
    %1161 = vmatprep.subr.mxu0 %v990
    %1162 = vmatpush1.msra.mxu0 %v989
    %1163 = vmatprep.subr.mxu0 %v992
    %1164 = vmatpush1.msra.mxu0 %v991
    %1165 = vmatprep.subr.mxu0 %v994
    %1166 = vmatpush1.msra.mxu0 %v993
    %1167 = vmatprep.subr.mxu0 %v996
    %1168 = vmatpush1.msra.mxu0 %v995
    %1169 = vmatprep.subr.mxu0 %v998
    %1170 = vmatpush1.msra.mxu0 %v997
    %1171 = vmatprep.subr.mxu0 %v1000
    %1172 = vmatpush1.msra.mxu0 %v999
    %1173 = vmatprep.subr.mxu0 %v1002
    %1174 = vmatpush1.msra.mxu0 %v1001
    %1175 = vmatprep.subr.mxu0 %v1004
    %1176 = vmatpush1.msra.mxu0 %v1003
    %1177 = vmatprep.subr.mxu0 %v1006
    %1178 = vmatpush1.msra.mxu0 %v1005
    %1179 = vmatprep.subr.mxu0 %v1008
    %1180 = vmatpush1.msra.mxu0 %v1007
    %1181 = vmatprep.subr.mxu0 %v1010
    %1182 = vmatpush1.msra.mxu0 %v1009
    %1183 = vmatprep.subr.mxu0 %v1012
    %1184 = vmatpush1.msra.mxu0 %v1011
    %1185 = vmatprep.subr.mxu0 %v1014
    %1186 = vmatpush1.msra.mxu0 %v1013
    %1187 = vmatprep.subr.mxu0 %v1016
    %1188 = vmatpush1.msra.mxu0 %v1015
    %1189 = vmatprep.subr.mxu0 0.0
    %1190 = vmatpush1.msra.mxu0 0.0
    %1191 = vmatprep.subr.mxu0 0.0
    %1192 = vmatpush1.msra.mxu0 0.0
    %1193 = vmatprep.subr.mxu0 0.0
    %1194 = vmatpush1.msra.mxu0 0.0
    %1195 = vmatprep.subr.mxu0 0.0
    %1196 = vmatpush1.msra.mxu0 0.0
    %1197 = vmatprep.subr.mxu0 0.0
    %1198 = vmatpush1.msra.mxu0 0.0
    %1199 = vmatprep.subr.mxu0 0.0
    %1200 = vmatpush1.msra.mxu0 0.0
    %1201 = vmatprep.subr.mxu0 0.0
    %1202 = vmatpush1.msra.mxu0 0.0
    %1203 = vmatprep.subr.mxu0 0.0
    %1204 = vmatpush1.msra.mxu0 0.0
    %1205 = vmatprep.subr.mxu0 0.0
    %1206 = vmatpush1.msra.mxu0 0.0
    %1207 = vmatprep.subr.mxu0 0.0
    %1208 = vmatpush1.msra.mxu0 0.0
    %1209 = vmatprep.subr.mxu0 0.0
    %1210 = vmatpush1.msra.mxu0 0.0
    %1211 = vmatprep.subr.mxu0 0.0
    %1212 = vmatpush1.msra.mxu0 0.0
    %1213 = vmatprep.subr.mxu0 0.0
    %1214 = vmatpush1.msra.mxu0 0.0
    %1215 = vmatprep.subr.mxu0 0.0
    %1216 = vmatpush1.msra.mxu0 0.0
    %1217 = vmatprep.subr.mxu0 0.0
    %1218 = vmatpush1.msra.mxu0 0.0
    %1219 = vmatprep.subr.mxu0 0.0
    %1220 = vmatpush1.msra.mxu0 0.0
    %1221 = vmatprep.mubr.f32.mxu0 0.0
    %1222 = vmatmul.mubr.f32.gmra.mrb[0].mxu0 %v96
    %v1223 = vpop.f32.mrb[0].mxu0
    %v1224 = vadd.f32 %v1117, %v1223
    %v1225 = vpop.f32.mrb[0].mxu0
    %v1226 = vadd.f32 %v1119, %v1225
    %1227 = vmatprep.mubr.f32.mxu0 0.0
    %1228 = vmatmul.mubr.f32.gmra.mrb[0].mxu0 %v97
    %v1229 = vpop.f32.mrb[0].mxu0
    %v1230 = vadd.f32 %v1123, %v1229
    %v1231 = vpop.f32.mrb[0].mxu0
    %v1232 = vadd.f32 %v1125, %v1231
    %1233 = vmatprep.mubr.f32.mxu0 0.0
    %1234 = vmatmul.mubr.f32.gmra.mrb[0].mxu0 %v98
    %v1235 = vpop.f32.mrb[0].mxu0
    %v1236 = vadd.f32 %v1129, %v1235
    %v1237 = vpop.f32.mrb[0].mxu0
    %v1238 = vadd.f32 %v1131, %v1237
    %1239 = vmatprep.mubr.f32.mxu0 0.0
    %1240 = vmatmul.mubr.f32.gmra.mrb[0].mxu0 %v99
    %v1241 = vpop.f32.mrb[0].mxu0
    %v1242 = vadd.f32 %v1135, %v1241
    %v1243 = vpop.f32.mrb[0].mxu0
    %v1244 = vadd.f32 %v1137, %v1243
    %1245 = vmatprep.mubr.f32.mxu0 0.0
    %1246 = vmatmul.mubr.f32.gmra.mrb[0].mxu0 %v100
    %v1247 = vpop.f32.mrb[0].mxu0
    %v1248 = vadd.f32 %v1141, %v1247
    %v1249 = vpop.f32.mrb[0].mxu0
    %v1250 = vadd.f32 %v1143, %v1249
    %1251 = vmatprep.mubr.f32.mxu0 0.0
    %1252 = vmatmul.mubr.f32.gmra.mrb[0].mxu0 %v101
    %v1253 = vpop.f32.mrb[0].mxu0
    %v1254 = vadd.f32 %v1147, %v1253
    %v1255 = vpop.f32.mrb[0].mxu0
    %v1256 = vadd.f32 %v1149, %v1255
    %1257 = vmatprep.mubr.f32.mxu0 0.0
    %1258 = vmatmul.mubr.f32.gmra.mrb[0].mxu0 %v102
    %v1259 = vpop.f32.mrb[0].mxu0
    %v1260 = vadd.f32 %v1153, %v1259
    %v1261 = vpop.f32.mrb[0].mxu0
    %v1262 = vadd.f32 %v1155, %v1261
    %1263 = vdwg.mxu0
    %v1264 = vmax.f32 %v944, %v1224
    %v1265 = vmax.f32 %v946, %v1226
    %v1266 = vmax.f32 %v950, %v1230
    %v1267 = vmax.f32 %v952, %v1232
    %v1268 = vmax.f32 %v956, %v1236
    %v1269 = vmax.f32 %v958, %v1238
    %v1270 = vmax.f32 %v962, %v1242
    %v1271 = vmax.f32 %v964, %v1244
    %v1272 = vmax.f32 %v968, %v1248
    %v1273 = vmax.f32 %v970, %v1250
    %v1274 = vmax.f32 %v974, %v1254
    %v1275 = vmax.f32 %v976, %v1256
    %v1276 = vmax.f32 %v980, %v1260
    %v1277 = vmax.f32 %v982, %v1262
    %v1278 = vmax.f32 %v1264, %v1265
    %v1279 = vmax.f32 %v1266, %v1267
    %v1280 = vmax.f32 %v1268, %v1269
    %v1281 = vmax.f32 %v1270, %v1271
    %v1282 = vmax.f32 %v1272, %v1273
    %v1283 = vmax.f32 %v1274, %v1275
    %v1284 = vmax.f32 %v1276, %v1277
    %v1285 = vadd.f32 %v1278, %v688
    %v1286 = vadd.f32 %v1279, %v688
    %v1287 = vadd.f32 %v1280, %v688
    %v1288 = vadd.f32 %v1281, %v688
    %v1289 = vadd.f32 %v1282, %v688
    %v1290 = vadd.f32 %v1283, %v688
    %v1291 = vadd.f32 %v1284, %v688
    %v1292 = vmax.f32 %v1285, 0.0
    %v1293 = vmax.f32 %v1286, 0.0
    %v1294 = vmax.f32 %v1287, 0.0
    %v1295 = vmax.f32 %v1288, 0.0
    %v1296 = vmax.f32 %v1289, 0.0
    %v1297 = vmax.f32 %v1290, 0.0
    %v1298 = vmax.f32 %v1291, 0.0
    %v1299 = vld [vmem:[#allocation6] sm:$0xff]
    %v1300 = vld [vmem:[#allocation6 + $0x8] sm:$0xff]
    %v1301 = vld [vmem:[#allocation6 + $0x10] sm:$0xff]
    %v1302 = vld [vmem:[#allocation6 + $0x18] sm:$0xff]
    %v1303 = vld [vmem:[#allocation6 + $0x20] sm:$0xff]
    %v1304 = vld [vmem:[#allocation6 + $0x28] sm:$0xff]
    %v1305 = vld [vmem:[#allocation6 + $0x30] sm:$0xff]
    %v1306 = vld [vmem:[#allocation6 + $0x38] sm:$0xff]
    %v1307 = vld [vmem:[#allocation6 + $0x40] sm:$0xff]
    %v1308 = vld [vmem:[#allocation6 + $0x48] sm:$0xff]
    %v1309 = vld [vmem:[#allocation6 + $0x50] sm:$0xff]
    %v1310 = vld [vmem:[#allocation6 + $0x58] sm:$0xff]
    %v1311 = vld [vmem:[#allocation6 + $0x60] sm:$0xff]
    %v1312 = vld [vmem:[#allocation6 + $0x68] sm:$0xff]
    %v1313 = vld [vmem:[#allocation6 + $0x70] sm:$0xff]
    %v1314 = vld [vmem:[#allocation6 + $0x78] sm:$0xff]
    %v1315 = vld [vmem:[#allocation6 + $0x80] sm:$0xff]
    %v1316 = vld [vmem:[#allocation6 + $0x88] sm:$0xff]
    %v1317 = vld [vmem:[#allocation6 + $0x90] sm:$0xff]
    %v1318 = vld [vmem:[#allocation6 + $0x98] sm:$0xff]
    %v1319 = vld [vmem:[#allocation6 + $0xa0] sm:$0xf]
    %v1320 = vld [vmem:[#allocation6 + $0xa8] sm:$0xf]
    %s1321 = scalar_lea.vmem [#allocation6], 176
    %v1322 = vld [vmem:[%s1321] sm:$0xff]
    %v1323 = vld [vmem:[%s1321 + $0x8] sm:$0xff]
    %v1324 = vld [vmem:[%s1321 + $0x10] sm:$0xff]
    %v1325 = vld [vmem:[%s1321 + $0x18] sm:$0xff]
    %v1326 = vld [vmem:[%s1321 + $0x20] sm:$0xff]
    %v1327 = vld [vmem:[%s1321 + $0x28] sm:$0xff]
    %v1328 = vld [vmem:[%s1321 + $0x30] sm:$0xff]
    %v1329 = vld [vmem:[%s1321 + $0x38] sm:$0xff]
    %v1330 = vld [vmem:[%s1321 + $0x40] sm:$0xff]
    %v1331 = vld [vmem:[%s1321 + $0x48] sm:$0xff]
    %v1332 = vld [vmem:[%s1321 + $0x50] sm:$0xff]
    %v1333 = vld [vmem:[%s1321 + $0x58] sm:$0xff]
    %v1334 = vld [vmem:[%s1321 + $0x60] sm:$0xff]
    %v1335 = vld [vmem:[%s1321 + $0x68] sm:$0xff]
    %v1336 = vld [vmem:[%s1321 + $0x70] sm:$0xff]
    %v1337 = vld [vmem:[%s1321 + $0x78] sm:$0xff]
    %v1338 = vld [vmem:[%s1321 + $0x80] sm:$0xff]
    %v1339 = vld [vmem:[%s1321 + $0x88] sm:$0xff]
    %v1340 = vld [vmem:[%s1321 + $0x90] sm:$0xff]
    %v1341 = vld [vmem:[%s1321 + $0x98] sm:$0xff]
    %v1342 = vld [vmem:[%s1321 + $0xa0] sm:$0xf]
    %v1343 = vld [vmem:[%s1321 + $0xa8] sm:$0xf]
    %vm1344 = vcmask 687104
    %v1346 = vsel %vm1344, %v1292, 0
    %v1349 = vsel %vm1344, %v1293, 0
    %v1352 = vsel %vm1344, %v1294, 0
    %v1355 = vsel %vm1344, %v1295, 0
    %v1358 = vsel %vm1344, %v1296, 0
    %vm1360 = vcmask 1043456
    %v1362 = vsel %vm1360, %v1342, 0
    %v1365 = vsel %vm1360, %v1343, 0
    %1367 = vmatprep.subr.mxu0 %v1323
    %1368 = vmatpush1.msra.mxu0 %v1322
    %1369 = vmatprep.subr.mxu0 %v1325
    %1370 = vmatpush1.msra.mxu0 %v1324
    %1371 = vmatprep.subr.mxu0 %v1327
    %1372 = vmatpush1.msra.mxu0 %v1326
    %1373 = vmatprep.subr.mxu0 %v1329
    %1374 = vmatpush1.msra.mxu0 %v1328
    %1375 = vmatprep.subr.mxu0 %v1331
    %1376 = vmatpush1.msra.mxu0 %v1330
    %1377 = vmatprep.subr.mxu0 %v1333
    %1378 = vmatpush1.msra.mxu0 %v1332
    %1379 = vmatprep.subr.mxu0 %v1335
    %1380 = vmatpush1.msra.mxu0 %v1334
    %1381 = vmatprep.subr.mxu0 %v1337
    %1382 = vmatpush1.msra.mxu0 %v1336
    %1383 = vmatprep.subr.mxu0 %v1339
    %1384 = vmatpush1.msra.mxu0 %v1338
    %1385 = vmatprep.subr.mxu0 %v1341
    %1386 = vmatpush1.msra.mxu0 %v1340
    %1387 = vmatprep.subr.mxu0 %v1365
    %1388 = vmatpush1.msra.mxu0 %v1362
    %1389 = vmatprep.subr.mxu0 0.0
    %1390 = vmatpush1.msra.mxu0 0.0
    %1391 = vmatprep.subr.mxu0 0.0
    %1392 = vmatpush1.msra.mxu0 0.0
    %1393 = vmatprep.subr.mxu0 0.0
    %1394 = vmatpush1.msra.mxu0 0.0
    %1395 = vmatprep.subr.mxu0 0.0
    %1396 = vmatpush1.msra.mxu0 0.0
    %1397 = vmatprep.subr.mxu0 0.0
    %1398 = vmatpush1.msra.mxu0 0.0
    %1399 = vmatprep.subr.mxu0 0.0
    %1400 = vmatpush1.msra.mxu0 0.0
    %1401 = vmatprep.subr.mxu0 0.0
    %1402 = vmatpush1.msra.mxu0 0.0
    %1403 = vmatprep.subr.mxu0 0.0
    %1404 = vmatpush1.msra.mxu0 0.0
    %1405 = vmatprep.subr.mxu0 0.0
    %1406 = vmatpush1.msra.mxu0 0.0
    %1407 = vmatprep.subr.mxu0 0.0
    %1408 = vmatpush1.msra.mxu0 0.0
    %1409 = vmatprep.subr.mxu0 0.0
    %1410 = vmatpush1.msra.mxu0 0.0
    %1411 = vmatprep.subr.mxu0 0.0
    %1412 = vmatpush1.msra.mxu0 0.0
    %1413 = vmatprep.subr.mxu0 0.0
    %1414 = vmatpush1.msra.mxu0 0.0
    %1415 = vmatprep.subr.mxu0 0.0
    %1416 = vmatpush1.msra.mxu0 0.0
    %1417 = vmatprep.subr.mxu0 0.0
    %1418 = vmatpush1.msra.mxu0 0.0
    %1419 = vmatprep.subr.mxu0 0.0
    %1420 = vmatpush1.msra.mxu0 0.0
    %1421 = vmatprep.subr.mxu0 0.0
    %1422 = vmatpush1.msra.mxu0 0.0
    %1423 = vmatprep.subr.mxu0 0.0
    %1424 = vmatpush1.msra.mxu0 0.0
    %1425 = vmatprep.subr.mxu0 0.0
    %1426 = vmatpush1.msra.mxu0 0.0
    %1427 = vmatprep.subr.mxu0 0.0
    %1428 = vmatpush1.msra.mxu0 0.0
    %1429 = vmatprep.subr.mxu0 0.0
    %1430 = vmatpush1.msra.mxu0 0.0
    %1431 = vmatprep.mubr.f32.mxu0 0.0
    %1432 = vmatmul.mubr.f32.gmra.mrb[0].mxu0 %v1346
    %v1433 = vpop.f32.mrb[0].mxu0
    %v1434 = vadd.f32 0.0, %v1433
    %v1435 = vpop.f32.mrb[0].mxu0
    %v1436 = vadd.f32 0.0, %v1435
    %1437 = vmatprep.mubr.f32.mxu0 0.0
    %1438 = vmatmul.mubr.f32.gmra.mrb[0].mxu0 %v1349
    %v1439 = vpop.f32.mrb[0].mxu0
    %v1440 = vadd.f32 0.0, %v1439
    %v1441 = vpop.f32.mrb[0].mxu0
    %v1442 = vadd.f32 0.0, %v1441
    %1443 = vmatprep.mubr.f32.mxu0 0.0
    %1444 = vmatmul.mubr.f32.gmra.mrb[0].mxu0 %v1352
    %v1445 = vpop.f32.mrb[0].mxu0
    %v1446 = vadd.f32 0.0, %v1445
    %v1447 = vpop.f32.mrb[0].mxu0
    %v1448 = vadd.f32 0.0, %v1447
    %1449 = vmatprep.mubr.f32.mxu0 0.0
    %1450 = vmatmul.mubr.f32.gmra.mrb[0].mxu0 %v1355
    %v1451 = vpop.f32.mrb[0].mxu0
    %v1452 = vadd.f32 0.0, %v1451
    %v1453 = vpop.f32.mrb[0].mxu0
    %v1454 = vadd.f32 0.0, %v1453
    %1455 = vmatprep.mubr.f32.mxu0 0.0
    %1456 = vmatmul.mubr.f32.gmra.mrb[0].mxu0 %v1358
    %v1457 = vpop.f32.mrb[0].mxu0
    %v1458 = vadd.f32 0.0, %v1457
    %v1459 = vpop.f32.mrb[0].mxu0
    %v1460 = vadd.f32 0.0, %v1459
    %1461 = vdwg.mxu0
    %v1463 = vsel %vm1344, %v697, 0
    %v1466 = vsel %vm1344, %v698, 0
    %v1469 = vsel %vm1344, %v699, 0
    %v1472 = vsel %vm1344, %v700, 0
    %v1475 = vsel %vm1344, %v701, 0
    %v1478 = vsel %vm1360, %v1319, 0
    %v1481 = vsel %vm1360, %v1320, 0
    %1483 = vmatprep.subr.mxu0 %v1300
    %1484 = vmatpush1.msra.mxu0 %v1299
    %1485 = vmatprep.subr.mxu0 %v1302
    %1486 = vmatpush1.msra.mxu0 %v1301
    %1487 = vmatprep.subr.mxu0 %v1304
    %1488 = vmatpush1.msra.mxu0 %v1303
    %1489 = vmatprep.subr.mxu0 %v1306
    %1490 = vmatpush1.msra.mxu0 %v1305
    %1491 = vmatprep.subr.mxu0 %v1308
    %1492 = vmatpush1.msra.mxu0 %v1307
    %1493 = vmatprep.subr.mxu0 %v1310
    %1494 = vmatpush1.msra.mxu0 %v1309
    %1495 = vmatprep.subr.mxu0 %v1312
    %1496 = vmatpush1.msra.mxu0 %v1311
    %1497 = vmatprep.subr.mxu0 %v1314
    %1498 = vmatpush1.msra.mxu0 %v1313
    %1499 = vmatprep.subr.mxu0 %v1316
    %1500 = vmatpush1.msra.mxu0 %v1315
    %1501 = vmatprep.subr.mxu0 %v1318
    %1502 = vmatpush1.msra.mxu0 %v1317
    %1503 = vmatprep.subr.mxu0 %v1481
    %1504 = vmatpush1.msra.mxu0 %v1478
    %1505 = vmatprep.subr.mxu0 0.0
    %1506 = vmatpush1.msra.mxu0 0.0
    %1507 = vmatprep.subr.mxu0 0.0
    %1508 = vmatpush1.msra.mxu0 0.0
    %1509 = vmatprep.subr.mxu0 0.0
    %1510 = vmatpush1.msra.mxu0 0.0
    %1511 = vmatprep.subr.mxu0 0.0
    %1512 = vmatpush1.msra.mxu0 0.0
    %1513 = vmatprep.subr.mxu0 0.0
    %1514 = vmatpush1.msra.mxu0 0.0
    %1515 = vmatprep.subr.mxu0 0.0
    %1516 = vmatpush1.msra.mxu0 0.0
    %1517 = vmatprep.subr.mxu0 0.0
    %1518 = vmatpush1.msra.mxu0 0.0
    %1519 = vmatprep.subr.mxu0 0.0
    %1520 = vmatpush1.msra.mxu0 0.0
    %1521 = vmatprep.subr.mxu0 0.0
    %1522 = vmatpush1.msra.mxu0 0.0
    %1523 = vmatprep.subr.mxu0 0.0
    %1524 = vmatpush1.msra.mxu0 0.0
    %1525 = vmatprep.subr.mxu0 0.0
    %1526 = vmatpush1.msra.mxu0 0.0
    %1527 = vmatprep.subr.mxu0 0.0
    %1528 = vmatpush1.msra.mxu0 0.0
    %1529 = vmatprep.subr.mxu0 0.0
    %1530 = vmatpush1.msra.mxu0 0.0
    %1531 = vmatprep.subr.mxu0 0.0
    %1532 = vmatpush1.msra.mxu0 0.0
    %1533 = vmatprep.subr.mxu0 0.0
    %1534 = vmatpush1.msra.mxu0 0.0
    %1535 = vmatprep.subr.mxu0 0.0
    %1536 = vmatpush1.msra.mxu0 0.0
    %1537 = vmatprep.subr.mxu0 0.0
    %1538 = vmatpush1.msra.mxu0 0.0
    %1539 = vmatprep.subr.mxu0 0.0
    %1540 = vmatpush1.msra.mxu0 0.0
    %1541 = vmatprep.subr.mxu0 0.0
    %1542 = vmatpush1.msra.mxu0 0.0
    %1543 = vmatprep.subr.mxu0 0.0
    %1544 = vmatpush1.msra.mxu0 0.0
    %1545 = vmatprep.subr.mxu0 0.0
    %1546 = vmatpush1.msra.mxu0 0.0
    %1547 = vmatprep.mubr.f32.mxu0 0.0
    %1548 = vmatmul.mubr.f32.gmra.mrb[0].mxu0 %v1463
    %v1549 = vpop.f32.mrb[0].mxu0
    %v1550 = vadd.f32 %v1434, %v1549
    %v1551 = vpop.f32.mrb[0].mxu0
    %v1552 = vadd.f32 %v1436, %v1551
    %1553 = vmatprep.mubr.f32.mxu0 0.0
    %1554 = vmatmul.mubr.f32.gmra.mrb[0].mxu0 %v1466
    %v1555 = vpop.f32.mrb[0].mxu0
    %v1556 = vadd.f32 %v1440, %v1555
    %v1557 = vpop.f32.mrb[0].mxu0
    %v1558 = vadd.f32 %v1442, %v1557
    %1559 = vmatprep.mubr.f32.mxu0 0.0
    %1560 = vmatmul.mubr.f32.gmra.mrb[0].mxu0 %v1469
    %v1561 = vpop.f32.mrb[0].mxu0
    %v1562 = vadd.f32 %v1446, %v1561
    %v1563 = vpop.f32.mrb[0].mxu0
    %v1564 = vadd.f32 %v1448, %v1563
    %1565 = vmatprep.mubr.f32.mxu0 0.0
    %1566 = vmatmul.mubr.f32.gmra.mrb[0].mxu0 %v1472
    %v1567 = vpop.f32.mrb[0].mxu0
    %v1568 = vadd.f32 %v1452, %v1567
    %v1569 = vpop.f32.mrb[0].mxu0
    %v1570 = vadd.f32 %v1454, %v1569
    %1571 = vmatprep.mubr.f32.mxu0 0.0
    %1572 = vmatmul.mubr.f32.gmra.mrb[0].mxu0 %v1475
    %v1573 = vpop.f32.mrb[0].mxu0
    %v1574 = vadd.f32 %v1458, %v1573
    %v1575 = vpop.f32.mrb[0].mxu0
    %v1576 = vadd.f32 %v1460, %v1575
    %1577 = vdwg.mxu0
    %s1578 = scalar_lea.vmem [#allocation6], 352
    %v1579 = vld [vmem:[%s1578] sm:$0xff]
    %v1580 = vld [vmem:[%s1578 + $0x8] sm:$0xff]
    %v1581 = vld [vmem:[%s1578 + $0x10] sm:$0xff]
    %v1582 = vld [vmem:[%s1578 + $0x18] sm:$0xff]
    %v1583 = vld [vmem:[%s1578 + $0x20] sm:$0xff]
    %v1584 = vld [vmem:[%s1578 + $0x28] sm:$0xff]
    %v1585 = vld [vmem:[%s1578 + $0x30] sm:$0xff]
    %v1586 = vld [vmem:[%s1578 + $0x38] sm:$0xff]
    %v1587 = vld [vmem:[%s1578 + $0x40] sm:$0xff]
    %v1588 = vld [vmem:[%s1578 + $0x48] sm:$0xff]
    %v1589 = vld [vmem:[%s1578 + $0x50] sm:$0xff]
    %v1590 = vld [vmem:[%s1578 + $0x58] sm:$0xff]
    %v1591 = vld [vmem:[%s1578 + $0x60] sm:$0xff]
    %v1592 = vld [vmem:[%s1578 + $0x68] sm:$0xff]
    %v1593 = vld [vmem:[%s1578 + $0x70] sm:$0xff]
    %v1594 = vld [vmem:[%s1578 + $0x78] sm:$0xff]
    %v1595 = vld [vmem:[%s1578 + $0x80] sm:$0xff]
    %v1596 = vld [vmem:[%s1578 + $0x88] sm:$0xff]
    %v1597 = vld [vmem:[%s1578 + $0x90] sm:$0xff]
    %v1598 = vld [vmem:[%s1578 + $0x98] sm:$0xff]
    %v1599 = vld [vmem:[%s1578 + $0xa0] sm:$0xf]
    %v1600 = vld [vmem:[%s1578 + $0xa8] sm:$0xf]
    %v1602 = vsel %vm1344, %v702, 0
    %v1605 = vsel %vm1360, %v1599, 0
    %v1608 = vsel %vm1360, %v1600, 0
    %1610 = vmatprep.subr.mxu0 %v1580
    %1611 = vmatpush1.msra.mxu0 %v1579
    %1612 = vmatprep.subr.mxu0 %v1582
    %1613 = vmatpush1.msra.mxu0 %v1581
    %1614 = vmatprep.subr.mxu0 %v1584
    %1615 = vmatpush1.msra.mxu0 %v1583
    %1616 = vmatprep.subr.mxu0 %v1586
    %1617 = vmatpush1.msra.mxu0 %v1585
    %1618 = vmatprep.subr.mxu0 %v1588
    %1619 = vmatpush1.msra.mxu0 %v1587
    %1620 = vmatprep.subr.mxu0 %v1590
    %1621 = vmatpush1.msra.mxu0 %v1589
    %1622 = vmatprep.subr.mxu0 %v1592
    %1623 = vmatpush1.msra.mxu0 %v1591
    %1624 = vmatprep.subr.mxu0 %v1594
    %1625 = vmatpush1.msra.mxu0 %v1593
    %1626 = vmatprep.subr.mxu0 %v1596
    %1627 = vmatpush1.msra.mxu0 %v1595
    %1628 = vmatprep.subr.mxu0 %v1598
    %1629 = vmatpush1.msra.mxu0 %v1597
    %1630 = vmatprep.subr.mxu0 %v1608
    %1631 = vmatpush1.msra.mxu0 %v1605
    %1632 = vmatprep.subr.mxu0 0.0
    %1633 = vmatpush1.msra.mxu0 0.0
    %1634 = vmatprep.subr.mxu0 0.0
    %1635 = vmatpush1.msra.mxu0 0.0
    %1636 = vmatprep.subr.mxu0 0.0
    %1637 = vmatpush1.msra.mxu0 0.0
    %1638 = vmatprep.subr.mxu0 0.0
    %1639 = vmatpush1.msra.mxu0 0.0
    %1640 = vmatprep.subr.mxu0 0.0
    %1641 = vmatpush1.msra.mxu0 0.0
    %1642 = vmatprep.subr.mxu0 0.0
    %1643 = vmatpush1.msra.mxu0 0.0
    %1644 = vmatprep.subr.mxu0 0.0
    %1645 = vmatpush1.msra.mxu0 0.0
    %1646 = vmatprep.subr.mxu0 0.0
    %1647 = vmatpush1.msra.mxu0 0.0
    %1648 = vmatprep.subr.mxu0 0.0
    %1649 = vmatpush1.msra.mxu0 0.0
    %1650 = vmatprep.subr.mxu0 0.0
    %1651 = vmatpush1.msra.mxu0 0.0
    %1652 = vmatprep.subr.mxu0 0.0
    %1653 = vmatpush1.msra.mxu0 0.0
    %1654 = vmatprep.subr.mxu0 0.0
    %1655 = vmatpush1.msra.mxu0 0.0
    %1656 = vmatprep.subr.mxu0 0.0
    %1657 = vmatpush1.msra.mxu0 0.0
    %1658 = vmatprep.subr.mxu0 0.0
    %1659 = vmatpush1.msra.mxu0 0.0
    %1660 = vmatprep.subr.mxu0 0.0
    %1661 = vmatpush1.msra.mxu0 0.0
    %1662 = vmatprep.subr.mxu0 0.0
    %1663 = vmatpush1.msra.mxu0 0.0
    %1664 = vmatprep.subr.mxu0 0.0
    %1665 = vmatpush1.msra.mxu0 0.0
    %1666 = vmatprep.subr.mxu0 0.0
    %1667 = vmatpush1.msra.mxu0 0.0
    %1668 = vmatprep.subr.mxu0 0.0
    %1669 = vmatpush1.msra.mxu0 0.0
    %1670 = vmatprep.subr.mxu0 0.0
    %1671 = vmatpush1.msra.mxu0 0.0
    %1672 = vmatprep.subr.mxu0 0.0
    %1673 = vmatpush1.msra.mxu0 0.0
    %1674 = vmatprep.mubr.f32.mxu0 0.0
    %1675 = vmatmul.mubr.f32.gmra.mrb[0].mxu0 %v1466
    %v1676 = vpop.f32.mrb[0].mxu0
    %v1677 = vadd.f32 0.0, %v1676
    %v1678 = vpop.f32.mrb[0].mxu0
    %v1679 = vadd.f32 0.0, %v1678
    %1680 = vmatprep.mubr.f32.mxu0 0.0
    %1681 = vmatmul.mubr.f32.gmra.mrb[0].mxu0 %v1469
    %v1682 = vpop.f32.mrb[0].mxu0
    %v1683 = vadd.f32 0.0, %v1682
    %v1684 = vpop.f32.mrb[0].mxu0
    %v1685 = vadd.f32 0.0, %v1684
    %1686 = vmatprep.mubr.f32.mxu0 0.0
    %1687 = vmatmul.mubr.f32.gmra.mrb[0].mxu0 %v1472
    %v1688 = vpop.f32.mrb[0].mxu0
    %v1689 = vadd.f32 0.0, %v1688
    %v1690 = vpop.f32.mrb[0].mxu0
    %v1691 = vadd.f32 0.0, %v1690
    %1692 = vmatprep.mubr.f32.mxu0 0.0
    %1693 = vmatmul.mubr.f32.gmra.mrb[0].mxu0 %v1475
    %v1694 = vpop.f32.mrb[0].mxu0
    %v1695 = vadd.f32 0.0, %v1694
    %v1696 = vpop.f32.mrb[0].mxu0
    %v1697 = vadd.f32 0.0, %v1696
    %1698 = vmatprep.mubr.f32.mxu0 0.0
    %1699 = vmatmul.mubr.f32.gmra.mrb[0].mxu0 %v1602
    %v1700 = vpop.f32.mrb[0].mxu0
    %v1701 = vadd.f32 0.0, %v1700
    %v1702 = vpop.f32.mrb[0].mxu0
    %v1703 = vadd.f32 0.0, %v1702
    %1704 = vdwg.mxu0
    %v1705 = vadd.f32 %v1550, %v1677
    %v1706 = vadd.f32 %v1552, %v1679
    %v1707 = vadd.f32 %v1556, %v1683
    %v1708 = vadd.f32 %v1558, %v1685
    %v1709 = vadd.f32 %v1562, %v1689
    %v1710 = vadd.f32 %v1564, %v1691
    %v1711 = vadd.f32 %v1568, %v1695
    %v1712 = vadd.f32 %v1570, %v1697
    %v1713 = vadd.f32 %v1574, %v1701
    %v1714 = vadd.f32 %v1576, %v1703
    %s1715 = scalar_lea.vmem [#allocation6], 528
    %v1716 = vld [vmem:[%s1715] sm:$0xff]
    %v1717 = vld [vmem:[%s1715 + $0x8] sm:$0xff]
    %v1718 = vld [vmem:[%s1715 + $0x10] sm:$0xff]
    %v1719 = vld [vmem:[%s1715 + $0x18] sm:$0xff]
    %v1720 = vld [vmem:[%s1715 + $0x20] sm:$0xff]
    %v1721 = vld [vmem:[%s1715 + $0x28] sm:$0xff]
    %v1722 = vld [vmem:[%s1715 + $0x30] sm:$0xff]
    %v1723 = vld [vmem:[%s1715 + $0x38] sm:$0xff]
    %v1724 = vld [vmem:[%s1715 + $0x40] sm:$0xff]
    %v1725 = vld [vmem:[%s1715 + $0x48] sm:$0xff]
    %v1726 = vld [vmem:[%s1715 + $0x50] sm:$0xff]
    %v1727 = vld [vmem:[%s1715 + $0x58] sm:$0xff]
    %v1728 = vld [vmem:[%s1715 + $0x60] sm:$0xff]
    %v1729 = vld [vmem:[%s1715 + $0x68] sm:$0xff]
    %v1730 = vld [vmem:[%s1715 + $0x70] sm:$0xff]
    %v1731 = vld [vmem:[%s1715 + $0x78] sm:$0xff]
    %v1732 = vld [vmem:[%s1715 + $0x80] sm:$0xff]
    %v1733 = vld [vmem:[%s1715 + $0x88] sm:$0xff]
    %v1734 = vld [vmem:[%s1715 + $0x90] sm:$0xff]
    %v1735 = vld [vmem:[%s1715 + $0x98] sm:$0xff]
    %v1736 = vld [vmem:[%s1715 + $0xa0] sm:$0xf]
    %v1737 = vld [vmem:[%s1715 + $0xa8] sm:$0xf]
    %v1739 = vsel %vm1344, %v1297, 0
    %v1742 = vsel %vm1360, %v1736, 0
    %v1745 = vsel %vm1360, %v1737, 0
    %1747 = vmatprep.subr.mxu0 %v1717
    %1748 = vmatpush1.msra.mxu0 %v1716
    %1749 = vmatprep.subr.mxu0 %v1719
    %1750 = vmatpush1.msra.mxu0 %v1718
    %1751 = vmatprep.subr.mxu0 %v1721
    %1752 = vmatpush1.msra.mxu0 %v1720
    %1753 = vmatprep.subr.mxu0 %v1723
    %1754 = vmatpush1.msra.mxu0 %v1722
    %1755 = vmatprep.subr.mxu0 %v1725
    %1756 = vmatpush1.msra.mxu0 %v1724
    %1757 = vmatprep.subr.mxu0 %v1727
    %1758 = vmatpush1.msra.mxu0 %v1726
    %1759 = vmatprep.subr.mxu0 %v1729
    %1760 = vmatpush1.msra.mxu0 %v1728
    %1761 = vmatprep.subr.mxu0 %v1731
    %1762 = vmatpush1.msra.mxu0 %v1730
    %1763 = vmatprep.subr.mxu0 %v1733
    %1764 = vmatpush1.msra.mxu0 %v1732
    %1765 = vmatprep.subr.mxu0 %v1735
    %1766 = vmatpush1.msra.mxu0 %v1734
    %1767 = vmatprep.subr.mxu0 %v1745
    %1768 = vmatpush1.msra.mxu0 %v1742
    %1769 = vmatprep.subr.mxu0 0.0
    %1770 = vmatpush1.msra.mxu0 0.0
    %1771 = vmatprep.subr.mxu0 0.0
    %1772 = vmatpush1.msra.mxu0 0.0
    %1773 = vmatprep.subr.mxu0 0.0
    %1774 = vmatpush1.msra.mxu0 0.0
    %1775 = vmatprep.subr.mxu0 0.0
    %1776 = vmatpush1.msra.mxu0 0.0
    %1777 = vmatprep.subr.mxu0 0.0
    %1778 = vmatpush1.msra.mxu0 0.0
    %1779 = vmatprep.subr.mxu0 0.0
    %1780 = vmatpush1.msra.mxu0 0.0
    %1781 = vmatprep.subr.mxu0 0.0
    %1782 = vmatpush1.msra.mxu0 0.0
    %1783 = vmatprep.subr.mxu0 0.0
    %1784 = vmatpush1.msra.mxu0 0.0
    %1785 = vmatprep.subr.mxu0 0.0
    %1786 = vmatpush1.msra.mxu0 0.0
    %1787 = vmatprep.subr.mxu0 0.0
    %1788 = vmatpush1.msra.mxu0 0.0
    %1789 = vmatprep.subr.mxu0 0.0
    %1790 = vmatpush1.msra.mxu0 0.0
    %1791 = vmatprep.subr.mxu0 0.0
    %1792 = vmatpush1.msra.mxu0 0.0
    %1793 = vmatprep.subr.mxu0 0.0
    %1794 = vmatpush1.msra.mxu0 0.0
    %1795 = vmatprep.subr.mxu0 0.0
    %1796 = vmatpush1.msra.mxu0 0.0
    %1797 = vmatprep.subr.mxu0 0.0
    %1798 = vmatpush1.msra.mxu0 0.0
    %1799 = vmatprep.subr.mxu0 0.0
    %1800 = vmatpush1.msra.mxu0 0.0
    %1801 = vmatprep.subr.mxu0 0.0
    %1802 = vmatpush1.msra.mxu0 0.0
    %1803 = vmatprep.subr.mxu0 0.0
    %1804 = vmatpush1.msra.mxu0 0.0
    %1805 = vmatprep.subr.mxu0 0.0
    %1806 = vmatpush1.msra.mxu0 0.0
    %1807 = vmatprep.subr.mxu0 0.0
    %1808 = vmatpush1.msra.mxu0 0.0
    %1809 = vmatprep.subr.mxu0 0.0
    %1810 = vmatpush1.msra.mxu0 0.0
    %1811 = vmatprep.mubr.f32.mxu0 0.0
    %1812 = vmatmul.mubr.f32.gmra.mrb[0].mxu0 %v1349
    %v1813 = vpop.f32.mrb[0].mxu0
    %v1814 = vadd.f32 0.0, %v1813
    %v1815 = vpop.f32.mrb[0].mxu0
    %v1816 = vadd.f32 0.0, %v1815
    %1817 = vmatprep.mubr.f32.mxu0 0.0
    %1818 = vmatmul.mubr.f32.gmra.mrb[0].mxu0 %v1352
    %v1819 = vpop.f32.mrb[0].mxu0
    %v1820 = vadd.f32 0.0, %v1819
    %v1821 = vpop.f32.mrb[0].mxu0
    %v1822 = vadd.f32 0.0, %v1821
    %1823 = vmatprep.mubr.f32.mxu0 0.0
    %1824 = vmatmul.mubr.f32.gmra.mrb[0].mxu0 %v1355
    %v1825 = vpop.f32.mrb[0].mxu0
    %v1826 = vadd.f32 0.0, %v1825
    %v1827 = vpop.f32.mrb[0].mxu0
    %v1828 = vadd.f32 0.0, %v1827
    %1829 = vmatprep.mubr.f32.mxu0 0.0
    %1830 = vmatmul.mubr.f32.gmra.mrb[0].mxu0 %v1358
    %v1831 = vpop.f32.mrb[0].mxu0
    %v1832 = vadd.f32 0.0, %v1831
    %v1833 = vpop.f32.mrb[0].mxu0
    %v1834 = vadd.f32 0.0, %v1833
    %1835 = vmatprep.mubr.f32.mxu0 0.0
    %1836 = vmatmul.mubr.f32.gmra.mrb[0].mxu0 %v1739
    %v1837 = vpop.f32.mrb[0].mxu0
    %v1838 = vadd.f32 0.0, %v1837
    %v1839 = vpop.f32.mrb[0].mxu0
    %v1840 = vadd.f32 0.0, %v1839
    %1841 = vdwg.mxu0
    %v1842 = vadd.f32 %v1705, %v1814
    %v1843 = vadd.f32 %v1706, %v1816
    %v1844 = vadd.f32 %v1707, %v1820
    %v1845 = vadd.f32 %v1708, %v1822
    %v1846 = vadd.f32 %v1709, %v1826
    %v1847 = vadd.f32 %v1710, %v1828
    %v1848 = vadd.f32 %v1711, %v1832
    %v1849 = vadd.f32 %v1712, %v1834
    %v1850 = vadd.f32 %v1713, %v1838
    %v1851 = vadd.f32 %v1714, %v1840
    %s1852 = scalar_lea.vmem [#allocation6], 704
    %v1853 = vld [vmem:[%s1852] sm:$0xff]
    %v1854 = vld [vmem:[%s1852 + $0x8] sm:$0xff]
    %v1855 = vld [vmem:[%s1852 + $0x10] sm:$0xff]
    %v1856 = vld [vmem:[%s1852 + $0x18] sm:$0xff]
    %v1857 = vld [vmem:[%s1852 + $0x20] sm:$0xff]
    %v1858 = vld [vmem:[%s1852 + $0x28] sm:$0xff]
    %v1859 = vld [vmem:[%s1852 + $0x30] sm:$0xff]
    %v1860 = vld [vmem:[%s1852 + $0x38] sm:$0xff]
    %v1861 = vld [vmem:[%s1852 + $0x40] sm:$0xff]
    %v1862 = vld [vmem:[%s1852 + $0x48] sm:$0xff]
    %v1863 = vld [vmem:[%s1852 + $0x50] sm:$0xff]
    %v1864 = vld [vmem:[%s1852 + $0x58] sm:$0xff]
    %v1865 = vld [vmem:[%s1852 + $0x60] sm:$0xff]
    %v1866 = vld [vmem:[%s1852 + $0x68] sm:$0xff]
    %v1867 = vld [vmem:[%s1852 + $0x70] sm:$0xff]
    %v1868 = vld [vmem:[%s1852 + $0x78] sm:$0xff]
    %v1869 = vld [vmem:[%s1852 + $0x80] sm:$0xff]
    %v1870 = vld [vmem:[%s1852 + $0x88] sm:$0xff]
    %v1871 = vld [vmem:[%s1852 + $0x90] sm:$0xff]
    %v1872 = vld [vmem:[%s1852 + $0x98] sm:$0xff]
    %v1873 = vld [vmem:[%s1852 + $0xa0] sm:$0xf]
    %v1874 = vld [vmem:[%s1852 + $0xa8] sm:$0xf]
    %v1876 = vsel %vm1344, %v703, 0
    %v1879 = vsel %vm1360, %v1873, 0
    %v1882 = vsel %vm1360, %v1874, 0
    %1884 = vmatprep.subr.mxu0 %v1854
    %1885 = vmatpush1.msra.mxu0 %v1853
    %1886 = vmatprep.subr.mxu0 %v1856
    %1887 = vmatpush1.msra.mxu0 %v1855
    %1888 = vmatprep.subr.mxu0 %v1858
    %1889 = vmatpush1.msra.mxu0 %v1857
    %1890 = vmatprep.subr.mxu0 %v1860
    %1891 = vmatpush1.msra.mxu0 %v1859
    %1892 = vmatprep.subr.mxu0 %v1862
    %1893 = vmatpush1.msra.mxu0 %v1861
    %1894 = vmatprep.subr.mxu0 %v1864
    %1895 = vmatpush1.msra.mxu0 %v1863
    %1896 = vmatprep.subr.mxu0 %v1866
    %1897 = vmatpush1.msra.mxu0 %v1865
    %1898 = vmatprep.subr.mxu0 %v1868
    %1899 = vmatpush1.msra.mxu0 %v1867
    %1900 = vmatprep.subr.mxu0 %v1870
    %1901 = vmatpush1.msra.mxu0 %v1869
    %1902 = vmatprep.subr.mxu0 %v1872
    %1903 = vmatpush1.msra.mxu0 %v1871
    %1904 = vmatprep.subr.mxu0 %v1882
    %1905 = vmatpush1.msra.mxu0 %v1879
    %1906 = vmatprep.subr.mxu0 0.0
    %1907 = vmatpush1.msra.mxu0 0.0
    %1908 = vmatprep.subr.mxu0 0.0
    %1909 = vmatpush1.msra.mxu0 0.0
    %1910 = vmatprep.subr.mxu0 0.0
    %1911 = vmatpush1.msra.mxu0 0.0
    %1912 = vmatprep.subr.mxu0 0.0
    %1913 = vmatpush1.msra.mxu0 0.0
    %1914 = vmatprep.subr.mxu0 0.0
    %1915 = vmatpush1.msra.mxu0 0.0
    %1916 = vmatprep.subr.mxu0 0.0
    %1917 = vmatpush1.msra.mxu0 0.0
    %1918 = vmatprep.subr.mxu0 0.0
    %1919 = vmatpush1.msra.mxu0 0.0
    %1920 = vmatprep.subr.mxu0 0.0
    %1921 = vmatpush1.msra.mxu0 0.0
    %1922 = vmatprep.subr.mxu0 0.0
    %1923 = vmatpush1.msra.mxu0 0.0
    %1924 = vmatprep.subr.mxu0 0.0
    %1925 = vmatpush1.msra.mxu0 0.0
    %1926 = vmatprep.subr.mxu0 0.0
    %1927 = vmatpush1.msra.mxu0 0.0
    %1928 = vmatprep.subr.mxu0 0.0
    %1929 = vmatpush1.msra.mxu0 0.0
    %1930 = vmatprep.subr.mxu0 0.0
    %1931 = vmatpush1.msra.mxu0 0.0
    %1932 = vmatprep.subr.mxu0 0.0
    %1933 = vmatpush1.msra.mxu0 0.0
    %1934 = vmatprep.subr.mxu0 0.0
    %1935 = vmatpush1.msra.mxu0 0.0
    %1936 = vmatprep.subr.mxu0 0.0
    %1937 = vmatpush1.msra.mxu0 0.0
    %1938 = vmatprep.subr.mxu0 0.0
    %1939 = vmatpush1.msra.mxu0 0.0
    %1940 = vmatprep.subr.mxu0 0.0
    %1941 = vmatpush1.msra.mxu0 0.0
    %1942 = vmatprep.subr.mxu0 0.0
    %1943 = vmatpush1.msra.mxu0 0.0
    %1944 = vmatprep.subr.mxu0 0.0
    %1945 = vmatpush1.msra.mxu0 0.0
    %1946 = vmatprep.subr.mxu0 0.0
    %1947 = vmatpush1.msra.mxu0 0.0
    %1948 = vmatprep.mubr.f32.mxu0 0.0
    %1949 = vmatmul.mubr.f32.gmra.mrb[0].mxu0 %v1469
    %v1950 = vpop.f32.mrb[0].mxu0
    %v1951 = vadd.f32 0.0, %v1950
    %v1952 = vpop.f32.mrb[0].mxu0
    %v1953 = vadd.f32 0.0, %v1952
    %1954 = vmatprep.mubr.f32.mxu0 0.0
    %1955 = vmatmul.mubr.f32.gmra.mrb[0].mxu0 %v1472
    %v1956 = vpop.f32.mrb[0].mxu0
    %v1957 = vadd.f32 0.0, %v1956
    %v1958 = vpop.f32.mrb[0].mxu0
    %v1959 = vadd.f32 0.0, %v1958
    %1960 = vmatprep.mubr.f32.mxu0 0.0
    %1961 = vmatmul.mubr.f32.gmra.mrb[0].mxu0 %v1475
    %v1962 = vpop.f32.mrb[0].mxu0
    %v1963 = vadd.f32 0.0, %v1962
    %v1964 = vpop.f32.mrb[0].mxu0
    %v1965 = vadd.f32 0.0, %v1964
    %1966 = vmatprep.mubr.f32.mxu0 0.0
    %1967 = vmatmul.mubr.f32.gmra.mrb[0].mxu0 %v1602
    %v1968 = vpop.f32.mrb[0].mxu0
    %v1969 = vadd.f32 0.0, %v1968
    %v1970 = vpop.f32.mrb[0].mxu0
    %v1971 = vadd.f32 0.0, %v1970
    %1972 = vmatprep.mubr.f32.mxu0 0.0
    %1973 = vmatmul.mubr.f32.gmra.mrb[0].mxu0 %v1876
    %v1974 = vpop.f32.mrb[0].mxu0
    %v1975 = vadd.f32 0.0, %v1974
    %v1976 = vpop.f32.mrb[0].mxu0
    %v1977 = vadd.f32 0.0, %v1976
    %1978 = vdwg.mxu0
    %v1979 = vadd.f32 %v1842, %v1951
    %v1980 = vadd.f32 %v1843, %v1953
    %v1981 = vadd.f32 %v1844, %v1957
    %v1982 = vadd.f32 %v1845, %v1959
    %v1983 = vadd.f32 %v1846, %v1963
    %v1984 = vadd.f32 %v1847, %v1965
    %v1985 = vadd.f32 %v1848, %v1969
    %v1986 = vadd.f32 %v1849, %v1971
    %v1987 = vadd.f32 %v1850, %v1975
    %v1988 = vadd.f32 %v1851, %v1977
    %1989 = vmatprep.subr.mxu0 %v1323
    %1990 = vmatpush1.msra.mxu0 %v1322
    %1991 = vmatprep.subr.mxu0 %v1325
    %1992 = vmatpush1.msra.mxu0 %v1324
    %1993 = vmatprep.subr.mxu0 %v1327
    %1994 = vmatpush1.msra.mxu0 %v1326
    %1995 = vmatprep.subr.mxu0 %v1329
    %1996 = vmatpush1.msra.mxu0 %v1328
    %1997 = vmatprep.subr.mxu0 %v1331
    %1998 = vmatpush1.msra.mxu0 %v1330
    %1999 = vmatprep.subr.mxu0 %v1333
    %2000 = vmatpush1.msra.mxu0 %v1332
    %2001 = vmatprep.subr.mxu0 %v1335
    %2002 = vmatpush1.msra.mxu0 %v1334
    %2003 = vmatprep.subr.mxu0 %v1337
    %2004 = vmatpush1.msra.mxu0 %v1336
    %2005 = vmatprep.subr.mxu0 %v1339
    %2006 = vmatpush1.msra.mxu0 %v1338
    %2007 = vmatprep.subr.mxu0 %v1341
    %2008 = vmatpush1.msra.mxu0 %v1340
    %2009 = vmatprep.subr.mxu0 %v1365
    %2010 = vmatpush1.msra.mxu0 %v1362
    %2011 = vmatprep.subr.mxu0 0.0
    %2012 = vmatpush1.msra.mxu0 0.0
    %2013 = vmatprep.subr.mxu0 0.0
    %2014 = vmatpush1.msra.mxu0 0.0
    %2015 = vmatprep.subr.mxu0 0.0
    %2016 = vmatpush1.msra.mxu0 0.0
    %2017 = vmatprep.subr.mxu0 0.0
    %2018 = vmatpush1.msra.mxu0 0.0
    %2019 = vmatprep.subr.mxu0 0.0
    %2020 = vmatpush1.msra.mxu0 0.0
    %2021 = vmatprep.subr.mxu0 0.0
    %2022 = vmatpush1.msra.mxu0 0.0
    %2023 = vmatprep.subr.mxu0 0.0
    %2024 = vmatpush1.msra.mxu0 0.0
    %2025 = vmatprep.subr.mxu0 0.0
    %2026 = vmatpush1.msra.mxu0 0.0
    %2027 = vmatprep.subr.mxu0 0.0
    %2028 = vmatpush1.msra.mxu0 0.0
    %2029 = vmatprep.subr.mxu0 0.0
    %2030 = vmatpush1.msra.mxu0 0.0
    %2031 = vmatprep.subr.mxu0 0.0
    %2032 = vmatpush1.msra.mxu0 0.0
    %2033 = vmatprep.subr.mxu0 0.0
    %2034 = vmatpush1.msra.mxu0 0.0
    %2035 = vmatprep.subr.mxu0 0.0
    %2036 = vmatpush1.msra.mxu0 0.0
    %2037 = vmatprep.subr.mxu0 0.0
    %2038 = vmatpush1.msra.mxu0 0.0
    %2039 = vmatprep.subr.mxu0 0.0
    %2040 = vmatpush1.msra.mxu0 0.0
    %2041 = vmatprep.subr.mxu0 0.0
    %2042 = vmatpush1.msra.mxu0 0.0
    %2043 = vmatprep.subr.mxu0 0.0
    %2044 = vmatpush1.msra.mxu0 0.0
    %2045 = vmatprep.subr.mxu0 0.0
    %2046 = vmatpush1.msra.mxu0 0.0
    %2047 = vmatprep.subr.mxu0 0.0
    %2048 = vmatpush1.msra.mxu0 0.0
    %2049 = vmatprep.subr.mxu0 0.0
    %2050 = vmatpush1.msra.mxu0 0.0
    %2051 = vmatprep.subr.mxu0 0.0
    %2052 = vmatpush1.msra.mxu0 0.0
    %2053 = vmatprep.mubr.f32.mxu0 0.0
    %2054 = vmatmul.mubr.f32.gmra.mrb[0].mxu0 %v1466
    %v2055 = vpop.f32.mrb[0].mxu0
    %v2056 = vadd.f32 0.0, %v2055
    %v2057 = vpop.f32.mrb[0].mxu0
    %v2058 = vadd.f32 0.0, %v2057
    %2059 = vmatprep.mubr.f32.mxu0 0.0
    %2060 = vmatmul.mubr.f32.gmra.mrb[0].mxu0 %v1469
    %v2061 = vpop.f32.mrb[0].mxu0
    %v2062 = vadd.f32 0.0, %v2061
    %v2063 = vpop.f32.mrb[0].mxu0
    %v2064 = vadd.f32 0.0, %v2063
    %2065 = vmatprep.mubr.f32.mxu0 0.0
    %2066 = vmatmul.mubr.f32.gmra.mrb[0].mxu0 %v1472
    %v2067 = vpop.f32.mrb[0].mxu0
    %v2068 = vadd.f32 0.0, %v2067
    %v2069 = vpop.f32.mrb[0].mxu0
    %v2070 = vadd.f32 0.0, %v2069
    %2071 = vmatprep.mubr.f32.mxu0 0.0
    %2072 = vmatmul.mubr.f32.gmra.mrb[0].mxu0 %v1475
    %v2073 = vpop.f32.mrb[0].mxu0
    %v2074 = vadd.f32 0.0, %v2073
    %v2075 = vpop.f32.mrb[0].mxu0
    %v2076 = vadd.f32 0.0, %v2075
    %2077 = vmatprep.mubr.f32.mxu0 0.0
    %2078 = vmatmul.mubr.f32.gmra.mrb[0].mxu0 %v1602
    %v2079 = vpop.f32.mrb[0].mxu0
    %v2080 = vadd.f32 0.0, %v2079
    %v2081 = vpop.f32.mrb[0].mxu0
    %v2082 = vadd.f32 0.0, %v2081
    %2083 = vdwg.mxu0
    %2084 = vmatprep.subr.mxu0 %v1300
    %2085 = vmatpush1.msra.mxu0 %v1299
    %2086 = vmatprep.subr.mxu0 %v1302
    %2087 = vmatpush1.msra.mxu0 %v1301
    %2088 = vmatprep.subr.mxu0 %v1304
    %2089 = vmatpush1.msra.mxu0 %v1303
    %2090 = vmatprep.subr.mxu0 %v1306
    %2091 = vmatpush1.msra.mxu0 %v1305
    %2092 = vmatprep.subr.mxu0 %v1308
    %2093 = vmatpush1.msra.mxu0 %v1307
    %2094 = vmatprep.subr.mxu0 %v1310
    %2095 = vmatpush1.msra.mxu0 %v1309
    %2096 = vmatprep.subr.mxu0 %v1312
    %2097 = vmatpush1.msra.mxu0 %v1311
    %2098 = vmatprep.subr.mxu0 %v1314
    %2099 = vmatpush1.msra.mxu0 %v1313
    %2100 = vmatprep.subr.mxu0 %v1316
    %2101 = vmatpush1.msra.mxu0 %v1315
    %2102 = vmatprep.subr.mxu0 %v1318
    %2103 = vmatpush1.msra.mxu0 %v1317
    %2104 = vmatprep.subr.mxu0 %v1481
    %2105 = vmatpush1.msra.mxu0 %v1478
    %2106 = vmatprep.subr.mxu0 0.0
    %2107 = vmatpush1.msra.mxu0 0.0
    %2108 = vmatprep.subr.mxu0 0.0
    %2109 = vmatpush1.msra.mxu0 0.0
    %2110 = vmatprep.subr.mxu0 0.0
    %2111 = vmatpush1.msra.mxu0 0.0
    %2112 = vmatprep.subr.mxu0 0.0
    %2113 = vmatpush1.msra.mxu0 0.0
    %2114 = vmatprep.subr.mxu0 0.0
    %2115 = vmatpush1.msra.mxu0 0.0
    %2116 = vmatprep.subr.mxu0 0.0
    %2117 = vmatpush1.msra.mxu0 0.0
    %2118 = vmatprep.subr.mxu0 0.0
    %2119 = vmatpush1.msra.mxu0 0.0
    %2120 = vmatprep.subr.mxu0 0.0
    %2121 = vmatpush1.msra.mxu0 0.0
    %2122 = vmatprep.subr.mxu0 0.0
    %2123 = vmatpush1.msra.mxu0 0.0
    %2124 = vmatprep.subr.mxu0 0.0
    %2125 = vmatpush1.msra.mxu0 0.0
    %2126 = vmatprep.subr.mxu0 0.0
    %2127 = vmatpush1.msra.mxu0 0.0
    %2128 = vmatprep.subr.mxu0 0.0
    %2129 = vmatpush1.msra.mxu0 0.0
    %2130 = vmatprep.subr.mxu0 0.0
    %2131 = vmatpush1.msra.mxu0 0.0
    %2132 = vmatprep.subr.mxu0 0.0
    %2133 = vmatpush1.msra.mxu0 0.0
    %2134 = vmatprep.subr.mxu0 0.0
    %2135 = vmatpush1.msra.mxu0 0.0
    %2136 = vmatprep.subr.mxu0 0.0
    %2137 = vmatpush1.msra.mxu0 0.0
    %2138 = vmatprep.subr.mxu0 0.0
    %2139 = vmatpush1.msra.mxu0 0.0
    %2140 = vmatprep.subr.mxu0 0.0
    %2141 = vmatpush1.msra.mxu0 0.0
    %2142 = vmatprep.subr.mxu0 0.0
    %2143 = vmatpush1.msra.mxu0 0.0
    %2144 = vmatprep.subr.mxu0 0.0
    %2145 = vmatpush1.msra.mxu0 0.0
    %2146 = vmatprep.subr.mxu0 0.0
    %2147 = vmatpush1.msra.mxu0 0.0
    %2148 = vmatprep.mubr.f32.mxu0 0.0
    %2149 = vmatmul.mubr.f32.gmra.mrb[0].mxu0 %v1346
    %v2150 = vpop.f32.mrb[0].mxu0
    %v2151 = vadd.f32 %v2056, %v2150
    %v2152 = vpop.f32.mrb[0].mxu0
    %v2153 = vadd.f32 %v2058, %v2152
    %2154 = vmatprep.mubr.f32.mxu0 0.0
    %2155 = vmatmul.mubr.f32.gmra.mrb[0].mxu0 %v1349
    %v2156 = vpop.f32.mrb[0].mxu0
    %v2157 = vadd.f32 %v2062, %v2156
    %v2158 = vpop.f32.mrb[0].mxu0
    %v2159 = vadd.f32 %v2064, %v2158
    %2160 = vmatprep.mubr.f32.mxu0 0.0
    %2161 = vmatmul.mubr.f32.gmra.mrb[0].mxu0 %v1352
    %v2162 = vpop.f32.mrb[0].mxu0
    %v2163 = vadd.f32 %v2068, %v2162
    %v2164 = vpop.f32.mrb[0].mxu0
    %v2165 = vadd.f32 %v2070, %v2164
    %2166 = vmatprep.mubr.f32.mxu0 0.0
    %2167 = vmatmul.mubr.f32.gmra.mrb[0].mxu0 %v1355
    %v2168 = vpop.f32.mrb[0].mxu0
    %v2169 = vadd.f32 %v2074, %v2168
    %v2170 = vpop.f32.mrb[0].mxu0
    %v2171 = vadd.f32 %v2076, %v2170
    %2172 = vmatprep.mubr.f32.mxu0 0.0
    %2173 = vmatmul.mubr.f32.gmra.mrb[0].mxu0 %v1358
    %v2174 = vpop.f32.mrb[0].mxu0
    %v2175 = vadd.f32 %v2080, %v2174
    %v2176 = vpop.f32.mrb[0].mxu0
    %v2177 = vadd.f32 %v2082, %v2176
    %2178 = vdwg.mxu0
    %2179 = vmatprep.subr.mxu0 %v1580
    %2180 = vmatpush1.msra.mxu0 %v1579
    %2181 = vmatprep.subr.mxu0 %v1582
    %2182 = vmatpush1.msra.mxu0 %v1581
    %2183 = vmatprep.subr.mxu0 %v1584
    %2184 = vmatpush1.msra.mxu0 %v1583
    %2185 = vmatprep.subr.mxu0 %v1586
    %2186 = vmatpush1.msra.mxu0 %v1585
    %2187 = vmatprep.subr.mxu0 %v1588
    %2188 = vmatpush1.msra.mxu0 %v1587
    %2189 = vmatprep.subr.mxu0 %v1590
    %2190 = vmatpush1.msra.mxu0 %v1589
    %2191 = vmatprep.subr.mxu0 %v1592
    %2192 = vmatpush1.msra.mxu0 %v1591
    %2193 = vmatprep.subr.mxu0 %v1594
    %2194 = vmatpush1.msra.mxu0 %v1593
    %2195 = vmatprep.subr.mxu0 %v1596
    %2196 = vmatpush1.msra.mxu0 %v1595
    %2197 = vmatprep.subr.mxu0 %v1598
    %2198 = vmatpush1.msra.mxu0 %v1597
    %2199 = vmatprep.subr.mxu0 %v1608
    %2200 = vmatpush1.msra.mxu0 %v1605
    %2201 = vmatprep.subr.mxu0 0.0
    %2202 = vmatpush1.msra.mxu0 0.0
    %2203 = vmatprep.subr.mxu0 0.0
    %2204 = vmatpush1.msra.mxu0 0.0
    %2205 = vmatprep.subr.mxu0 0.0
    %2206 = vmatpush1.msra.mxu0 0.0
    %2207 = vmatprep.subr.mxu0 0.0
    %2208 = vmatpush1.msra.mxu0 0.0
    %2209 = vmatprep.subr.mxu0 0.0
    %2210 = vmatpush1.msra.mxu0 0.0
    %2211 = vmatprep.subr.mxu0 0.0
    %2212 = vmatpush1.msra.mxu0 0.0
    %2213 = vmatprep.subr.mxu0 0.0
    %2214 = vmatpush1.msra.mxu0 0.0
    %2215 = vmatprep.subr.mxu0 0.0
    %2216 = vmatpush1.msra.mxu0 0.0
    %2217 = vmatprep.subr.mxu0 0.0
    %2218 = vmatpush1.msra.mxu0 0.0
    %2219 = vmatprep.subr.mxu0 0.0
    %2220 = vmatpush1.msra.mxu0 0.0
    %2221 = vmatprep.subr.mxu0 0.0
    %2222 = vmatpush1.msra.mxu0 0.0
    %2223 = vmatprep.subr.mxu0 0.0
    %2224 = vmatpush1.msra.mxu0 0.0
    %2225 = vmatprep.subr.mxu0 0.0
    %2226 = vmatpush1.msra.mxu0 0.0
    %2227 = vmatprep.subr.mxu0 0.0
    %2228 = vmatpush1.msra.mxu0 0.0
    %2229 = vmatprep.subr.mxu0 0.0
    %2230 = vmatpush1.msra.mxu0 0.0
    %2231 = vmatprep.subr.mxu0 0.0
    %2232 = vmatpush1.msra.mxu0 0.0
    %2233 = vmatprep.subr.mxu0 0.0
    %2234 = vmatpush1.msra.mxu0 0.0
    %2235 = vmatprep.subr.mxu0 0.0
    %2236 = vmatpush1.msra.mxu0 0.0
    %2237 = vmatprep.subr.mxu0 0.0
    %2238 = vmatpush1.msra.mxu0 0.0
    %2239 = vmatprep.subr.mxu0 0.0
    %2240 = vmatpush1.msra.mxu0 0.0
    %2241 = vmatprep.subr.mxu0 0.0
    %2242 = vmatpush1.msra.mxu0 0.0
    %2243 = vmatprep.mubr.f32.mxu0 0.0
    %2244 = vmatmul.mubr.f32.gmra.mrb[0].mxu0 %v1349
    %v2245 = vpop.f32.mrb[0].mxu0
    %v2246 = vadd.f32 0.0, %v2245
    %v2247 = vpop.f32.mrb[0].mxu0
    %v2248 = vadd.f32 0.0, %v2247
    %2249 = vmatprep.mubr.f32.mxu0 0.0
    %2250 = vmatmul.mubr.f32.gmra.mrb[0].mxu0 %v1352
    %v2251 = vpop.f32.mrb[0].mxu0
    %v2252 = vadd.f32 0.0, %v2251
    %v2253 = vpop.f32.mrb[0].mxu0
    %v2254 = vadd.f32 0.0, %v2253
    %2255 = vmatprep.mubr.f32.mxu0 0.0
    %2256 = vmatmul.mubr.f32.gmra.mrb[0].mxu0 %v1355
    %v2257 = vpop.f32.mrb[0].mxu0
    %v2258 = vadd.f32 0.0, %v2257
    %v2259 = vpop.f32.mrb[0].mxu0
    %v2260 = vadd.f32 0.0, %v2259
    %2261 = vmatprep.mubr.f32.mxu0 0.0
    %2262 = vmatmul.mubr.f32.gmra.mrb[0].mxu0 %v1358
    %v2263 = vpop.f32.mrb[0].mxu0
    %v2264 = vadd.f32 0.0, %v2263
    %v2265 = vpop.f32.mrb[0].mxu0
    %v2266 = vadd.f32 0.0, %v2265
    %2267 = vmatprep.mubr.f32.mxu0 0.0
    %2268 = vmatmul.mubr.f32.gmra.mrb[0].mxu0 %v1739
    %v2269 = vpop.f32.mrb[0].mxu0
    %v2270 = vadd.f32 0.0, %v2269
    %v2271 = vpop.f32.mrb[0].mxu0
    %v2272 = vadd.f32 0.0, %v2271
    %2273 = vdwg.mxu0
    %v2274 = vadd.f32 %v2151, %v2246
    %v2275 = vadd.f32 %v2153, %v2248
    %v2276 = vadd.f32 %v2157, %v2252
    %v2277 = vadd.f32 %v2159, %v2254
    %v2278 = vadd.f32 %v2163, %v2258
    %v2279 = vadd.f32 %v2165, %v2260
    %v2280 = vadd.f32 %v2169, %v2264
    %v2281 = vadd.f32 %v2171, %v2266
    %v2282 = vadd.f32 %v2175, %v2270
    %v2283 = vadd.f32 %v2177, %v2272
    %2284 = vmatprep.subr.mxu0 %v1717
    %2285 = vmatpush1.msra.mxu0 %v1716
    %2286 = vmatprep.subr.mxu0 %v1719
    %2287 = vmatpush1.msra.mxu0 %v1718
    %2288 = vmatprep.subr.mxu0 %v1721
    %2289 = vmatpush1.msra.mxu0 %v1720
    %2290 = vmatprep.subr.mxu0 %v1723
    %2291 = vmatpush1.msra.mxu0 %v1722
    %2292 = vmatprep.subr.mxu0 %v1725
    %2293 = vmatpush1.msra.mxu0 %v1724
    %2294 = vmatprep.subr.mxu0 %v1727
    %2295 = vmatpush1.msra.mxu0 %v1726
    %2296 = vmatprep.subr.mxu0 %v1729
    %2297 = vmatpush1.msra.mxu0 %v1728
    %2298 = vmatprep.subr.mxu0 %v1731
    %2299 = vmatpush1.msra.mxu0 %v1730
    %2300 = vmatprep.subr.mxu0 %v1733
    %2301 = vmatpush1.msra.mxu0 %v1732
    %2302 = vmatprep.subr.mxu0 %v1735
    %2303 = vmatpush1.msra.mxu0 %v1734
    %2304 = vmatprep.subr.mxu0 %v1745
    %2305 = vmatpush1.msra.mxu0 %v1742
    %2306 = vmatprep.subr.mxu0 0.0
    %2307 = vmatpush1.msra.mxu0 0.0
    %2308 = vmatprep.subr.mxu0 0.0
    %2309 = vmatpush1.msra.mxu0 0.0
    %2310 = vmatprep.subr.mxu0 0.0
    %2311 = vmatpush1.msra.mxu0 0.0
    %2312 = vmatprep.subr.mxu0 0.0
    %2313 = vmatpush1.msra.mxu0 0.0
    %2314 = vmatprep.subr.mxu0 0.0
    %2315 = vmatpush1.msra.mxu0 0.0
    %2316 = vmatprep.subr.mxu0 0.0
    %2317 = vmatpush1.msra.mxu0 0.0
    %2318 = vmatprep.subr.mxu0 0.0
    %2319 = vmatpush1.msra.mxu0 0.0
    %2320 = vmatprep.subr.mxu0 0.0
    %2321 = vmatpush1.msra.mxu0 0.0
    %2322 = vmatprep.subr.mxu0 0.0
    %2323 = vmatpush1.msra.mxu0 0.0
    %2324 = vmatprep.subr.mxu0 0.0
    %2325 = vmatpush1.msra.mxu0 0.0
    %2326 = vmatprep.subr.mxu0 0.0
    %2327 = vmatpush1.msra.mxu0 0.0
    %2328 = vmatprep.subr.mxu0 0.0
    %2329 = vmatpush1.msra.mxu0 0.0
    %2330 = vmatprep.subr.mxu0 0.0
    %2331 = vmatpush1.msra.mxu0 0.0
    %2332 = vmatprep.subr.mxu0 0.0
    %2333 = vmatpush1.msra.mxu0 0.0
    %2334 = vmatprep.subr.mxu0 0.0
    %2335 = vmatpush1.msra.mxu0 0.0
    %2336 = vmatprep.subr.mxu0 0.0
    %2337 = vmatpush1.msra.mxu0 0.0
    %2338 = vmatprep.subr.mxu0 0.0
    %2339 = vmatpush1.msra.mxu0 0.0
    %2340 = vmatprep.subr.mxu0 0.0
    %2341 = vmatpush1.msra.mxu0 0.0
    %2342 = vmatprep.subr.mxu0 0.0
    %2343 = vmatpush1.msra.mxu0 0.0
    %2344 = vmatprep.subr.mxu0 0.0
    %2345 = vmatpush1.msra.mxu0 0.0
    %2346 = vmatprep.subr.mxu0 0.0
    %2347 = vmatpush1.msra.mxu0 0.0
    %2348 = vmatprep.mubr.f32.mxu0 0.0
    %2349 = vmatmul.mubr.f32.gmra.mrb[0].mxu0 %v1469
    %v2350 = vpop.f32.mrb[0].mxu0
    %v2351 = vadd.f32 0.0, %v2350
    %v2352 = vpop.f32.mrb[0].mxu0
    %v2353 = vadd.f32 0.0, %v2352
    %2354 = vmatprep.mubr.f32.mxu0 0.0
    %2355 = vmatmul.mubr.f32.gmra.mrb[0].mxu0 %v1472
    %v2356 = vpop.f32.mrb[0].mxu0
    %v2357 = vadd.f32 0.0, %v2356
    %v2358 = vpop.f32.mrb[0].mxu0
    %v2359 = vadd.f32 0.0, %v2358
    %2360 = vmatprep.mubr.f32.mxu0 0.0
    %2361 = vmatmul.mubr.f32.gmra.mrb[0].mxu0 %v1475
    %v2362 = vpop.f32.mrb[0].mxu0
    %v2363 = vadd.f32 0.0, %v2362
    %v2364 = vpop.f32.mrb[0].mxu0
    %v2365 = vadd.f32 0.0, %v2364
    %2366 = vmatprep.mubr.f32.mxu0 0.0
    %2367 = vmatmul.mubr.f32.gmra.mrb[0].mxu0 %v1602
    %v2368 = vpop.f32.mrb[0].mxu0
    %v2369 = vadd.f32 0.0, %v2368
    %v2370 = vpop.f32.mrb[0].mxu0
    %v2371 = vadd.f32 0.0, %v2370
    %2372 = vmatprep.mubr.f32.mxu0 0.0
    %2373 = vmatmul.mubr.f32.gmra.mrb[0].mxu0 %v1876
    %v2374 = vpop.f32.mrb[0].mxu0
    %v2375 = vadd.f32 0.0, %v2374
    %v2376 = vpop.f32.mrb[0].mxu0
    %v2377 = vadd.f32 0.0, %v2376
    %2378 = vdwg.mxu0
    %v2379 = vadd.f32 %v2274, %v2351
    %v2380 = vadd.f32 %v2275, %v2353
    %v2381 = vadd.f32 %v2276, %v2357
    %v2382 = vadd.f32 %v2277, %v2359
    %v2383 = vadd.f32 %v2278, %v2363
    %v2384 = vadd.f32 %v2279, %v2365
    %v2385 = vadd.f32 %v2280, %v2369
    %v2386 = vadd.f32 %v2281, %v2371
    %v2387 = vadd.f32 %v2282, %v2375
    %v2388 = vadd.f32 %v2283, %v2377
    %v2390 = vsel %vm1344, %v1298, 0
    %2392 = vmatprep.subr.mxu0 %v1854
    %2393 = vmatpush1.msra.mxu0 %v1853
    %2394 = vmatprep.subr.mxu0 %v1856
    %2395 = vmatpush1.msra.mxu0 %v1855
    %2396 = vmatprep.subr.mxu0 %v1858
    %2397 = vmatpush1.msra.mxu0 %v1857
    %2398 = vmatprep.subr.mxu0 %v1860
    %2399 = vmatpush1.msra.mxu0 %v1859
    %2400 = vmatprep.subr.mxu0 %v1862
    %2401 = vmatpush1.msra.mxu0 %v1861
    %2402 = vmatprep.subr.mxu0 %v1864
    %2403 = vmatpush1.msra.mxu0 %v1863
    %2404 = vmatprep.subr.mxu0 %v1866
    %2405 = vmatpush1.msra.mxu0 %v1865
    %2406 = vmatprep.subr.mxu0 %v1868
    %2407 = vmatpush1.msra.mxu0 %v1867
    %2408 = vmatprep.subr.mxu0 %v1870
    %2409 = vmatpush1.msra.mxu0 %v1869
    %2410 = vmatprep.subr.mxu0 %v1872
    %2411 = vmatpush1.msra.mxu0 %v1871
    %2412 = vmatprep.subr.mxu0 %v1882
    %2413 = vmatpush1.msra.mxu0 %v1879
    %2414 = vmatprep.subr.mxu0 0.0
    %2415 = vmatpush1.msra.mxu0 0.0
    %2416 = vmatprep.subr.mxu0 0.0
    %2417 = vmatpush1.msra.mxu0 0.0
    %2418 = vmatprep.subr.mxu0 0.0
    %2419 = vmatpush1.msra.mxu0 0.0
    %2420 = vmatprep.subr.mxu0 0.0
    %2421 = vmatpush1.msra.mxu0 0.0
    %2422 = vmatprep.subr.mxu0 0.0
    %2423 = vmatpush1.msra.mxu0 0.0
    %2424 = vmatprep.subr.mxu0 0.0
    %2425 = vmatpush1.msra.mxu0 0.0
    %2426 = vmatprep.subr.mxu0 0.0
    %2427 = vmatpush1.msra.mxu0 0.0
    %2428 = vmatprep.subr.mxu0 0.0
    %2429 = vmatpush1.msra.mxu0 0.0
    %2430 = vmatprep.subr.mxu0 0.0
    %2431 = vmatpush1.msra.mxu0 0.0
    %2432 = vmatprep.subr.mxu0 0.0
    %2433 = vmatpush1.msra.mxu0 0.0
    %2434 = vmatprep.subr.mxu0 0.0
    %2435 = vmatpush1.msra.mxu0 0.0
    %2436 = vmatprep.subr.mxu0 0.0
    %2437 = vmatpush1.msra.mxu0 0.0
    %2438 = vmatprep.subr.mxu0 0.0
    %2439 = vmatpush1.msra.mxu0 0.0
    %2440 = vmatprep.subr.mxu0 0.0
    %2441 = vmatpush1.msra.mxu0 0.0
    %2442 = vmatprep.subr.mxu0 0.0
    %2443 = vmatpush1.msra.mxu0 0.0
    %2444 = vmatprep.subr.mxu0 0.0
    %2445 = vmatpush1.msra.mxu0 0.0
    %2446 = vmatprep.subr.mxu0 0.0
    %2447 = vmatpush1.msra.mxu0 0.0
    %2448 = vmatprep.subr.mxu0 0.0
    %2449 = vmatpush1.msra.mxu0 0.0
    %2450 = vmatprep.subr.mxu0 0.0
    %2451 = vmatpush1.msra.mxu0 0.0
    %2452 = vmatprep.subr.mxu0 0.0
    %2453 = vmatpush1.msra.mxu0 0.0
    %2454 = vmatprep.subr.mxu0 0.0
    %2455 = vmatpush1.msra.mxu0 0.0
    %2456 = vmatprep.mubr.f32.mxu0 0.0
    %2457 = vmatmul.mubr.f32.gmra.mrb[0].mxu0 %v1352
    %v2458 = vpop.f32.mrb[0].mxu0
    %v2459 = vadd.f32 0.0, %v2458
    %v2460 = vpop.f32.mrb[0].mxu0
    %v2461 = vadd.f32 0.0, %v2460
    %2462 = vmatprep.mubr.f32.mxu0 0.0
    %2463 = vmatmul.mubr.f32.gmra.mrb[0].mxu0 %v1355
    %v2464 = vpop.f32.mrb[0].mxu0
    %v2465 = vadd.f32 0.0, %v2464
    %v2466 = vpop.f32.mrb[0].mxu0
    %v2467 = vadd.f32 0.0, %v2466
    %2468 = vmatprep.mubr.f32.mxu0 0.0
    %2469 = vmatmul.mubr.f32.gmra.mrb[0].mxu0 %v1358
    %v2470 = vpop.f32.mrb[0].mxu0
    %v2471 = vadd.f32 0.0, %v2470
    %v2472 = vpop.f32.mrb[0].mxu0
    %v2473 = vadd.f32 0.0, %v2472
    %2474 = vmatprep.mubr.f32.mxu0 0.0
    %2475 = vmatmul.mubr.f32.gmra.mrb[0].mxu0 %v1739
    %v2476 = vpop.f32.mrb[0].mxu0
    %v2477 = vadd.f32 0.0, %v2476
    %v2478 = vpop.f32.mrb[0].mxu0
    %v2479 = vadd.f32 0.0, %v2478
    %2480 = vmatprep.mubr.f32.mxu0 0.0
    %2481 = vmatmul.mubr.f32.gmra.mrb[0].mxu0 %v2390
    %v2482 = vpop.f32.mrb[0].mxu0
    %v2483 = vadd.f32 0.0, %v2482
    %v2484 = vpop.f32.mrb[0].mxu0
    %v2485 = vadd.f32 0.0, %v2484
    %2486 = vdwg.mxu0
    %v2487 = vadd.f32 %v2379, %v2459
    %v2488 = vadd.f32 %v2380, %v2461
    %v2489 = vadd.f32 %v2381, %v2465
    %v2490 = vadd.f32 %v2382, %v2467
    %v2491 = vadd.f32 %v2383, %v2471
    %v2492 = vadd.f32 %v2384, %v2473
    %v2493 = vadd.f32 %v2385, %v2477
    %v2494 = vadd.f32 %v2386, %v2479
    %v2495 = vadd.f32 %v2387, %v2483
    %v2496 = vadd.f32 %v2388, %v2485
    %v2497 = vmax.f32 %v1979, %v2487
    %v2498 = vmax.f32 %v1980, %v2488
    %v2499 = vmax.f32 %v1981, %v2489
    %v2500 = vmax.f32 %v1982, %v2490
    %v2501 = vmax.f32 %v1983, %v2491
    %v2502 = vmax.f32 %v1984, %v2492
    %v2503 = vmax.f32 %v1985, %v2493
    %v2504 = vmax.f32 %v1986, %v2494
    %v2505 = vmax.f32 %v1987, %v2495
    %v2506 = vmax.f32 %v1988, %v2496
    %v2507 = vmax.f32 %v2497, %v2498
    %v2508 = vmax.f32 %v2499, %v2500
    %v2509 = vmax.f32 %v2501, %v2502
    %v2510 = vmax.f32 %v2503, %v2504
    %v2511 = vmax.f32 %v2505, %v2506
    %v2512 = vld [vmem:[%s5] sm:$0x1]
    %v2514 = vlaneseq
    %v2515 = vshrl.u32 %v2514, 7
    %v2516 = vsub.s32 0, %v2515
    %v2517 = vrot.slane %v2512, %v2516
    %v2519 = vadd.f32 %v2507, %v2517
    %v2520 = vadd.f32 %v2508, %v2517
    %v2521 = vadd.f32 %v2509, %v2517
    %v2522 = vadd.f32 %v2510, %v2517
    %v2523 = vadd.f32 %v2511, %v2517
    %v2524 = vmax.f32 %v2519, 0.0
    %v2525 = vmax.f32 %v2520, 0.0
    %v2526 = vmax.f32 %v2521, 0.0
    %v2527 = vmax.f32 %v2522, 0.0
    %v2528 = vmax.f32 %v2523, 0.0
    %v2529 = vld [vmem:[%s6] sm:$0xff]
    %v2530 = vld [vmem:[%s6 + $0x8] sm:$0xff]
    %v2531 = vld [vmem:[%s6 + $0x10] sm:$0xff]
    %v2532 = vld [vmem:[%s6 + $0x18] sm:$0xff]
    %v2533 = vld [vmem:[%s6 + $0x20] sm:$0xff]
    %v2534 = vld [vmem:[%s6 + $0x28] sm:$0xff]
    %v2535 = vld [vmem:[%s6 + $0x30] sm:$0xff]
    %v2536 = vld [vmem:[%s6 + $0x38] sm:$0xff]
    %v2537 = vld [vmem:[%s6 + $0x40] sm:$0xff]
    %v2538 = vld [vmem:[%s6 + $0x48] sm:$0xff]
    %s2539 = scalar_lea.vmem %s6, 80
    %v2540 = vld [vmem:[%s2539] sm:$0xff]
    %v2541 = vld [vmem:[%s2539 + $0x8] sm:$0xff]
    %v2542 = vld [vmem:[%s2539 + $0x10] sm:$0xff]
    %v2543 = vld [vmem:[%s2539 + $0x18] sm:$0xff]
    %v2544 = vld [vmem:[%s2539 + $0x20] sm:$0xff]
    %v2545 = vld [vmem:[%s2539 + $0x28] sm:$0xff]
    %v2546 = vld [vmem:[%s2539 + $0x30] sm:$0xff]
    %v2547 = vld [vmem:[%s2539 + $0x38] sm:$0xff]
    %v2548 = vld [vmem:[%s2539 + $0x40] sm:$0xff]
    %v2549 = vld [vmem:[%s2539 + $0x48] sm:$0xff]
    %vm2550 = vcmask 654336
    %v2552 = vsel %vm2550, %v2525, 0
    %2554 = vmatprep.subr.mxu0 0.0
    %2555 = vmatpush1.msra.mxu0 %v2540
    %2556 = vmatprep.subr.mxu0 0.0
    %2557 = vmatpush1.msra.mxu0 %v2541
    %2558 = vmatprep.subr.mxu0 0.0
    %2559 = vmatpush1.msra.mxu0 %v2542
    %2560 = vmatprep.subr.mxu0 0.0
    %2561 = vmatpush1.msra.mxu0 %v2543
    %2562 = vmatprep.subr.mxu0 0.0
    %2563 = vmatpush1.msra.mxu0 %v2544
    %2564 = vmatprep.subr.mxu0 0.0
    %2565 = vmatpush1.msra.mxu0 %v2545
    %2566 = vmatprep.subr.mxu0 0.0
    %2567 = vmatpush1.msra.mxu0 %v2546
    %2568 = vmatprep.subr.mxu0 0.0
    %2569 = vmatpush1.msra.mxu0 %v2547
    %2570 = vmatprep.subr.mxu0 0.0
    %2571 = vmatpush1.msra.mxu0 %v2548
    %2572 = vmatprep.subr.mxu0 0.0
    %2573 = vmatpush1.msra.mxu0 %v2549
    %2574 = vmatprep.subr.mxu0 0.0
    %2575 = vmatpush1.msra.mxu0 0.0
    %2576 = vmatprep.subr.mxu0 0.0
    %2577 = vmatpush1.msra.mxu0 0.0
    %2578 = vmatprep.subr.mxu0 0.0
    %2579 = vmatpush1.msra.mxu0 0.0
    %2580 = vmatprep.subr.mxu0 0.0
    %2581 = vmatpush1.msra.mxu0 0.0
    %2582 = vmatprep.subr.mxu0 0.0
    %2583 = vmatpush1.msra.mxu0 0.0
    %2584 = vmatprep.subr.mxu0 0.0
    %2585 = vmatpush1.msra.mxu0 0.0
    %2586 = vmatprep.subr.mxu0 0.0
    %2587 = vmatpush1.msra.mxu0 0.0
    %2588 = vmatprep.subr.mxu0 0.0
    %2589 = vmatpush1.msra.mxu0 0.0
    %2590 = vmatprep.subr.mxu0 0.0
    %2591 = vmatpush1.msra.mxu0 0.0
    %2592 = vmatprep.subr.mxu0 0.0
    %2593 = vmatpush1.msra.mxu0 0.0
    %2594 = vmatprep.subr.mxu0 0.0
    %2595 = vmatpush1.msra.mxu0 0.0
    %2596 = vmatprep.subr.mxu0 0.0
    %2597 = vmatpush1.msra.mxu0 0.0
    %2598 = vmatprep.subr.mxu0 0.0
    %2599 = vmatpush1.msra.mxu0 0.0
    %2600 = vmatprep.subr.mxu0 0.0
    %2601 = vmatpush1.msra.mxu0 0.0
    %2602 = vmatprep.subr.mxu0 0.0
    %2603 = vmatpush1.msra.mxu0 0.0
    %2604 = vmatprep.subr.mxu0 0.0
    %2605 = vmatpush1.msra.mxu0 0.0
    %2606 = vmatprep.subr.mxu0 0.0
    %2607 = vmatpush1.msra.mxu0 0.0
    %2608 = vmatprep.subr.mxu0 0.0
    %2609 = vmatpush1.msra.mxu0 0.0
    %2610 = vmatprep.subr.mxu0 0.0
    %2611 = vmatpush1.msra.mxu0 0.0
    %2612 = vmatprep.subr.mxu0 0.0
    %2613 = vmatpush1.msra.mxu0 0.0
    %2614 = vmatprep.subr.mxu0 0.0
    %2615 = vmatpush1.msra.mxu0 0.0
    %2616 = vmatprep.subr.mxu0 0.0
    %2617 = vmatpush1.msra.mxu0 0.0
    %2618 = vmatprep.mubr.f32.mxu0 0.0
    %2619 = vmatmul.mubr.f32.gmra.mrb[0].mxu0 %v2552
    %v2620 = vpop.f32.mrb[0].mxu0
    %v2621 = vadd.f32 0.0, %v2620
    %v2622 = vpop.f32.mrb[0].mxu0
    %2623 = vdwg.mxu0
    %v2625 = vsel %vm2550, %v2524, 0
    %2627 = vmatprep.subr.mxu0 0.0
    %2628 = vmatpush1.msra.mxu0 %v2529
    %2629 = vmatprep.subr.mxu0 0.0
    %2630 = vmatpush1.msra.mxu0 %v2530
    %2631 = vmatprep.subr.mxu0 0.0
    %2632 = vmatpush1.msra.mxu0 %v2531
    %2633 = vmatprep.subr.mxu0 0.0
    %2634 = vmatpush1.msra.mxu0 %v2532
    %2635 = vmatprep.subr.mxu0 0.0
    %2636 = vmatpush1.msra.mxu0 %v2533
    %2637 = vmatprep.subr.mxu0 0.0
    %2638 = vmatpush1.msra.mxu0 %v2534
    %2639 = vmatprep.subr.mxu0 0.0
    %2640 = vmatpush1.msra.mxu0 %v2535
    %2641 = vmatprep.subr.mxu0 0.0
    %2642 = vmatpush1.msra.mxu0 %v2536
    %2643 = vmatprep.subr.mxu0 0.0
    %2644 = vmatpush1.msra.mxu0 %v2537
    %2645 = vmatprep.subr.mxu0 0.0
    %2646 = vmatpush1.msra.mxu0 %v2538
    %2647 = vmatprep.subr.mxu0 0.0
    %2648 = vmatpush1.msra.mxu0 0.0
    %2649 = vmatprep.subr.mxu0 0.0
    %2650 = vmatpush1.msra.mxu0 0.0
    %2651 = vmatprep.subr.mxu0 0.0
    %2652 = vmatpush1.msra.mxu0 0.0
    %2653 = vmatprep.subr.mxu0 0.0
    %2654 = vmatpush1.msra.mxu0 0.0
    %2655 = vmatprep.subr.mxu0 0.0
    %2656 = vmatpush1.msra.mxu0 0.0
    %2657 = vmatprep.subr.mxu0 0.0
    %2658 = vmatpush1.msra.mxu0 0.0
    %2659 = vmatprep.subr.mxu0 0.0
    %2660 = vmatpush1.msra.mxu0 0.0
    %2661 = vmatprep.subr.mxu0 0.0
    %2662 = vmatpush1.msra.mxu0 0.0
    %2663 = vmatprep.subr.mxu0 0.0
    %2664 = vmatpush1.msra.mxu0 0.0
    %2665 = vmatprep.subr.mxu0 0.0
    %2666 = vmatpush1.msra.mxu0 0.0
    %2667 = vmatprep.subr.mxu0 0.0
    %2668 = vmatpush1.msra.mxu0 0.0
    %2669 = vmatprep.subr.mxu0 0.0
    %2670 = vmatpush1.msra.mxu0 0.0
    %2671 = vmatprep.subr.mxu0 0.0
    %2672 = vmatpush1.msra.mxu0 0.0
    %2673 = vmatprep.subr.mxu0 0.0
    %2674 = vmatpush1.msra.mxu0 0.0
    %2675 = vmatprep.subr.mxu0 0.0
    %2676 = vmatpush1.msra.mxu0 0.0
    %2677 = vmatprep.subr.mxu0 0.0
    %2678 = vmatpush1.msra.mxu0 0.0
    %2679 = vmatprep.subr.mxu0 0.0
    %2680 = vmatpush1.msra.mxu0 0.0
    %2681 = vmatprep.subr.mxu0 0.0
    %2682 = vmatpush1.msra.mxu0 0.0
    %2683 = vmatprep.subr.mxu0 0.0
    %2684 = vmatpush1.msra.mxu0 0.0
    %2685 = vmatprep.subr.mxu0 0.0
    %2686 = vmatpush1.msra.mxu0 0.0
    %2687 = vmatprep.subr.mxu0 0.0
    %2688 = vmatpush1.msra.mxu0 0.0
    %2689 = vmatprep.subr.mxu0 0.0
    %2690 = vmatpush1.msra.mxu0 0.0
    %2691 = vmatprep.mubr.f32.mxu0 0.0
    %2692 = vmatmul.mubr.f32.gmra.mrb[0].mxu0 %v2625
    %v2693 = vpop.f32.mrb[0].mxu0
    %v2694 = vadd.f32 %v2621, %v2693
    %v2695 = vpop.f32.mrb[0].mxu0
    %2696 = vdwg.mxu0
    %s2697 = scalar_lea.vmem %s6, 160
    %v2698 = vld [vmem:[%s2697] sm:$0xff]
    %v2699 = vld [vmem:[%s2697 + $0x8] sm:$0xff]
    %v2700 = vld [vmem:[%s2697 + $0x10] sm:$0xff]
    %v2701 = vld [vmem:[%s2697 + $0x18] sm:$0xff]
    %v2702 = vld [vmem:[%s2697 + $0x20] sm:$0xff]
    %v2703 = vld [vmem:[%s2697 + $0x28] sm:$0xff]
    %v2704 = vld [vmem:[%s2697 + $0x30] sm:$0xff]
    %v2705 = vld [vmem:[%s2697 + $0x38] sm:$0xff]
    %v2706 = vld [vmem:[%s2697 + $0x40] sm:$0xff]
    %v2707 = vld [vmem:[%s2697 + $0x48] sm:$0xff]
    %v2709 = vsel %vm2550, %v2526, 0
    %2711 = vmatprep.subr.mxu0 0.0
    %2712 = vmatpush1.msra.mxu0 %v2698
    %2713 = vmatprep.subr.mxu0 0.0
    %2714 = vmatpush1.msra.mxu0 %v2699
    %2715 = vmatprep.subr.mxu0 0.0
    %2716 = vmatpush1.msra.mxu0 %v2700
    %2717 = vmatprep.subr.mxu0 0.0
    %2718 = vmatpush1.msra.mxu0 %v2701
    %2719 = vmatprep.subr.mxu0 0.0
    %2720 = vmatpush1.msra.mxu0 %v2702
    %2721 = vmatprep.subr.mxu0 0.0
    %2722 = vmatpush1.msra.mxu0 %v2703
    %2723 = vmatprep.subr.mxu0 0.0
    %2724 = vmatpush1.msra.mxu0 %v2704
    %2725 = vmatprep.subr.mxu0 0.0
    %2726 = vmatpush1.msra.mxu0 %v2705
    %2727 = vmatprep.subr.mxu0 0.0
    %2728 = vmatpush1.msra.mxu0 %v2706
    %2729 = vmatprep.subr.mxu0 0.0
    %2730 = vmatpush1.msra.mxu0 %v2707
    %2731 = vmatprep.subr.mxu0 0.0
    %2732 = vmatpush1.msra.mxu0 0.0
    %2733 = vmatprep.subr.mxu0 0.0
    %2734 = vmatpush1.msra.mxu0 0.0
    %2735 = vmatprep.subr.mxu0 0.0
    %2736 = vmatpush1.msra.mxu0 0.0
    %2737 = vmatprep.subr.mxu0 0.0
    %2738 = vmatpush1.msra.mxu0 0.0
    %2739 = vmatprep.subr.mxu0 0.0
    %2740 = vmatpush1.msra.mxu0 0.0
    %2741 = vmatprep.subr.mxu0 0.0
    %2742 = vmatpush1.msra.mxu0 0.0
    %2743 = vmatprep.subr.mxu0 0.0
    %2744 = vmatpush1.msra.mxu0 0.0
    %2745 = vmatprep.subr.mxu0 0.0
    %2746 = vmatpush1.msra.mxu0 0.0
    %2747 = vmatprep.subr.mxu0 0.0
    %2748 = vmatpush1.msra.mxu0 0.0
    %2749 = vmatprep.subr.mxu0 0.0
    %2750 = vmatpush1.msra.mxu0 0.0
    %2751 = vmatprep.subr.mxu0 0.0
    %2752 = vmatpush1.msra.mxu0 0.0
    %2753 = vmatprep.subr.mxu0 0.0
    %2754 = vmatpush1.msra.mxu0 0.0
    %2755 = vmatprep.subr.mxu0 0.0
    %2756 = vmatpush1.msra.mxu0 0.0
    %2757 = vmatprep.subr.mxu0 0.0
    %2758 = vmatpush1.msra.mxu0 0.0
    %2759 = vmatprep.subr.mxu0 0.0
    %2760 = vmatpush1.msra.mxu0 0.0
    %2761 = vmatprep.subr.mxu0 0.0
    %2762 = vmatpush1.msra.mxu0 0.0
    %2763 = vmatprep.subr.mxu0 0.0
    %2764 = vmatpush1.msra.mxu0 0.0
    %2765 = vmatprep.subr.mxu0 0.0
    %2766 = vmatpush1.msra.mxu0 0.0
    %2767 = vmatprep.subr.mxu0 0.0
    %2768 = vmatpush1.msra.mxu0 0.0
    %2769 = vmatprep.subr.mxu0 0.0
    %2770 = vmatpush1.msra.mxu0 0.0
    %2771 = vmatprep.subr.mxu0 0.0
    %2772 = vmatpush1.msra.mxu0 0.0
    %2773 = vmatprep.subr.mxu0 0.0
    %2774 = vmatpush1.msra.mxu0 0.0
    %2775 = vmatprep.mubr.f32.mxu0 0.0
    %2776 = vmatmul.mubr.f32.gmra.mrb[0].mxu0 %v2709
    %v2777 = vpop.f32.mrb[0].mxu0
    %v2778 = vadd.f32 0.0, %v2777
    %v2779 = vpop.f32.mrb[0].mxu0
    %2780 = vdwg.mxu0
    %v2781 = vadd.f32 %v2694, %v2778
    %s2782 = scalar_lea.vmem %s6, 240
    %v2783 = vld [vmem:[%s2782] sm:$0xff]
    %v2784 = vld [vmem:[%s2782 + $0x8] sm:$0xff]
    %v2785 = vld [vmem:[%s2782 + $0x10] sm:$0xff]
    %v2786 = vld [vmem:[%s2782 + $0x18] sm:$0xff]
    %v2787 = vld [vmem:[%s2782 + $0x20] sm:$0xff]
    %v2788 = vld [vmem:[%s2782 + $0x28] sm:$0xff]
    %v2789 = vld [vmem:[%s2782 + $0x30] sm:$0xff]
    %v2790 = vld [vmem:[%s2782 + $0x38] sm:$0xff]
    %v2791 = vld [vmem:[%s2782 + $0x40] sm:$0xff]
    %v2792 = vld [vmem:[%s2782 + $0x48] sm:$0xff]
    %v2794 = vsel %vm2550, %v2527, 0
    %2796 = vmatprep.subr.mxu0 0.0
    %2797 = vmatpush1.msra.mxu0 %v2783
    %2798 = vmatprep.subr.mxu0 0.0
    %2799 = vmatpush1.msra.mxu0 %v2784
    %2800 = vmatprep.subr.mxu0 0.0
    %2801 = vmatpush1.msra.mxu0 %v2785
    %2802 = vmatprep.subr.mxu0 0.0
    %2803 = vmatpush1.msra.mxu0 %v2786
    %2804 = vmatprep.subr.mxu0 0.0
    %2805 = vmatpush1.msra.mxu0 %v2787
    %2806 = vmatprep.subr.mxu0 0.0
    %2807 = vmatpush1.msra.mxu0 %v2788
    %2808 = vmatprep.subr.mxu0 0.0
    %2809 = vmatpush1.msra.mxu0 %v2789
    %2810 = vmatprep.subr.mxu0 0.0
    %2811 = vmatpush1.msra.mxu0 %v2790
    %2812 = vmatprep.subr.mxu0 0.0
    %2813 = vmatpush1.msra.mxu0 %v2791
    %2814 = vmatprep.subr.mxu0 0.0
    %2815 = vmatpush1.msra.mxu0 %v2792
    %2816 = vmatprep.subr.mxu0 0.0
    %2817 = vmatpush1.msra.mxu0 0.0
    %2818 = vmatprep.subr.mxu0 0.0
    %2819 = vmatpush1.msra.mxu0 0.0
    %2820 = vmatprep.subr.mxu0 0.0
    %2821 = vmatpush1.msra.mxu0 0.0
    %2822 = vmatprep.subr.mxu0 0.0
    %2823 = vmatpush1.msra.mxu0 0.0
    %2824 = vmatprep.subr.mxu0 0.0
    %2825 = vmatpush1.msra.mxu0 0.0
    %2826 = vmatprep.subr.mxu0 0.0
    %2827 = vmatpush1.msra.mxu0 0.0
    %2828 = vmatprep.subr.mxu0 0.0
    %2829 = vmatpush1.msra.mxu0 0.0
    %2830 = vmatprep.subr.mxu0 0.0
    %2831 = vmatpush1.msra.mxu0 0.0
    %2832 = vmatprep.subr.mxu0 0.0
    %2833 = vmatpush1.msra.mxu0 0.0
    %2834 = vmatprep.subr.mxu0 0.0
    %2835 = vmatpush1.msra.mxu0 0.0
    %2836 = vmatprep.subr.mxu0 0.0
    %2837 = vmatpush1.msra.mxu0 0.0
    %2838 = vmatprep.subr.mxu0 0.0
    %2839 = vmatpush1.msra.mxu0 0.0
    %2840 = vmatprep.subr.mxu0 0.0
    %2841 = vmatpush1.msra.mxu0 0.0
    %2842 = vmatprep.subr.mxu0 0.0
    %2843 = vmatpush1.msra.mxu0 0.0
    %2844 = vmatprep.subr.mxu0 0.0
    %2845 = vmatpush1.msra.mxu0 0.0
    %2846 = vmatprep.subr.mxu0 0.0
    %2847 = vmatpush1.msra.mxu0 0.0
    %2848 = vmatprep.subr.mxu0 0.0
    %2849 = vmatpush1.msra.mxu0 0.0
    %2850 = vmatprep.subr.mxu0 0.0
    %2851 = vmatpush1.msra.mxu0 0.0
    %2852 = vmatprep.subr.mxu0 0.0
    %2853 = vmatpush1.msra.mxu0 0.0
    %2854 = vmatprep.subr.mxu0 0.0
    %2855 = vmatpush1.msra.mxu0 0.0
    %2856 = vmatprep.subr.mxu0 0.0
    %2857 = vmatpush1.msra.mxu0 0.0
    %2858 = vmatprep.subr.mxu0 0.0
    %2859 = vmatpush1.msra.mxu0 0.0
    %2860 = vmatprep.mubr.f32.mxu0 0.0
    %2861 = vmatmul.mubr.f32.gmra.mrb[0].mxu0 %v2794
    %v2862 = vpop.f32.mrb[0].mxu0
    %v2863 = vadd.f32 0.0, %v2862
    %v2864 = vpop.f32.mrb[0].mxu0
    %2865 = vdwg.mxu0
    %v2866 = vadd.f32 %v2781, %v2863
    %s2867 = scalar_lea.vmem %s6, 320
    %v2868 = vld [vmem:[%s2867] sm:$0xff]
    %v2869 = vld [vmem:[%s2867 + $0x8] sm:$0xff]
    %v2870 = vld [vmem:[%s2867 + $0x10] sm:$0xff]
    %v2871 = vld [vmem:[%s2867 + $0x18] sm:$0xff]
    %v2872 = vld [vmem:[%s2867 + $0x20] sm:$0xff]
    %v2873 = vld [vmem:[%s2867 + $0x28] sm:$0xff]
    %v2874 = vld [vmem:[%s2867 + $0x30] sm:$0xff]
    %v2875 = vld [vmem:[%s2867 + $0x38] sm:$0xff]
    %v2876 = vld [vmem:[%s2867 + $0x40] sm:$0xff]
    %v2877 = vld [vmem:[%s2867 + $0x48] sm:$0xff]
    %v2879 = vsel %vm2550, %v2528, 0
    %2881 = vmatprep.subr.mxu0 0.0
    %2882 = vmatpush1.msra.mxu0 %v2868
    %2883 = vmatprep.subr.mxu0 0.0
    %2884 = vmatpush1.msra.mxu0 %v2869
    %2885 = vmatprep.subr.mxu0 0.0
    %2886 = vmatpush1.msra.mxu0 %v2870
    %2887 = vmatprep.subr.mxu0 0.0
    %2888 = vmatpush1.msra.mxu0 %v2871
    %2889 = vmatprep.subr.mxu0 0.0
    %2890 = vmatpush1.msra.mxu0 %v2872
    %2891 = vmatprep.subr.mxu0 0.0
    %2892 = vmatpush1.msra.mxu0 %v2873
    %2893 = vmatprep.subr.mxu0 0.0
    %2894 = vmatpush1.msra.mxu0 %v2874
    %2895 = vmatprep.subr.mxu0 0.0
    %2896 = vmatpush1.msra.mxu0 %v2875
    %2897 = vmatprep.subr.mxu0 0.0
    %2898 = vmatpush1.msra.mxu0 %v2876
    %2899 = vmatprep.subr.mxu0 0.0
    %2900 = vmatpush1.msra.mxu0 %v2877
    %2901 = vmatprep.subr.mxu0 0.0
    %2902 = vmatpush1.msra.mxu0 0.0
    %2903 = vmatprep.subr.mxu0 0.0
    %2904 = vmatpush1.msra.mxu0 0.0
    %2905 = vmatprep.subr.mxu0 0.0
    %2906 = vmatpush1.msra.mxu0 0.0
    %2907 = vmatprep.subr.mxu0 0.0
    %2908 = vmatpush1.msra.mxu0 0.0
    %2909 = vmatprep.subr.mxu0 0.0
    %2910 = vmatpush1.msra.mxu0 0.0
    %2911 = vmatprep.subr.mxu0 0.0
    %2912 = vmatpush1.msra.mxu0 0.0
    %2913 = vmatprep.subr.mxu0 0.0
    %2914 = vmatpush1.msra.mxu0 0.0
    %2915 = vmatprep.subr.mxu0 0.0
    %2916 = vmatpush1.msra.mxu0 0.0
    %2917 = vmatprep.subr.mxu0 0.0
    %2918 = vmatpush1.msra.mxu0 0.0
    %2919 = vmatprep.subr.mxu0 0.0
    %2920 = vmatpush1.msra.mxu0 0.0
    %2921 = vmatprep.subr.mxu0 0.0
    %2922 = vmatpush1.msra.mxu0 0.0
    %2923 = vmatprep.subr.mxu0 0.0
    %2924 = vmatpush1.msra.mxu0 0.0
    %2925 = vmatprep.subr.mxu0 0.0
    %2926 = vmatpush1.msra.mxu0 0.0
    %2927 = vmatprep.subr.mxu0 0.0
    %2928 = vmatpush1.msra.mxu0 0.0
    %2929 = vmatprep.subr.mxu0 0.0
    %2930 = vmatpush1.msra.mxu0 0.0
    %2931 = vmatprep.subr.mxu0 0.0
    %2932 = vmatpush1.msra.mxu0 0.0
    %2933 = vmatprep.subr.mxu0 0.0
    %2934 = vmatpush1.msra.mxu0 0.0
    %2935 = vmatprep.subr.mxu0 0.0
    %2936 = vmatpush1.msra.mxu0 0.0
    %2937 = vmatprep.subr.mxu0 0.0
    %2938 = vmatpush1.msra.mxu0 0.0
    %2939 = vmatprep.subr.mxu0 0.0
    %2940 = vmatpush1.msra.mxu0 0.0
    %2941 = vmatprep.subr.mxu0 0.0
    %2942 = vmatpush1.msra.mxu0 0.0
    %2943 = vmatprep.subr.mxu0 0.0
    %2944 = vmatpush1.msra.mxu0 0.0
    %2945 = vmatprep.mubr.f32.mxu0 0.0
    %2946 = vmatmul.mubr.f32.gmra.mrb[0].mxu0 %v2879
    %v2947 = vpop.f32.mrb[0].mxu0
    %v2948 = vadd.f32 0.0, %v2947
    %v2949 = vpop.f32.mrb[0].mxu0
    %2950 = vdwg.mxu0
    %v2951 = vadd.f32 %v2866, %v2948
    %v2952 = vld [vmem:[%s7] sm:$0x1]
    %v2954 = vlaneseq
    %v2955 = vshrl.u32 %v2954, 7
    %v2956 = vsub.s32 0, %v2955
    %v2957 = vrot.slane %v2952, %v2956
    %v2959 = vadd.f32 %v2951, %v2957
    %v2960 = vmax.f32 %v2959, 0.0
    %v2961 = vld [vmem:[%s8] sm:$0xff]
    %v2962 = vld [vmem:[%s8 + $0x8] sm:$0xff]
    %v2963 = vld [vmem:[%s8 + $0x10] sm:$0xff]
    %v2964 = vld [vmem:[%s8 + $0x18] sm:$0xff]
    %v2965 = vld [vmem:[%s8 + $0x20] sm:$0xff]
    %v2966 = vld [vmem:[%s8 + $0x28] sm:$0xff]
    %v2967 = vld [vmem:[%s8 + $0x30] sm:$0xff]
    %v2968 = vld [vmem:[%s8 + $0x38] sm:$0xff]
    %v2969 = vld [vmem:[%s8 + $0x40] sm:$0xff]
    %v2970 = vld [vmem:[%s8 + $0x48] sm:$0xff]
    %v2971 = vld [vmem:[%s8 + $0x50] sm:$0xff]
    %v2972 = vld [vmem:[%s8 + $0x58] sm:$0xff]
    %v2973 = vld [vmem:[%s8 + $0x60] sm:$0xff]
    %v2974 = vld [vmem:[%s8 + $0x68] sm:$0xff]
    %v2975 = vld [vmem:[%s8 + $0x70] sm:$0xff]
    %v2976 = vld [vmem:[%s9] sm:$0x1]
    %v2978 = vlaneseq
    %v2979 = vshrl.u32 %v2978, 7
    %v2980 = vsub.s32 0, %v2979
    %v2981 = vrot.slane %v2976, %v2980
    %vm2983 = vcmask 982016
    %v2985 = vsel %vm2983, %v2960, 0
    %2987 = vmatprep.subr.mxu0 0.0
    %2988 = vmatpush1.msra.mxu0 %v2961
    %2989 = vmatprep.subr.mxu0 0.0
    %2990 = vmatpush1.msra.mxu0 %v2962
    %2991 = vmatprep.subr.mxu0 0.0
    %2992 = vmatpush1.msra.mxu0 %v2963
    %2993 = vmatprep.subr.mxu0 0.0
    %2994 = vmatpush1.msra.mxu0 %v2964
    %2995 = vmatprep.subr.mxu0 0.0
    %2996 = vmatpush1.msra.mxu0 %v2965
    %2997 = vmatprep.subr.mxu0 0.0
    %2998 = vmatpush1.msra.mxu0 %v2966
    %2999 = vmatprep.subr.mxu0 0.0
    %3000 = vmatpush1.msra.mxu0 %v2967
    %3001 = vmatprep.subr.mxu0 0.0
    %3002 = vmatpush1.msra.mxu0 %v2968
    %3003 = vmatprep.subr.mxu0 0.0
    %3004 = vmatpush1.msra.mxu0 %v2969
    %3005 = vmatprep.subr.mxu0 0.0
    %3006 = vmatpush1.msra.mxu0 %v2970
    %3007 = vmatprep.subr.mxu0 0.0
    %3008 = vmatpush1.msra.mxu0 %v2971
    %3009 = vmatprep.subr.mxu0 0.0
    %3010 = vmatpush1.msra.mxu0 %v2972
    %3011 = vmatprep.subr.mxu0 0.0
    %3012 = vmatpush1.msra.mxu0 %v2973
    %3013 = vmatprep.subr.mxu0 0.0
    %3014 = vmatpush1.msra.mxu0 %v2974
    %3015 = vmatprep.subr.mxu0 0.0
    %3016 = vmatpush1.msra.mxu0 %v2975
    %3017 = vmatprep.subr.mxu0 0.0
    %3018 = vmatpush1.msra.mxu0 0.0
    %3019 = vmatprep.subr.mxu0 0.0
    %3020 = vmatpush1.msra.mxu0 0.0
    %3021 = vmatprep.subr.mxu0 0.0
    %3022 = vmatpush1.msra.mxu0 0.0
    %3023 = vmatprep.subr.mxu0 0.0
    %3024 = vmatpush1.msra.mxu0 0.0
    %3025 = vmatprep.subr.mxu0 0.0
    %3026 = vmatpush1.msra.mxu0 0.0
    %3027 = vmatprep.subr.mxu0 0.0
    %3028 = vmatpush1.msra.mxu0 0.0
    %3029 = vmatprep.subr.mxu0 0.0
    %3030 = vmatpush1.msra.mxu0 0.0
    %3031 = vmatprep.subr.mxu0 0.0
    %3032 = vmatpush1.msra.mxu0 0.0
    %3033 = vmatprep.subr.mxu0 0.0
    %3034 = vmatpush1.msra.mxu0 0.0
    %3035 = vmatprep.subr.mxu0 0.0
    %3036 = vmatpush1.msra.mxu0 0.0
    %3037 = vmatprep.subr.mxu0 0.0
    %3038 = vmatpush1.msra.mxu0 0.0
    %3039 = vmatprep.subr.mxu0 0.0
    %3040 = vmatpush1.msra.mxu0 0.0
    %3041 = vmatprep.subr.mxu0 0.0
    %3042 = vmatpush1.msra.mxu0 0.0
    %3043 = vmatprep.subr.mxu0 0.0
    %3044 = vmatpush1.msra.mxu0 0.0
    %3045 = vmatprep.subr.mxu0 0.0
    %3046 = vmatpush1.msra.mxu0 0.0
    %3047 = vmatprep.subr.mxu0 0.0
    %3048 = vmatpush1.msra.mxu0 0.0
    %3049 = vmatprep.subr.mxu0 0.0
    %3050 = vmatpush1.msra.mxu0 0.0
    %3051 = vmatprep.mubr.f32.mxu0 0.0
    %3052 = vmatmul.mubr.f32.gmra.mrb[0].mxu0 %v2985
    %v3053 = vpop.f32.mrb[0].mxu0
    %v3054 = vadd.f32 %v2981, %v3053
    %v3055 = vpop.f32.mrb[0].mxu0
    %3056 = vdwg.mxu0
    %v3057 = vmax.f32 %v3054, 0.0
    %v3058 = vld [vmem:[#allocation7] sm:$0xff]
    %v3059 = vld [vmem:[#allocation7 + $0x8] sm:$0xff]
    %v3060 = vld [vmem:[#allocation7 + $0x10] sm:$0xff]
    %v3061 = vld [vmem:[#allocation7 + $0x18] sm:$0xff]
    %v3062 = vld [vmem:[#allocation7 + $0x20] sm:$0xff]
    %v3063 = vld [vmem:[#allocation7 + $0x28] sm:$0xff]
    %v3064 = vld [vmem:[#allocation7 + $0x30] sm:$0xff]
    %v3065 = vld [vmem:[#allocation7 + $0x38] sm:$0xff]
    %v3066 = vld [vmem:[#allocation7 + $0x40] sm:$0xff]
    %v3067 = vld [vmem:[#allocation7 + $0x48] sm:$0xff]
    %v3068 = vld [vmem:[#allocation7 + $0x50] sm:$0xf]
    %v3069 = vld [vmem:[%s11] sm:$0x1]
    %v3071 = vlaneseq
    %v3072 = vshrl.u32 %v3071, 7
    %v3073 = vsub.s32 0, %v3072
    %v3074 = vrot.slane %v3069, %v3073
    %v3077 = vsel %vm1344, %v3057, 0
    %v3080 = vsel %vm1360, %v3068, 0
    %3082 = vmatprep.subr.mxu0 0.0
    %3083 = vmatpush1.msra.mxu0 %v3058
    %3084 = vmatprep.subr.mxu0 0.0
    %3085 = vmatpush1.msra.mxu0 %v3059
    %3086 = vmatprep.subr.mxu0 0.0
    %3087 = vmatpush1.msra.mxu0 %v3060
    %3088 = vmatprep.subr.mxu0 0.0
    %3089 = vmatpush1.msra.mxu0 %v3061
    %3090 = vmatprep.subr.mxu0 0.0
    %3091 = vmatpush1.msra.mxu0 %v3062
    %3092 = vmatprep.subr.mxu0 0.0
    %3093 = vmatpush1.msra.mxu0 %v3063
    %3094 = vmatprep.subr.mxu0 0.0
    %3095 = vmatpush1.msra.mxu0 %v3064
    %3096 = vmatprep.subr.mxu0 0.0
    %3097 = vmatpush1.msra.mxu0 %v3065
    %3098 = vmatprep.subr.mxu0 0.0
    %3099 = vmatpush1.msra.mxu0 %v3066
    %3100 = vmatprep.subr.mxu0 0.0
    %3101 = vmatpush1.msra.mxu0 %v3067
    %3102 = vmatprep.subr.mxu0 0.0
    %3103 = vmatpush1.msra.mxu0 %v3080
    %3104 = vmatprep.subr.mxu0 0.0
    %3105 = vmatpush1.msra.mxu0 0.0
    %3106 = vmatprep.subr.mxu0 0.0
    %3107 = vmatpush1.msra.mxu0 0.0
    %3108 = vmatprep.subr.mxu0 0.0
    %3109 = vmatpush1.msra.mxu0 0.0
    %3110 = vmatprep.subr.mxu0 0.0
    %3111 = vmatpush1.msra.mxu0 0.0
    %3112 = vmatprep.subr.mxu0 0.0
    %3113 = vmatpush1.msra.mxu0 0.0
    %3114 = vmatprep.subr.mxu0 0.0
    %3115 = vmatpush1.msra.mxu0 0.0
    %3116 = vmatprep.subr.mxu0 0.0
    %3117 = vmatpush1.msra.mxu0 0.0
    %3118 = vmatprep.subr.mxu0 0.0
    %3119 = vmatpush1.msra.mxu0 0.0
    %3120 = vmatprep.subr.mxu0 0.0
    %3121 = vmatpush1.msra.mxu0 0.0
    %3122 = vmatprep.subr.mxu0 0.0
    %3123 = vmatpush1.msra.mxu0 0.0
    %3124 = vmatprep.subr.mxu0 0.0
    %3125 = vmatpush1.msra.mxu0 0.0
    %3126 = vmatprep.subr.mxu0 0.0
    %3127 = vmatpush1.msra.mxu0 0.0
    %3128 = vmatprep.subr.mxu0 0.0
    %3129 = vmatpush1.msra.mxu0 0.0
    %3130 = vmatprep.subr.mxu0 0.0
    %3131 = vmatpush1.msra.mxu0 0.0
    %3132 = vmatprep.subr.mxu0 0.0
    %3133 = vmatpush1.msra.mxu0 0.0
    %3134 = vmatprep.subr.mxu0 0.0
    %3135 = vmatpush1.msra.mxu0 0.0
    %3136 = vmatprep.subr.mxu0 0.0
    %3137 = vmatpush1.msra.mxu0 0.0
    %3138 = vmatprep.subr.mxu0 0.0
    %3139 = vmatpush1.msra.mxu0 0.0
    %3140 = vmatprep.subr.mxu0 0.0
    %3141 = vmatpush1.msra.mxu0 0.0
    %3142 = vmatprep.subr.mxu0 0.0
    %3143 = vmatpush1.msra.mxu0 0.0
    %3144 = vmatprep.subr.mxu0 0.0
    %3145 = vmatpush1.msra.mxu0 0.0
    %3146 = vmatprep.mubr.f32.mxu0 0.0
    %3147 = vmatmul.mubr.f32.gmra.mrb[0].mxu0 %v3077
    %v3148 = vpop.f32.mrb[0].mxu0
    %v3149 = vadd.f32 %v3074, %v3148
    %v3150 = vpop.f32.mrb[0].mxu0
    %3151 = vdwg.mxu0
    %3152 = vmax.xlane.f32.xlu0 %v3149
    %v3153 = vpop.xlane.xlu0 %3152
    %v3154 = vsub.f32 %v3149, %v3153
    %v3155 = vmul.f32 %v3154, 1.442695
    %v3156 = vpow.pop %v3155
    %3157 = vadd.xlane.f32.xlu0 %v3156
    %v3158 = vpop.xlane.xlu0 %3157
    %v3159 = vlog2.pop %v3158
    %v3160 = vmul.f32 %v3159, 0.6931472
    %v3161 = vsub.f32 %v3154, %v3160
    %3162 = vst [vmem:[%s12] sm:$0xff] %v3161
    // Predicated region
    $region66: #{lenet_forward.1} parent=1 // pred_check
      _
    $region67: #{lenet_forward.1} parent=1 // pred_check_branch
      %3164 = sbr.rel (0) target = $region69
    $region68: #{lenet_forward.1} parent=1 // pred_region
      _
    $region69: #{lenet_forward.1} parent=1 // pred_fallthru
      _
    // Predicated region
    $region70: #{lenet_forward.1} parent=1 // pred_check
      _
    $region71: #{lenet_forward.1} parent=1 // pred_check_branch
      %3166 = sbr.rel (0) target = $region73
    $region72: #{lenet_forward.1} parent=1 // pred_region
      _
    $region73: #{lenet_forward.1} parent=1 // pred_fallthru
      _
    %3167 = vsyncpa [#allocation3], 1
    %3168 = vsyncpa [#allocation5], 1
    %3169 = vsyncpa [#allocation8], 1

</llo_original>
